<compile_context>
chip_gen: v7x
topology: tpu7x:2x2x1
jax: 0.10.0
libtpu: 0.0.40
codegen_flags: <defaults>
</compile_context>

<pallas_src>
import jax
import jax.numpy as jnp
import numpy as np
from jax import lax
from jax.experimental import pallas as pl
from jax.experimental.pallas import tpu as pltpu

EPS = 1e-5


def _sepconv_kernel(p00_ref, p01_ref, p10_ref, p11_ref,
                    wdw1_ref, wpw1_ref, b1_ref, wdw2_ref, wpw2_ref, b2_ref,
                    out_ref, s01_ref, s10_ref, s11_ref, ypad_ref):
    """Fused SepConv forward for one batch block, NCHW layout.

    p00/p01/p10/p11: stride-2 phases of the input x[a::2, b::2], each
    (bb, cin, ho, wo).  All weights/biases are flat f32 arrays in SMEM with
    BatchNorm folded into the pointwise weights/biases.
    """
    bb, cin, ho, wo = p00_ref.shape
    cout = out_ref.shape[1]
    f32 = jnp.float32

    # ---- refresh the zero borders of the shift scratches (cheap strips) ----
    s01_ref[:, :, :, 0:1] = jnp.zeros((bb, cin, ho, 1), f32)
    s10_ref[:, :, 0:1, :] = jnp.zeros((bb, cin, 1, wo), f32)
    s11_ref[:, :, 0:1, :] = jnp.zeros((bb, cin, 1, wo + 1), f32)
    s11_ref[:, :, :, 0:1] = jnp.zeros((bb, cin, ho + 1, 1), f32)
    ypad_ref[:, :, 0:1, :] = jnp.zeros((bb, cin, 1, wo + 2), f32)
    ypad_ref[:, :, ho + 1:ho + 2, :] = jnp.zeros((bb, cin, 1, wo + 2), f32)
    ypad_ref[:, :, :, 0:1] = jnp.zeros((bb, cin, ho + 2, 1), f32)
    ypad_ref[:, :, :, wo + 1:wo + 2] = jnp.zeros((bb, cin, ho + 2, 1), f32)

    # interiors of the shift scratches = phases that need a "-1" shift in h/w
    s01_ref[:, :, :, 1:wo + 1] = p01_ref[...]
    s10_ref[:, :, 1:ho + 1, :] = p10_ref[...]
    s11_ref[:, :, 1:ho + 1, 1:wo + 1] = p11_ref[...]

    # ---- stage 1: depthwise 3x3 / stride 2 / pad 1 (unit-stride taps) ----
    acc1 = []
    for c in range(cin):
        w0 = c * 9
        a = p00_ref[:, c] * wdw1_ref[w0 + 4]                          # (1,1)
        a = a + s01_ref[:, c, :, 0:wo] * wdw1_ref[w0 + 3]             # (1,0)
        a = a + s01_ref[:, c, :, 1:wo + 1] * wdw1_ref[w0 + 5]         # (1,2)
        a = a + s10_ref[:, c, 0:ho, :] * wdw1_ref[w0 + 1]             # (0,1)
        a = a + s10_ref[:, c, 1:ho + 1, :] * wdw1_ref[w0 + 7]         # (2,1)
        a = a + s11_ref[:, c, 0:ho, 0:wo] * wdw1_ref[w0 + 0]          # (0,0)
        a = a + s11_ref[:, c, 0:ho, 1:wo + 1] * wdw1_ref[w0 + 2]      # (0,2)
        a = a + s11_ref[:, c, 1:ho + 1, 0:wo] * wdw1_ref[w0 + 6]      # (2,0)
        a = a + s11_ref[:, c, 1:ho + 1, 1:wo + 1] * wdw1_ref[w0 + 8]  # (2,2)
        acc1.append(a)

    # ---- stages 2+3: 1x1 conv (cin->cin) + folded BN1 + ReLU, written into
    #      the zero-padded scratch used by the stride-1 depthwise conv ----
    for o in range(cin):
        y = acc1[0] * wpw1_ref[o * cin]
        for i in range(1, cin):
            y = y + acc1[i] * wpw1_ref[o * cin + i]
        y = jnp.maximum(y + b1_ref[o], 0.0)
        ypad_ref[:, o, 1:ho + 1, 1:wo + 1] = y

    # ---- stage 4: depthwise 3x3 / stride 1 / pad 1 ----
    acc2 = []
    for c in range(cin):
        yp = ypad_ref[:, c]                                   # (bb, ho+2, wo+2)
        a = jnp.zeros((bb, ho, wo), f32)
        for kh in range(3):
            for kw in range(3):
                a = a + yp[:, kh:kh + ho, kw:kw + wo] * wdw2_ref[c * 9 + kh * 3 + kw]
        acc2.append(a)

    # ---- stages 5+6: 1x1 conv (cin->cout) + folded BN2 + ReLU ----
    for o in range(cout):
        z = acc2[0] * wpw2_ref[o * cin]
        for i in range(1, cin):
            z = z + acc2[i] * wpw2_ref[o * cin + i]
        out_ref[:, o] = jnp.maximum(z + b2_ref[o], 0.0)


def sepconv_pallas(x_nchw, kparams):
    wdw1, wpw1, b1, wdw2, wpw2, b2 = kparams
    x = x_nchw.astype(jnp.float32)
    B, cin, H, W = x.shape
    cout = b2.shape[0]
    assert H % 2 == 0 and W % 2 == 0, "stride-2 kernel assumes even H, W"
    ho, wo = H // 2, W // 2

    # as many batch elements per grid step as possible (<=8) to amortise the
    # per-step overhead; grid axis is 'parallel' for v7x megacore sharding.
    bblk = next(d for d in range(min(B, 8), 0, -1) if B % d == 0)

    # space-to-depth phase split: 4 strided slices = exactly 1x the input
    # (no 9x tap materialization, no pad/stack, no NCHW<->NHWC transpose).
    p00 = x[:, :, 0::2, 0::2]
    p01 = x[:, :, 0::2, 1::2]
    p10 = x[:, :, 1::2, 0::2]
    p11 = x[:, :, 1::2, 1::2]

    phase_spec = pl.BlockSpec((bblk, cin, ho, wo), lambda i: (i, 0, 0, 0))
    smem_spec = pl.BlockSpec(memory_space=pltpu.MemorySpace.SMEM)

    return pl.pallas_call(
        _sepconv_kernel,
        out_shape=jax.ShapeDtypeStruct((B, cout, ho, wo), jnp.float32),
        grid=(B // bblk,),
        in_specs=[phase_spec, phase_spec, phase_spec, phase_spec,
                  smem_spec, smem_spec, smem_spec,
                  smem_spec, smem_spec, smem_spec],
        out_specs=pl.BlockSpec((bblk, cout, ho, wo), lambda i: (i, 0, 0, 0)),
        scratch_shapes=[
            pltpu.VMEM((bblk, cin, ho, wo + 1), jnp.float32),      # s01 (w-1 shift)
            pltpu.VMEM((bblk, cin, ho + 1, wo), jnp.float32),      # s10 (h-1 shift)
            pltpu.VMEM((bblk, cin, ho + 1, wo + 1), jnp.float32),  # s11 (h-1,w-1)
            pltpu.VMEM((bblk, cin, ho + 2, wo + 2), jnp.float32),  # ypad (stage 4)
        ],
        compiler_params=pltpu.CompilerParams(
            dimension_semantics=("parallel",)),
    )(p00, p01, p10, p11, wdw1, wpw1, b1, wdw2, wpw2, b2)


def init_torch_params(key, cin, cout, ksize=3):
    """Deterministic params in PyTorch layouts."""
    ks = jax.random.split(key, 12)
    w_dw1 = jax.random.normal(ks[0], (cin, 1, ksize, ksize), jnp.float32) * 0.3
    w_pw1 = jax.random.normal(ks[1], (cin, cin, 1, 1), jnp.float32) * 0.3
    w_dw2 = jax.random.normal(ks[2], (cin, 1, ksize, ksize), jnp.float32) * 0.3
    w_pw2 = jax.random.normal(ks[3], (cout, cin, 1, 1), jnp.float32) * 0.3
    g1 = 1.0 + 0.1 * jax.random.normal(ks[4], (cin,), jnp.float32)
    b1 = 0.1 * jax.random.normal(ks[5], (cin,), jnp.float32)
    m1 = 0.1 * jax.random.normal(ks[6], (cin,), jnp.float32)
    v1 = 0.5 + 0.5 * jnp.abs(jax.random.normal(ks[7], (cin,), jnp.float32))
    g2 = 1.0 + 0.1 * jax.random.normal(ks[8], (cout,), jnp.float32)
    b2 = 0.1 * jax.random.normal(ks[9], (cout,), jnp.float32)
    m2 = 0.1 * jax.random.normal(ks[10], (cout,), jnp.float32)
    v2 = 0.5 + 0.5 * jnp.abs(jax.random.normal(ks[11], (cout,), jnp.float32))
    return dict(w_dw1=w_dw1, w_pw1=w_pw1, w_dw2=w_dw2, w_pw2=w_pw2,
                g1=g1, b1=b1, m1=m1, v1=v1, g2=g2, b2=b2, m2=m2, v2=v2)


def to_kernel_params(p, cin, cout, ksize=3):
    """Flatten weights for SMEM scalar access and fold BN into the 1x1 convs."""
    k2 = ksize * ksize
    s1 = p["g1"] / jnp.sqrt(p["v1"] + EPS)
    s2 = p["g2"] / jnp.sqrt(p["v2"] + EPS)
    wdw1 = p["w_dw1"].reshape(cin, k2).reshape(-1)                # [c*9 + kh*3 + kw]
    wdw2 = p["w_dw2"].reshape(cin, k2).reshape(-1)
    wpw1 = (p["w_pw1"][:, :, 0, 0] * s1[:, None]).reshape(-1)     # [o*cin + i], BN1 folded
    wpw2 = (p["w_pw2"][:, :, 0, 0] * s2[:, None]).reshape(-1)     # [o*cin + i], BN2 folded
    b1 = p["b1"] - p["m1"] * s1                                   # (cin,)
    b2 = p["b2"] - p["m2"] * s2                                   # (cout,)
    return (wdw1, wpw1, b1, wdw2, wpw2, b2)


def sepconv_ref(x, p):
    """Pure-JAX reference mirroring the PyTorch ops (NCHW, OIHW)."""
    dn = ("NCHW", "OIHW", "NCHW")
    cin = x.shape[1]
    prec = lax.Precision.HIGHEST

    def bn(y, g, b, m, v):
        sh = (1, -1, 1, 1)
        return (y - m.reshape(sh)) / jnp.sqrt(v.reshape(sh) + EPS) * g.reshape(sh) + b.reshape(sh)

    y = lax.conv_general_dilated(x, p["w_dw1"], (2, 2), ((1, 1), (1, 1)),
                                 dimension_numbers=dn, feature_group_count=cin,
                                 precision=prec)
    y = lax.conv_general_dilated(y, p["w_pw1"], (1, 1), ((0, 0), (0, 0)),
                                 dimension_numbers=dn, precision=prec)
    y = jnp.maximum(bn(y, p["g1"], p["b1"], p["m1"], p["v1"]), 0.0)
    y = lax.conv_general_dilated(y, p["w_dw2"], (1, 1), ((1, 1), (1, 1)),
                                 dimension_numbers=dn, feature_group_count=cin,
                                 precision=prec)
    y = lax.conv_general_dilated(y, p["w_pw2"], (1, 1), ((0, 0), (0, 0)),
                                 dimension_numbers=dn, precision=prec)
    return jnp.maximum(bn(y, p["g2"], p["b2"], p["m2"], p["v2"]), 0.0)


if __name__ == "__main__":
    B, CIN, COUT, H, W = 2, 4, 8, 16, 16
    key = jax.random.PRNGKey(0)
    kx, kp = jax.random.split(key)

    x = jax.random.normal(kx, (B, CIN, H, W), jnp.float32)
    torch_params = init_torch_params(kp, CIN, COUT)
    kernel_params = to_kernel_params(torch_params, CIN, COUT)

    out = jax.jit(sepconv_pallas)(x, kernel_params)
    out = jax.block_until_ready(out)

    ref = jax.block_until_ready(sepconv_ref(x, torch_params))
    np.testing.assert_allclose(np.asarray(out), np.asarray(ref),
                               rtol=1e-4, atol=1e-4)
    assert out.shape == (B, COUT, H // 2, W // 2)
    print("KERNEL_OK")
</pallas_src>

<mosaic_0001>
module attributes {stable_mosaic.version = 11 : i64} {
  func.func @_sepconv_kernel(%arg0: i32, %arg1: memref<2x4x8x8xf32, #tpu.memory_space<vmem>>, %arg2: memref<2x4x8x8xf32, #tpu.memory_space<vmem>>, %arg3: memref<2x4x8x8xf32, #tpu.memory_space<vmem>>, %arg4: memref<2x4x8x8xf32, #tpu.memory_space<vmem>>, %arg5: memref<36xf32, #tpu.memory_space<smem>>, %arg6: memref<16xf32, #tpu.memory_space<smem>>, %arg7: memref<4xf32, #tpu.memory_space<smem>>, %arg8: memref<36xf32, #tpu.memory_space<smem>>, %arg9: memref<32xf32, #tpu.memory_space<smem>>, %arg10: memref<8xf32, #tpu.memory_space<smem>>, %arg11: memref<2x8x8x8xf32, #tpu.memory_space<vmem>>, %arg12: memref<2x4x8x9xf32, #tpu.memory_space<vmem>>, %arg13: memref<2x4x9x8xf32, #tpu.memory_space<vmem>>, %arg14: memref<2x4x9x9xf32, #tpu.memory_space<vmem>>, %arg15: memref<2x4x10x10xf32, #tpu.memory_space<vmem>>) attributes {dimension_semantics = [#tpu.dimension_semantics<parallel>], iteration_bounds = array<i64: 1>, scalar_prefetch = 0 : i64, scratch_operands = 4 : i64, tpu.core_type = #tpu.core_type<tc>, window_params = [{transform_indices = @transform_0, window_bounds = array<i64: 2, 4, 8, 8>}, {transform_indices = @transform_1, window_bounds = array<i64: 2, 4, 8, 8>}, {transform_indices = @transform_2, window_bounds = array<i64: 2, 4, 8, 8>}, {transform_indices = @transform_3, window_bounds = array<i64: 2, 4, 8, 8>}, {transform_indices = @transform_4, window_bounds = array<i64: 36>}, {transform_indices = @transform_5, window_bounds = array<i64: 16>}, {transform_indices = @transform_6, window_bounds = array<i64: 4>}, {transform_indices = @transform_7, window_bounds = array<i64: 36>}, {transform_indices = @transform_8, window_bounds = array<i64: 32>}, {transform_indices = @transform_9, window_bounds = array<i64: 8>}, {transform_indices = @transform_10, window_bounds = array<i64: 2, 8, 8, 8>}]} {
    %cst = arith.constant 0.000000e+00 : f32
    %0 = vector.broadcast %cst : f32 to vector<2x4x8x1xf32>
    %c0 = arith.constant 0 : index
    %c0_0 = arith.constant 0 : index
    %c0_1 = arith.constant 0 : index
    %c0_2 = arith.constant 0 : index
    %1 = vector.load %arg12[%c0, %c0_0, %c0_1, %c0_2] : memref<2x4x8x9xf32, #tpu.memory_space<vmem>>, vector<2x4x8x1xf32>
    tpu.vector_store %arg12[%c0, %c0_0, %c0_1, %c0_2], %0 {strides = array<i32>} : memref<2x4x8x9xf32, #tpu.memory_space<vmem>>, vector<2x4x8x1xf32>,
    %cst_3 = arith.constant 0.000000e+00 : f32
    %2 = vector.broadcast %cst_3 : f32 to vector<2x4x1x8xf32>
    %c0_4 = arith.constant 0 : index
    %c0_5 = arith.constant 0 : index
    %c0_6 = arith.constant 0 : index
    %c0_7 = arith.constant 0 : index
    %3 = vector.load %arg13[%c0_4, %c0_5, %c0_6, %c0_7] : memref<2x4x9x8xf32, #tpu.memory_space<vmem>>, vector<2x4x1x8xf32>
    tpu.vector_store %arg13[%c0_4, %c0_5, %c0_6, %c0_7], %2 {strides = array<i32>} : memref<2x4x9x8xf32, #tpu.memory_space<vmem>>, vector<2x4x1x8xf32>,
    %cst_8 = arith.constant 0.000000e+00 : f32
    %4 = vector.broadcast %cst_8 : f32 to vector<2x4x1x9xf32>
    %c0_9 = arith.constant 0 : index
    %c0_10 = arith.constant 0 : index
    %c0_11 = arith.constant 0 : index
    %c0_12 = arith.constant 0 : index
    %5 = vector.load %arg14[%c0_9, %c0_10, %c0_11, %c0_12] : memref<2x4x9x9xf32, #tpu.memory_space<vmem>>, vector<2x4x1x9xf32>
    tpu.vector_store %arg14[%c0_9, %c0_10, %c0_11, %c0_12], %4 {strides = array<i32>} : memref<2x4x9x9xf32, #tpu.memory_space<vmem>>, vector<2x4x1x9xf32>,
    %cst_13 = arith.constant 0.000000e+00 : f32
    %6 = vector.broadcast %cst_13 : f32 to vector<2x4x9x1xf32>
    %c0_14 = arith.constant 0 : index
    %c0_15 = arith.constant 0 : index
    %c0_16 = arith.constant 0 : index
    %c0_17 = arith.constant 0 : index
    %7 = vector.load %arg14[%c0_14, %c0_15, %c0_16, %c0_17] : memref<2x4x9x9xf32, #tpu.memory_space<vmem>>, vector<2x4x9x1xf32>
    tpu.vector_store %arg14[%c0_14, %c0_15, %c0_16, %c0_17], %6 {strides = array<i32>} : memref<2x4x9x9xf32, #tpu.memory_space<vmem>>, vector<2x4x9x1xf32>,
    %cst_18 = arith.constant 0.000000e+00 : f32
    %8 = vector.broadcast %cst_18 : f32 to vector<2x4x1x10xf32>
    %c0_19 = arith.constant 0 : index
    %c0_20 = arith.constant 0 : index
    %c0_21 = arith.constant 0 : index
    %c0_22 = arith.constant 0 : index
    %9 = vector.load %arg15[%c0_19, %c0_20, %c0_21, %c0_22] : memref<2x4x10x10xf32, #tpu.memory_space<vmem>>, vector<2x4x1x10xf32>
    tpu.vector_store %arg15[%c0_19, %c0_20, %c0_21, %c0_22], %8 {strides = array<i32>} : memref<2x4x10x10xf32, #tpu.memory_space<vmem>>, vector<2x4x1x10xf32>,
    %cst_23 = arith.constant 0.000000e+00 : f32
    %10 = vector.broadcast %cst_23 : f32 to vector<2x4x1x10xf32>
    %c0_24 = arith.constant 0 : index
    %c0_25 = arith.constant 0 : index
    %c9 = arith.constant 9 : index
    %c0_26 = arith.constant 0 : index
    %11 = vector.load %arg15[%c0_24, %c0_25, %c9, %c0_26] : memref<2x4x10x10xf32, #tpu.memory_space<vmem>>, vector<2x4x1x10xf32>
    tpu.vector_store %arg15[%c0_24, %c0_25, %c9, %c0_26], %10 {strides = array<i32>} : memref<2x4x10x10xf32, #tpu.memory_space<vmem>>, vector<2x4x1x10xf32>,
    %cst_27 = arith.constant 0.000000e+00 : f32
    %12 = vector.broadcast %cst_27 : f32 to vector<2x4x10x1xf32>
    %c0_28 = arith.constant 0 : index
    %c0_29 = arith.constant 0 : index
    %c0_30 = arith.constant 0 : index
    %c0_31 = arith.constant 0 : index
    %13 = vector.load %arg15[%c0_28, %c0_29, %c0_30, %c0_31] : memref<2x4x10x10xf32, #tpu.memory_space<vmem>>, vector<2x4x10x1xf32>
    tpu.vector_store %arg15[%c0_28, %c0_29, %c0_30, %c0_31], %12 {strides = array<i32>} : memref<2x4x10x10xf32, #tpu.memory_space<vmem>>, vector<2x4x10x1xf32>,
    %cst_32 = arith.constant 0.000000e+00 : f32
    %14 = vector.broadcast %cst_32 : f32 to vector<2x4x10x1xf32>
    %c0_33 = arith.constant 0 : index
    %c0_34 = arith.constant 0 : index
    %c0_35 = arith.constant 0 : index
    %c9_36 = arith.constant 9 : index
    %15 = vector.load %arg15[%c0_33, %c0_34, %c0_35, %c9_36] : memref<2x4x10x10xf32, #tpu.memory_space<vmem>>, vector<2x4x10x1xf32>
    tpu.vector_store %arg15[%c0_33, %c0_34, %c0_35, %c9_36], %14 {strides = array<i32>} : memref<2x4x10x10xf32, #tpu.memory_space<vmem>>, vector<2x4x10x1xf32>,
    %c0_37 = arith.constant 0 : index
    %c0_38 = arith.constant 0 : index
    %c0_39 = arith.constant 0 : index
    %c0_40 = arith.constant 0 : index
    %16 = vector.load %arg2[%c0_37, %c0_38, %c0_39, %c0_40] : memref<2x4x8x8xf32, #tpu.memory_space<vmem>>, vector<2x4x8x8xf32>
    %c0_41 = arith.constant 0 : index
    %c0_42 = arith.constant 0 : index
    %c0_43 = arith.constant 0 : index
    %c1 = arith.constant 1 : index
    %17 = vector.load %arg12[%c0_41, %c0_42, %c0_43, %c1] : memref<2x4x8x9xf32, #tpu.memory_space<vmem>>, vector<2x4x8x8xf32>
    tpu.vector_store %arg12[%c0_41, %c0_42, %c0_43, %c1], %16 {strides = array<i32>} : memref<2x4x8x9xf32, #tpu.memory_space<vmem>>, vector<2x4x8x8xf32>,
    %c0_44 = arith.constant 0 : index
    %c0_45 = arith.constant 0 : index
    %c0_46 = arith.constant 0 : index
    %c0_47 = arith.constant 0 : index
    %18 = vector.load %arg3[%c0_44, %c0_45, %c0_46, %c0_47] : memref<2x4x8x8xf32, #tpu.memory_space<vmem>>, vector<2x4x8x8xf32>
    %c0_48 = arith.constant 0 : index
    %c0_49 = arith.constant 0 : index
    %c1_50 = arith.constant 1 : index
    %c0_51 = arith.constant 0 : index
    %19 = vector.load %arg13[%c0_48, %c0_49, %c1_50, %c0_51] : memref<2x4x9x8xf32, #tpu.memory_space<vmem>>, vector<2x4x8x8xf32>
    tpu.vector_store %arg13[%c0_48, %c0_49, %c1_50, %c0_51], %18 {strides = array<i32>} : memref<2x4x9x8xf32, #tpu.memory_space<vmem>>, vector<2x4x8x8xf32>,
    %c0_52 = arith.constant 0 : index
    %c0_53 = arith.constant 0 : index
    %c0_54 = arith.constant 0 : index
    %c0_55 = arith.constant 0 : index
    %20 = vector.load %arg4[%c0_52, %c0_53, %c0_54, %c0_55] : memref<2x4x8x8xf32, #tpu.memory_space<vmem>>, vector<2x4x8x8xf32>
    %c0_56 = arith.constant 0 : index
    %c0_57 = arith.constant 0 : index
    %c1_58 = arith.constant 1 : index
    %c1_59 = arith.constant 1 : index
    %21 = vector.load %arg14[%c0_56, %c0_57, %c1_58, %c1_59] : memref<2x4x9x9xf32, #tpu.memory_space<vmem>>, vector<2x4x8x8xf32>
    tpu.vector_store %arg14[%c0_56, %c0_57, %c1_58, %c1_59], %20 {strides = array<i32>} : memref<2x4x9x9xf32, #tpu.memory_space<vmem>>, vector<2x4x8x8xf32>,
    %c0_60 = arith.constant 0 : index
    %c0_61 = arith.constant 0 : index
    %c0_62 = arith.constant 0 : index
    %c0_63 = arith.constant 0 : index
    %22 = vector.load %arg1[%c0_60, %c0_61, %c0_62, %c0_63] : memref<2x4x8x8xf32, #tpu.memory_space<vmem>>, vector<2x1x8x8xf32>
    %23 = vector.shape_cast %22 : vector<2x1x8x8xf32> to vector<2x8x8xf32>
    %c4 = arith.constant 4 : index
    %24 = memref.load %arg5[%c4] : memref<36xf32, #tpu.memory_space<smem>>
    %25 = vector.broadcast %24 : f32 to vector<2x8x8xf32>
    %26 = arith.mulf %23, %25 : vector<2x8x8xf32>
    %c0_64 = arith.constant 0 : index
    %c0_65 = arith.constant 0 : index
    %c0_66 = arith.constant 0 : index
    %c0_67 = arith.constant 0 : index
    %27 = vector.load %arg12[%c0_64, %c0_65, %c0_66, %c0_67] : memref<2x4x8x9xf32, #tpu.memory_space<vmem>>, vector<2x1x8x8xf32>
    %28 = vector.shape_cast %27 : vector<2x1x8x8xf32> to vector<2x8x8xf32>
    %c3 = arith.constant 3 : index
    %29 = memref.load %arg5[%c3] : memref<36xf32, #tpu.memory_space<smem>>
    %30 = vector.broadcast %29 : f32 to vector<2x8x8xf32>
    %31 = arith.mulf %28, %30 : vector<2x8x8xf32>
    %32 = arith.addf %26, %31 : vector<2x8x8xf32>
    %c0_68 = arith.constant 0 : index
    %c0_69 = arith.constant 0 : index
    %c0_70 = arith.constant 0 : index
    %c1_71 = arith.constant 1 : index
    %33 = vector.load %arg12[%c0_68, %c0_69, %c0_70, %c1_71] : memref<2x4x8x9xf32, #tpu.memory_space<vmem>>, vector<2x1x8x8xf32>
    %34 = vector.shape_cast %33 : vector<2x1x8x8xf32> to vector<2x8x8xf32>
    %c5 = arith.constant 5 : index
    %35 = memref.load %arg5[%c5] : memref<36xf32, #tpu.memory_space<smem>>
    %36 = vector.broadcast %35 : f32 to vector<2x8x8xf32>
    %37 = arith.mulf %34, %36 : vector<2x8x8xf32>
    %38 = arith.addf %32, %37 : vector<2x8x8xf32>
    %c0_72 = arith.constant 0 : index
    %c0_73 = arith.constant 0 : index
    %c0_74 = arith.constant 0 : index
    %c0_75 = arith.constant 0 : index
    %39 = vector.load %arg13[%c0_72, %c0_73, %c0_74, %c0_75] : memref<2x4x9x8xf32, #tpu.memory_space<vmem>>, vector<2x1x8x8xf32>
    %40 = vector.shape_cast %39 : vector<2x1x8x8xf32> to vector<2x8x8xf32>
    %c1_76 = arith.constant 1 : index
    %41 = memref.load %arg5[%c1_76] : memref<36xf32, #tpu.memory_space<smem>>
    %42 = vector.broadcast %41 : f32 to vector<2x8x8xf32>
    %43 = arith.mulf %40, %42 : vector<2x8x8xf32>
    %44 = arith.addf %38, %43 : vector<2x8x8xf32>
    %c0_77 = arith.constant 0 : index
    %c0_78 = arith.constant 0 : index
    %c1_79 = arith.constant 1 : index
    %c0_80 = arith.constant 0 : index
    %45 = vector.load %arg13[%c0_77, %c0_78, %c1_79, %c0_80] : memref<2x4x9x8xf32, #tpu.memory_space<vmem>>, vector<2x1x8x8xf32>
    %46 = vector.shape_cast %45 : vector<2x1x8x8xf32> to vector<2x8x8xf32>
    %c7 = arith.constant 7 : index
    %47 = memref.load %arg5[%c7] : memref<36xf32, #tpu.memory_space<smem>>
    %48 = vector.broadcast %47 : f32 to vector<2x8x8xf32>
    %49 = arith.mulf %46, %48 : vector<2x8x8xf32>
    %50 = arith.addf %44, %49 : vector<2x8x8xf32>
    %c0_81 = arith.constant 0 : index
    %c0_82 = arith.constant 0 : index
    %c0_83 = arith.constant 0 : index
    %c0_84 = arith.constant 0 : index
    %51 = vector.load %arg14[%c0_81, %c0_82, %c0_83, %c0_84] : memref<2x4x9x9xf32, #tpu.memory_space<vmem>>, vector<2x1x8x8xf32>
    %52 = vector.shape_cast %51 : vector<2x1x8x8xf32> to vector<2x8x8xf32>
    %c0_85 = arith.constant 0 : index
    %53 = memref.load %arg5[%c0_85] : memref<36xf32, #tpu.memory_space<smem>>
    %54 = vector.broadcast %53 : f32 to vector<2x8x8xf32>
    %55 = arith.mulf %52, %54 : vector<2x8x8xf32>
    %56 = arith.addf %50, %55 : vector<2x8x8xf32>
    %c0_86 = arith.constant 0 : index
    %c0_87 = arith.constant 0 : index
    %c0_88 = arith.constant 0 : index
    %c1_89 = arith.constant 1 : index
    %57 = vector.load %arg14[%c0_86, %c0_87, %c0_88, %c1_89] : memref<2x4x9x9xf32, #tpu.memory_space<vmem>>, vector<2x1x8x8xf32>
    %58 = vector.shape_cast %57 : vector<2x1x8x8xf32> to vector<2x8x8xf32>
    %c2 = arith.constant 2 : index
    %59 = memref.load %arg5[%c2] : memref<36xf32, #tpu.memory_space<smem>>
    %60 = vector.broadcast %59 : f32 to vector<2x8x8xf32>
    %61 = arith.mulf %58, %60 : vector<2x8x8xf32>
    %62 = arith.addf %56, %61 : vector<2x8x8xf32>
    %c0_90 = arith.constant 0 : index
    %c0_91 = arith.constant 0 : index
    %c1_92 = arith.constant 1 : index
    %c0_93 = arith.constant 0 : index
    %63 = vector.load %arg14[%c0_90, %c0_91, %c1_92, %c0_93] : memref<2x4x9x9xf32, #tpu.memory_space<vmem>>, vector<2x1x8x8xf32>
    %64 = vector.shape_cast %63 : vector<2x1x8x8xf32> to vector<2x8x8xf32>
    %c6 = arith.constant 6 : index
    %65 = memref.load %arg5[%c6] : memref<36xf32, #tpu.memory_space<smem>>
    %66 = vector.broadcast %65 : f32 to vector<2x8x8xf32>
    %67 = arith.mulf %64, %66 : vector<2x8x8xf32>
    %68 = arith.addf %62, %67 : vector<2x8x8xf32>
    %c0_94 = arith.constant 0 : index
    %c0_95 = arith.constant 0 : index
    %c1_96 = arith.constant 1 : index
    %c1_97 = arith.constant 1 : index
    %69 = vector.load %arg14[%c0_94, %c0_95, %c1_96, %c1_97] : memref<2x4x9x9xf32, #tpu.memory_space<vmem>>, vector<2x1x8x8xf32>
    %70 = vector.shape_cast %69 : vector<2x1x8x8xf32> to vector<2x8x8xf32>
    %c8 = arith.constant 8 : index
    %71 = memref.load %arg5[%c8] : memref<36xf32, #tpu.memory_space<smem>>
    %72 = vector.broadcast %71 : f32 to vector<2x8x8xf32>
    %73 = arith.mulf %70, %72 : vector<2x8x8xf32>
    %74 = arith.addf %68, %73 : vector<2x8x8xf32>
    %c0_98 = arith.constant 0 : index
    %c1_99 = arith.constant 1 : index
    %c0_100 = arith.constant 0 : index
    %c0_101 = arith.constant 0 : index
    %75 = vector.load %arg1[%c0_98, %c1_99, %c0_100, %c0_101] : memref<2x4x8x8xf32, #tpu.memory_space<vmem>>, vector<2x1x8x8xf32>
    %76 = vector.shape_cast %75 : vector<2x1x8x8xf32> to vector<2x8x8xf32>
    %c13 = arith.constant 13 : index
    %77 = memref.load %arg5[%c13] : memref<36xf32, #tpu.memory_space<smem>>
    %78 = vector.broadcast %77 : f32 to vector<2x8x8xf32>
    %79 = arith.mulf %76, %78 : vector<2x8x8xf32>
    %c0_102 = arith.constant 0 : index
    %c1_103 = arith.constant 1 : index
    %c0_104 = arith.constant 0 : index
    %c0_105 = arith.constant 0 : index
    %80 = vector.load %arg12[%c0_102, %c1_103, %c0_104, %c0_105] : memref<2x4x8x9xf32, #tpu.memory_space<vmem>>, vector<2x1x8x8xf32>
    %81 = vector.shape_cast %80 : vector<2x1x8x8xf32> to vector<2x8x8xf32>
    %c12 = arith.constant 12 : index
    %82 = memref.load %arg5[%c12] : memref<36xf32, #tpu.memory_space<smem>>
    %83 = vector.broadcast %82 : f32 to vector<2x8x8xf32>
    %84 = arith.mulf %81, %83 : vector<2x8x8xf32>
    %85 = arith.addf %79, %84 : vector<2x8x8xf32>
    %c0_106 = arith.constant 0 : index
    %c1_107 = arith.constant 1 : index
    %c0_108 = arith.constant 0 : index
    %c1_109 = arith.constant 1 : index
    %86 = vector.load %arg12[%c0_106, %c1_107, %c0_108, %c1_109] : memref<2x4x8x9xf32, #tpu.memory_space<vmem>>, vector<2x1x8x8xf32>
    %87 = vector.shape_cast %86 : vector<2x1x8x8xf32> to vector<2x8x8xf32>
    %c14 = arith.constant 14 : index
    %88 = memref.load %arg5[%c14] : memref<36xf32, #tpu.memory_space<smem>>
    %89 = vector.broadcast %88 : f32 to vector<2x8x8xf32>
    %90 = arith.mulf %87, %89 : vector<2x8x8xf32>
    %91 = arith.addf %85, %90 : vector<2x8x8xf32>
    %c0_110 = arith.constant 0 : index
    %c1_111 = arith.constant 1 : index
    %c0_112 = arith.constant 0 : index
    %c0_113 = arith.constant 0 : index
    %92 = vector.load %arg13[%c0_110, %c1_111, %c0_112, %c0_113] : memref<2x4x9x8xf32, #tpu.memory_space<vmem>>, vector<2x1x8x8xf32>
    %93 = vector.shape_cast %92 : vector<2x1x8x8xf32> to vector<2x8x8xf32>
    %c10 = arith.constant 10 : index
    %94 = memref.load %arg5[%c10] : memref<36xf32, #tpu.memory_space<smem>>
    %95 = vector.broadcast %94 : f32 to vector<2x8x8xf32>
    %96 = arith.mulf %93, %95 : vector<2x8x8xf32>
    %97 = arith.addf %91, %96 : vector<2x8x8xf32>
    %c0_114 = arith.constant 0 : index
    %c1_115 = arith.constant 1 : index
    %c1_116 = arith.constant 1 : index
    %c0_117 = arith.constant 0 : index
    %98 = vector.load %arg13[%c0_114, %c1_115, %c1_116, %c0_117] : memref<2x4x9x8xf32, #tpu.memory_space<vmem>>, vector<2x1x8x8xf32>
    %99 = vector.shape_cast %98 : vector<2x1x8x8xf32> to vector<2x8x8xf32>
    %c16 = arith.constant 16 : index
    %100 = memref.load %arg5[%c16] : memref<36xf32, #tpu.memory_space<smem>>
    %101 = vector.broadcast %100 : f32 to vector<2x8x8xf32>
    %102 = arith.mulf %99, %101 : vector<2x8x8xf32>
    %103 = arith.addf %97, %102 : vector<2x8x8xf32>
    %c0_118 = arith.constant 0 : index
    %c1_119 = arith.constant 1 : index
    %c0_120 = arith.constant 0 : index
    %c0_121 = arith.constant 0 : index
    %104 = vector.load %arg14[%c0_118, %c1_119, %c0_120, %c0_121] : memref<2x4x9x9xf32, #tpu.memory_space<vmem>>, vector<2x1x8x8xf32>
    %105 = vector.shape_cast %104 : vector<2x1x8x8xf32> to vector<2x8x8xf32>
    %c9_122 = arith.constant 9 : index
    %106 = memref.load %arg5[%c9_122] : memref<36xf32, #tpu.memory_space<smem>>
    %107 = vector.broadcast %106 : f32 to vector<2x8x8xf32>
    %108 = arith.mulf %105, %107 : vector<2x8x8xf32>
    %109 = arith.addf %103, %108 : vector<2x8x8xf32>
    %c0_123 = arith.constant 0 : index
    %c1_124 = arith.constant 1 : index
    %c0_125 = arith.constant 0 : index
    %c1_126 = arith.constant 1 : index
    %110 = vector.load %arg14[%c0_123, %c1_124, %c0_125, %c1_126] : memref<2x4x9x9xf32, #tpu.memory_space<vmem>>, vector<2x1x8x8xf32>
    %111 = vector.shape_cast %110 : vector<2x1x8x8xf32> to vector<2x8x8xf32>
    %c11 = arith.constant 11 : index
    %112 = memref.load %arg5[%c11] : memref<36xf32, #tpu.memory_space<smem>>
    %113 = vector.broadcast %112 : f32 to vector<2x8x8xf32>
    %114 = arith.mulf %111, %113 : vector<2x8x8xf32>
    %115 = arith.addf %109, %114 : vector<2x8x8xf32>
    %c0_127 = arith.constant 0 : index
    %c1_128 = arith.constant 1 : index
    %c1_129 = arith.constant 1 : index
    %c0_130 = arith.constant 0 : index
    %116 = vector.load %arg14[%c0_127, %c1_128, %c1_129, %c0_130] : memref<2x4x9x9xf32, #tpu.memory_space<vmem>>, vector<2x1x8x8xf32>
    %117 = vector.shape_cast %116 : vector<2x1x8x8xf32> to vector<2x8x8xf32>
    %c15 = arith.constant 15 : index
    %118 = memref.load %arg5[%c15] : memref<36xf32, #tpu.memory_space<smem>>
    %119 = vector.broadcast %118 : f32 to vector<2x8x8xf32>
    %120 = arith.mulf %117, %119 : vector<2x8x8xf32>
    %121 = arith.addf %115, %120 : vector<2x8x8xf32>
    %c0_131 = arith.constant 0 : index
    %c1_132 = arith.constant 1 : index
    %c1_133 = arith.constant 1 : index
    %c1_134 = arith.constant 1 : index
    %122 = vector.load %arg14[%c0_131, %c1_132, %c1_133, %c1_134] : memref<2x4x9x9xf32, #tpu.memory_space<vmem>>, vector<2x1x8x8xf32>
    %123 = vector.shape_cast %122 : vector<2x1x8x8xf32> to vector<2x8x8xf32>
    %c17 = arith.constant 17 : index
    %124 = memref.load %arg5[%c17] : memref<36xf32, #tpu.memory_space<smem>>
    %125 = vector.broadcast %124 : f32 to vector<2x8x8xf32>
    %126 = arith.mulf %123, %125 : vector<2x8x8xf32>
    %127 = arith.addf %121, %126 : vector<2x8x8xf32>
    %c0_135 = arith.constant 0 : index
    %c2_136 = arith.constant 2 : index
    %c0_137 = arith.constant 0 : index
    %c0_138 = arith.constant 0 : index
    %128 = vector.load %arg1[%c0_135, %c2_136, %c0_137, %c0_138] : memref<2x4x8x8xf32, #tpu.memory_space<vmem>>, vector<2x1x8x8xf32>
    %129 = vector.shape_cast %128 : vector<2x1x8x8xf32> to vector<2x8x8xf32>
    %c22 = arith.constant 22 : index
    %130 = memref.load %arg5[%c22] : memref<36xf32, #tpu.memory_space<smem>>
    %131 = vector.broadcast %130 : f32 to vector<2x8x8xf32>
    %132 = arith.mulf %129, %131 : vector<2x8x8xf32>
    %c0_139 = arith.constant 0 : index
    %c2_140 = arith.constant 2 : index
    %c0_141 = arith.constant 0 : index
    %c0_142 = arith.constant 0 : index
    %133 = vector.load %arg12[%c0_139, %c2_140, %c0_141, %c0_142] : memref<2x4x8x9xf32, #tpu.memory_space<vmem>>, vector<2x1x8x8xf32>
    %134 = vector.shape_cast %133 : vector<2x1x8x8xf32> to vector<2x8x8xf32>
    %c21 = arith.constant 21 : index
    %135 = memref.load %arg5[%c21] : memref<36xf32, #tpu.memory_space<smem>>
    %136 = vector.broadcast %135 : f32 to vector<2x8x8xf32>
    %137 = arith.mulf %134, %136 : vector<2x8x8xf32>
    %138 = arith.addf %132, %137 : vector<2x8x8xf32>
    %c0_143 = arith.constant 0 : index
    %c2_144 = arith.constant 2 : index
    %c0_145 = arith.constant 0 : index
    %c1_146 = arith.constant 1 : index
    %139 = vector.load %arg12[%c0_143, %c2_144, %c0_145, %c1_146] : memref<2x4x8x9xf32, #tpu.memory_space<vmem>>, vector<2x1x8x8xf32>
    %140 = vector.shape_cast %139 : vector<2x1x8x8xf32> to vector<2x8x8xf32>
    %c23 = arith.constant 23 : index
    %141 = memref.load %arg5[%c23] : memref<36xf32, #tpu.memory_space<smem>>
    %142 = vector.broadcast %141 : f32 to vector<2x8x8xf32>
    %143 = arith.mulf %140, %142 : vector<2x8x8xf32>
    %144 = arith.addf %138, %143 : vector<2x8x8xf32>
    %c0_147 = arith.constant 0 : index
    %c2_148 = arith.constant 2 : index
    %c0_149 = arith.constant 0 : index
    %c0_150 = arith.constant 0 : index
    %145 = vector.load %arg13[%c0_147, %c2_148, %c0_149, %c0_150] : memref<2x4x9x8xf32, #tpu.memory_space<vmem>>, vector<2x1x8x8xf32>
    %146 = vector.shape_cast %145 : vector<2x1x8x8xf32> to vector<2x8x8xf32>
    %c19 = arith.constant 19 : index
    %147 = memref.load %arg5[%c19] : memref<36xf32, #tpu.memory_space<smem>>
    %148 = vector.broadcast %147 : f32 to vector<2x8x8xf32>
    %149 = arith.mulf %146, %148 : vector<2x8x8xf32>
    %150 = arith.addf %144, %149 : vector<2x8x8xf32>
    %c0_151 = arith.constant 0 : index
    %c2_152 = arith.constant 2 : index
    %c1_153 = arith.constant 1 : index
    %c0_154 = arith.constant 0 : index
    %151 = vector.load %arg13[%c0_151, %c2_152, %c1_153, %c0_154] : memref<2x4x9x8xf32, #tpu.memory_space<vmem>>, vector<2x1x8x8xf32>
    %152 = vector.shape_cast %151 : vector<2x1x8x8xf32> to vector<2x8x8xf32>
    %c25 = arith.constant 25 : index
    %153 = memref.load %arg5[%c25] : memref<36xf32, #tpu.memory_space<smem>>
    %154 = vector.broadcast %153 : f32 to vector<2x8x8xf32>
    %155 = arith.mulf %152, %154 : vector<2x8x8xf32>
    %156 = arith.addf %150, %155 : vector<2x8x8xf32>
    %c0_155 = arith.constant 0 : index
    %c2_156 = arith.constant 2 : index
    %c0_157 = arith.constant 0 : index
    %c0_158 = arith.constant 0 : index
    %157 = vector.load %arg14[%c0_155, %c2_156, %c0_157, %c0_158] : memref<2x4x9x9xf32, #tpu.memory_space<vmem>>, vector<2x1x8x8xf32>
    %158 = vector.shape_cast %157 : vector<2x1x8x8xf32> to vector<2x8x8xf32>
    %c18 = arith.constant 18 : index
    %159 = memref.load %arg5[%c18] : memref<36xf32, #tpu.memory_space<smem>>
    %160 = vector.broadcast %159 : f32 to vector<2x8x8xf32>
    %161 = arith.mulf %158, %160 : vector<2x8x8xf32>
    %162 = arith.addf %156, %161 : vector<2x8x8xf32>
    %c0_159 = arith.constant 0 : index
    %c2_160 = arith.constant 2 : index
    %c0_161 = arith.constant 0 : index
    %c1_162 = arith.constant 1 : index
    %163 = vector.load %arg14[%c0_159, %c2_160, %c0_161, %c1_162] : memref<2x4x9x9xf32, #tpu.memory_space<vmem>>, vector<2x1x8x8xf32>
    %164 = vector.shape_cast %163 : vector<2x1x8x8xf32> to vector<2x8x8xf32>
    %c20 = arith.constant 20 : index
    %165 = memref.load %arg5[%c20] : memref<36xf32, #tpu.memory_space<smem>>
    %166 = vector.broadcast %165 : f32 to vector<2x8x8xf32>
    %167 = arith.mulf %164, %166 : vector<2x8x8xf32>
    %168 = arith.addf %162, %167 : vector<2x8x8xf32>
    %c0_163 = arith.constant 0 : index
    %c2_164 = arith.constant 2 : index
    %c1_165 = arith.constant 1 : index
    %c0_166 = arith.constant 0 : index
    %169 = vector.load %arg14[%c0_163, %c2_164, %c1_165, %c0_166] : memref<2x4x9x9xf32, #tpu.memory_space<vmem>>, vector<2x1x8x8xf32>
    %170 = vector.shape_cast %169 : vector<2x1x8x8xf32> to vector<2x8x8xf32>
    %c24 = arith.constant 24 : index
    %171 = memref.load %arg5[%c24] : memref<36xf32, #tpu.memory_space<smem>>
    %172 = vector.broadcast %171 : f32 to vector<2x8x8xf32>
    %173 = arith.mulf %170, %172 : vector<2x8x8xf32>
    %174 = arith.addf %168, %173 : vector<2x8x8xf32>
    %c0_167 = arith.constant 0 : index
    %c2_168 = arith.constant 2 : index
    %c1_169 = arith.constant 1 : index
    %c1_170 = arith.constant 1 : index
    %175 = vector.load %arg14[%c0_167, %c2_168, %c1_169, %c1_170] : memref<2x4x9x9xf32, #tpu.memory_space<vmem>>, vector<2x1x8x8xf32>
    %176 = vector.shape_cast %175 : vector<2x1x8x8xf32> to vector<2x8x8xf32>
    %c26 = arith.constant 26 : index
    %177 = memref.load %arg5[%c26] : memref<36xf32, #tpu.memory_space<smem>>
    %178 = vector.broadcast %177 : f32 to vector<2x8x8xf32>
    %179 = arith.mulf %176, %178 : vector<2x8x8xf32>
    %180 = arith.addf %174, %179 : vector<2x8x8xf32>
    %c0_171 = arith.constant 0 : index
    %c3_172 = arith.constant 3 : index
    %c0_173 = arith.constant 0 : index
    %c0_174 = arith.constant 0 : index
    %181 = vector.load %arg1[%c0_171, %c3_172, %c0_173, %c0_174] : memref<2x4x8x8xf32, #tpu.memory_space<vmem>>, vector<2x1x8x8xf32>
    %182 = vector.shape_cast %181 : vector<2x1x8x8xf32> to vector<2x8x8xf32>
    %c31 = arith.constant 31 : index
    %183 = memref.load %arg5[%c31] : memref<36xf32, #tpu.memory_space<smem>>
    %184 = vector.broadcast %183 : f32 to vector<2x8x8xf32>
    %185 = arith.mulf %182, %184 : vector<2x8x8xf32>
    %c0_175 = arith.constant 0 : index
    %c3_176 = arith.constant 3 : index
    %c0_177 = arith.constant 0 : index
    %c0_178 = arith.constant 0 : index
    %186 = vector.load %arg12[%c0_175, %c3_176, %c0_177, %c0_178] : memref<2x4x8x9xf32, #tpu.memory_space<vmem>>, vector<2x1x8x8xf32>
    %187 = vector.shape_cast %186 : vector<2x1x8x8xf32> to vector<2x8x8xf32>
    %c30 = arith.constant 30 : index
    %188 = memref.load %arg5[%c30] : memref<36xf32, #tpu.memory_space<smem>>
    %189 = vector.broadcast %188 : f32 to vector<2x8x8xf32>
    %190 = arith.mulf %187, %189 : vector<2x8x8xf32>
    %191 = arith.addf %185, %190 : vector<2x8x8xf32>
    %c0_179 = arith.constant 0 : index
    %c3_180 = arith.constant 3 : index
    %c0_181 = arith.constant 0 : index
    %c1_182 = arith.constant 1 : index
    %192 = vector.load %arg12[%c0_179, %c3_180, %c0_181, %c1_182] : memref<2x4x8x9xf32, #tpu.memory_space<vmem>>, vector<2x1x8x8xf32>
    %193 = vector.shape_cast %192 : vector<2x1x8x8xf32> to vector<2x8x8xf32>
    %c32 = arith.constant 32 : index
    %194 = memref.load %arg5[%c32] : memref<36xf32, #tpu.memory_space<smem>>
    %195 = vector.broadcast %194 : f32 to vector<2x8x8xf32>
    %196 = arith.mulf %193, %195 : vector<2x8x8xf32>
    %197 = arith.addf %191, %196 : vector<2x8x8xf32>
    %c0_183 = arith.constant 0 : index
    %c3_184 = arith.constant 3 : index
    %c0_185 = arith.constant 0 : index
    %c0_186 = arith.constant 0 : index
    %198 = vector.load %arg13[%c0_183, %c3_184, %c0_185, %c0_186] : memref<2x4x9x8xf32, #tpu.memory_space<vmem>>, vector<2x1x8x8xf32>
    %199 = vector.shape_cast %198 : vector<2x1x8x8xf32> to vector<2x8x8xf32>
    %c28 = arith.constant 28 : index
    %200 = memref.load %arg5[%c28] : memref<36xf32, #tpu.memory_space<smem>>
    %201 = vector.broadcast %200 : f32 to vector<2x8x8xf32>
    %202 = arith.mulf %199, %201 : vector<2x8x8xf32>
    %203 = arith.addf %197, %202 : vector<2x8x8xf32>
    %c0_187 = arith.constant 0 : index
    %c3_188 = arith.constant 3 : index
    %c1_189 = arith.constant 1 : index
    %c0_190 = arith.constant 0 : index
    %204 = vector.load %arg13[%c0_187, %c3_188, %c1_189, %c0_190] : memref<2x4x9x8xf32, #tpu.memory_space<vmem>>, vector<2x1x8x8xf32>
    %205 = vector.shape_cast %204 : vector<2x1x8x8xf32> to vector<2x8x8xf32>
    %c34 = arith.constant 34 : index
    %206 = memref.load %arg5[%c34] : memref<36xf32, #tpu.memory_space<smem>>
    %207 = vector.broadcast %206 : f32 to vector<2x8x8xf32>
    %208 = arith.mulf %205, %207 : vector<2x8x8xf32>
    %209 = arith.addf %203, %208 : vector<2x8x8xf32>
    %c0_191 = arith.constant 0 : index
    %c3_192 = arith.constant 3 : index
    %c0_193 = arith.constant 0 : index
    %c0_194 = arith.constant 0 : index
    %210 = vector.load %arg14[%c0_191, %c3_192, %c0_193, %c0_194] : memref<2x4x9x9xf32, #tpu.memory_space<vmem>>, vector<2x1x8x8xf32>
    %211 = vector.shape_cast %210 : vector<2x1x8x8xf32> to vector<2x8x8xf32>
    %c27 = arith.constant 27 : index
    %212 = memref.load %arg5[%c27] : memref<36xf32, #tpu.memory_space<smem>>
    %213 = vector.broadcast %212 : f32 to vector<2x8x8xf32>
    %214 = arith.mulf %211, %213 : vector<2x8x8xf32>
    %215 = arith.addf %209, %214 : vector<2x8x8xf32>
    %c0_195 = arith.constant 0 : index
    %c3_196 = arith.constant 3 : index
    %c0_197 = arith.constant 0 : index
    %c1_198 = arith.constant 1 : index
    %216 = vector.load %arg14[%c0_195, %c3_196, %c0_197, %c1_198] : memref<2x4x9x9xf32, #tpu.memory_space<vmem>>, vector<2x1x8x8xf32>
    %217 = vector.shape_cast %216 : vector<2x1x8x8xf32> to vector<2x8x8xf32>
    %c29 = arith.constant 29 : index
    %218 = memref.load %arg5[%c29] : memref<36xf32, #tpu.memory_space<smem>>
    %219 = vector.broadcast %218 : f32 to vector<2x8x8xf32>
    %220 = arith.mulf %217, %219 : vector<2x8x8xf32>
    %221 = arith.addf %215, %220 : vector<2x8x8xf32>
    %c0_199 = arith.constant 0 : index
    %c3_200 = arith.constant 3 : index
    %c1_201 = arith.constant 1 : index
    %c0_202 = arith.constant 0 : index
    %222 = vector.load %arg14[%c0_199, %c3_200, %c1_201, %c0_202] : memref<2x4x9x9xf32, #tpu.memory_space<vmem>>, vector<2x1x8x8xf32>
    %223 = vector.shape_cast %222 : vector<2x1x8x8xf32> to vector<2x8x8xf32>
    %c33 = arith.constant 33 : index
    %224 = memref.load %arg5[%c33] : memref<36xf32, #tpu.memory_space<smem>>
    %225 = vector.broadcast %224 : f32 to vector<2x8x8xf32>
    %226 = arith.mulf %223, %225 : vector<2x8x8xf32>
    %227 = arith.addf %221, %226 : vector<2x8x8xf32>
    %c0_203 = arith.constant 0 : index
    %c3_204 = arith.constant 3 : index
    %c1_205 = arith.constant 1 : index
    %c1_206 = arith.constant 1 : index
    %228 = vector.load %arg14[%c0_203, %c3_204, %c1_205, %c1_206] : memref<2x4x9x9xf32, #tpu.memory_space<vmem>>, vector<2x1x8x8xf32>
    %229 = vector.shape_cast %228 : vector<2x1x8x8xf32> to vector<2x8x8xf32>
    %c35 = arith.constant 35 : index
    %230 = memref.load %arg5[%c35] : memref<36xf32, #tpu.memory_space<smem>>
    %231 = vector.broadcast %230 : f32 to vector<2x8x8xf32>
    %232 = arith.mulf %229, %231 : vector<2x8x8xf32>
    %233 = arith.addf %227, %232 : vector<2x8x8xf32>
    %c0_207 = arith.constant 0 : index
    %234 = memref.load %arg6[%c0_207] : memref<16xf32, #tpu.memory_space<smem>>
    %235 = vector.broadcast %234 : f32 to vector<2x8x8xf32>
    %236 = arith.mulf %74, %235 : vector<2x8x8xf32>
    %c1_208 = arith.constant 1 : index
    %237 = memref.load %arg6[%c1_208] : memref<16xf32, #tpu.memory_space<smem>>
    %238 = vector.broadcast %237 : f32 to vector<2x8x8xf32>
    %239 = arith.mulf %127, %238 : vector<2x8x8xf32>
    %240 = arith.addf %236, %239 : vector<2x8x8xf32>
    %c2_209 = arith.constant 2 : index
    %241 = memref.load %arg6[%c2_209] : memref<16xf32, #tpu.memory_space<smem>>
    %242 = vector.broadcast %241 : f32 to vector<2x8x8xf32>
    %243 = arith.mulf %180, %242 : vector<2x8x8xf32>
    %244 = arith.addf %240, %243 : vector<2x8x8xf32>
    %c3_210 = arith.constant 3 : index
    %245 = memref.load %arg6[%c3_210] : memref<16xf32, #tpu.memory_space<smem>>
    %246 = vector.broadcast %245 : f32 to vector<2x8x8xf32>
    %247 = arith.mulf %233, %246 : vector<2x8x8xf32>
    %248 = arith.addf %244, %247 : vector<2x8x8xf32>
    %c0_211 = arith.constant 0 : index
    %249 = memref.load %arg7[%c0_211] : memref<4xf32, #tpu.memory_space<smem>>
    %250 = vector.broadcast %249 : f32 to vector<2x8x8xf32>
    %251 = arith.addf %248, %250 : vector<2x8x8xf32>
    %cst_212 = arith.constant 0.000000e+00 : f32
    %252 = vector.broadcast %cst_212 : f32 to vector<2x8x8xf32>
    %253 = arith.maximumf %251, %252 : vector<2x8x8xf32>
    %c0_213 = arith.constant 0 : index
    %c0_214 = arith.constant 0 : index
    %c1_215 = arith.constant 1 : index
    %c1_216 = arith.constant 1 : index
    %254 = vector.load %arg15[%c0_213, %c0_214, %c1_215, %c1_216] : memref<2x4x10x10xf32, #tpu.memory_space<vmem>>, vector<2x1x8x8xf32>
    %255 = vector.shape_cast %254 : vector<2x1x8x8xf32> to vector<2x8x8xf32>
    %256 = vector.shape_cast %253 : vector<2x8x8xf32> to vector<2x1x8x8xf32>
    tpu.vector_store %arg15[%c0_213, %c0_214, %c1_215, %c1_216], %256 {strides = array<i32>} : memref<2x4x10x10xf32, #tpu.memory_space<vmem>>, vector<2x1x8x8xf32>,
    %c4_217 = arith.constant 4 : index
    %257 = memref.load %arg6[%c4_217] : memref<16xf32, #tpu.memory_space<smem>>
    %258 = vector.broadcast %257 : f32 to vector<2x8x8xf32>
    %259 = arith.mulf %74, %258 : vector<2x8x8xf32>
    %c5_218 = arith.constant 5 : index
    %260 = memref.load %arg6[%c5_218] : memref<16xf32, #tpu.memory_space<smem>>
    %261 = vector.broadcast %260 : f32 to vector<2x8x8xf32>
    %262 = arith.mulf %127, %261 : vector<2x8x8xf32>
    %263 = arith.addf %259, %262 : vector<2x8x8xf32>
    %c6_219 = arith.constant 6 : index
    %264 = memref.load %arg6[%c6_219] : memref<16xf32, #tpu.memory_space<smem>>
    %265 = vector.broadcast %264 : f32 to vector<2x8x8xf32>
    %266 = arith.mulf %180, %265 : vector<2x8x8xf32>
    %267 = arith.addf %263, %266 : vector<2x8x8xf32>
    %c7_220 = arith.constant 7 : index
    %268 = memref.load %arg6[%c7_220] : memref<16xf32, #tpu.memory_space<smem>>
    %269 = vector.broadcast %268 : f32 to vector<2x8x8xf32>
    %270 = arith.mulf %233, %269 : vector<2x8x8xf32>
    %271 = arith.addf %267, %270 : vector<2x8x8xf32>
    %c1_221 = arith.constant 1 : index
    %272 = memref.load %arg7[%c1_221] : memref<4xf32, #tpu.memory_space<smem>>
    %273 = vector.broadcast %272 : f32 to vector<2x8x8xf32>
    %274 = arith.addf %271, %273 : vector<2x8x8xf32>
    %cst_222 = arith.constant 0.000000e+00 : f32
    %275 = vector.broadcast %cst_222 : f32 to vector<2x8x8xf32>
    %276 = arith.maximumf %274, %275 : vector<2x8x8xf32>
    %c0_223 = arith.constant 0 : index
    %c1_224 = arith.constant 1 : index
    %c1_225 = arith.constant 1 : index
    %c1_226 = arith.constant 1 : index
    %277 = vector.load %arg15[%c0_223, %c1_224, %c1_225, %c1_226] : memref<2x4x10x10xf32, #tpu.memory_space<vmem>>, vector<2x1x8x8xf32>
    %278 = vector.shape_cast %277 : vector<2x1x8x8xf32> to vector<2x8x8xf32>
    %279 = vector.shape_cast %276 : vector<2x8x8xf32> to vector<2x1x8x8xf32>
    tpu.vector_store %arg15[%c0_223, %c1_224, %c1_225, %c1_226], %279 {strides = array<i32>} : memref<2x4x10x10xf32, #tpu.memory_space<vmem>>, vector<2x1x8x8xf32>,
    %c8_227 = arith.constant 8 : index
    %280 = memref.load %arg6[%c8_227] : memref<16xf32, #tpu.memory_space<smem>>
    %281 = vector.broadcast %280 : f32 to vector<2x8x8xf32>
    %282 = arith.mulf %74, %281 : vector<2x8x8xf32>
    %c9_228 = arith.constant 9 : index
    %283 = memref.load %arg6[%c9_228] : memref<16xf32, #tpu.memory_space<smem>>
    %284 = vector.broadcast %283 : f32 to vector<2x8x8xf32>
    %285 = arith.mulf %127, %284 : vector<2x8x8xf32>
    %286 = arith.addf %282, %285 : vector<2x8x8xf32>
    %c10_229 = arith.constant 10 : index
    %287 = memref.load %arg6[%c10_229] : memref<16xf32, #tpu.memory_space<smem>>
    %288 = vector.broadcast %287 : f32 to vector<2x8x8xf32>
    %289 = arith.mulf %180, %288 : vector<2x8x8xf32>
    %290 = arith.addf %286, %289 : vector<2x8x8xf32>
    %c11_230 = arith.constant 11 : index
    %291 = memref.load %arg6[%c11_230] : memref<16xf32, #tpu.memory_space<smem>>
    %292 = vector.broadcast %291 : f32 to vector<2x8x8xf32>
    %293 = arith.mulf %233, %292 : vector<2x8x8xf32>
    %294 = arith.addf %290, %293 : vector<2x8x8xf32>
    %c2_231 = arith.constant 2 : index
    %295 = memref.load %arg7[%c2_231] : memref<4xf32, #tpu.memory_space<smem>>
    %296 = vector.broadcast %295 : f32 to vector<2x8x8xf32>
    %297 = arith.addf %294, %296 : vector<2x8x8xf32>
    %cst_232 = arith.constant 0.000000e+00 : f32
    %298 = vector.broadcast %cst_232 : f32 to vector<2x8x8xf32>
    %299 = arith.maximumf %297, %298 : vector<2x8x8xf32>
    %c0_233 = arith.constant 0 : index
    %c2_234 = arith.constant 2 : index
    %c1_235 = arith.constant 1 : index
    %c1_236 = arith.constant 1 : index
    %300 = vector.load %arg15[%c0_233, %c2_234, %c1_235, %c1_236] : memref<2x4x10x10xf32, #tpu.memory_space<vmem>>, vector<2x1x8x8xf32>
    %301 = vector.shape_cast %300 : vector<2x1x8x8xf32> to vector<2x8x8xf32>
    %302 = vector.shape_cast %299 : vector<2x8x8xf32> to vector<2x1x8x8xf32>
    tpu.vector_store %arg15[%c0_233, %c2_234, %c1_235, %c1_236], %302 {strides = array<i32>} : memref<2x4x10x10xf32, #tpu.memory_space<vmem>>, vector<2x1x8x8xf32>,
    %c12_237 = arith.constant 12 : index
    %303 = memref.load %arg6[%c12_237] : memref<16xf32, #tpu.memory_space<smem>>
    %304 = vector.broadcast %303 : f32 to vector<2x8x8xf32>
    %305 = arith.mulf %74, %304 : vector<2x8x8xf32>
    %c13_238 = arith.constant 13 : index
    %306 = memref.load %arg6[%c13_238] : memref<16xf32, #tpu.memory_space<smem>>
    %307 = vector.broadcast %306 : f32 to vector<2x8x8xf32>
    %308 = arith.mulf %127, %307 : vector<2x8x8xf32>
    %309 = arith.addf %305, %308 : vector<2x8x8xf32>
    %c14_239 = arith.constant 14 : index
    %310 = memref.load %arg6[%c14_239] : memref<16xf32, #tpu.memory_space<smem>>
    %311 = vector.broadcast %310 : f32 to vector<2x8x8xf32>
    %312 = arith.mulf %180, %311 : vector<2x8x8xf32>
    %313 = arith.addf %309, %312 : vector<2x8x8xf32>
    %c15_240 = arith.constant 15 : index
    %314 = memref.load %arg6[%c15_240] : memref<16xf32, #tpu.memory_space<smem>>
    %315 = vector.broadcast %314 : f32 to vector<2x8x8xf32>
    %316 = arith.mulf %233, %315 : vector<2x8x8xf32>
    %317 = arith.addf %313, %316 : vector<2x8x8xf32>
    %c3_241 = arith.constant 3 : index
    %318 = memref.load %arg7[%c3_241] : memref<4xf32, #tpu.memory_space<smem>>
    %319 = vector.broadcast %318 : f32 to vector<2x8x8xf32>
    %320 = arith.addf %317, %319 : vector<2x8x8xf32>
    %cst_242 = arith.constant 0.000000e+00 : f32
    %321 = vector.broadcast %cst_242 : f32 to vector<2x8x8xf32>
    %322 = arith.maximumf %320, %321 : vector<2x8x8xf32>
    %c0_243 = arith.constant 0 : index
    %c3_244 = arith.constant 3 : index
    %c1_245 = arith.constant 1 : index
    %c1_246 = arith.constant 1 : index
    %323 = vector.load %arg15[%c0_243, %c3_244, %c1_245, %c1_246] : memref<2x4x10x10xf32, #tpu.memory_space<vmem>>, vector<2x1x8x8xf32>
    %324 = vector.shape_cast %323 : vector<2x1x8x8xf32> to vector<2x8x8xf32>
    %325 = vector.shape_cast %322 : vector<2x8x8xf32> to vector<2x1x8x8xf32>
    tpu.vector_store %arg15[%c0_243, %c3_244, %c1_245, %c1_246], %325 {strides = array<i32>} : memref<2x4x10x10xf32, #tpu.memory_space<vmem>>, vector<2x1x8x8xf32>,
    %c0_247 = arith.constant 0 : index
    %c0_248 = arith.constant 0 : index
    %c0_249 = arith.constant 0 : index
    %c0_250 = arith.constant 0 : index
    %326 = vector.load %arg15[%c0_247, %c0_248, %c0_249, %c0_250] : memref<2x4x10x10xf32, #tpu.memory_space<vmem>>, vector<2x1x10x10xf32>
    %327 = vector.shape_cast %326 : vector<2x1x10x10xf32> to vector<2x10x10xf32>
    %cst_251 = arith.constant 0.000000e+00 : f32
    %328 = vector.broadcast %cst_251 : f32 to vector<2x8x8xf32>
    %329 = vector.extract_strided_slice %327 {offsets = [0, 0, 0], sizes = [2, 8, 8], strides = [1, 1, 1]} : vector<2x10x10xf32> to vector<2x8x8xf32>
    %c0_252 = arith.constant 0 : index
    %330 = memref.load %arg8[%c0_252] : memref<36xf32, #tpu.memory_space<smem>>
    %331 = vector.broadcast %330 : f32 to vector<2x8x8xf32>
    %332 = arith.mulf %329, %331 : vector<2x8x8xf32>
    %333 = arith.addf %328, %332 : vector<2x8x8xf32>
    %334 = vector.extract_strided_slice %327 {offsets = [0, 0, 1], sizes = [2, 8, 8], strides = [1, 1, 1]} : vector<2x10x10xf32> to vector<2x8x8xf32>
    %c1_253 = arith.constant 1 : index
    %335 = memref.load %arg8[%c1_253] : memref<36xf32, #tpu.memory_space<smem>>
    %336 = vector.broadcast %335 : f32 to vector<2x8x8xf32>
    %337 = arith.mulf %334, %336 : vector<2x8x8xf32>
    %338 = arith.addf %333, %337 : vector<2x8x8xf32>
    %339 = vector.extract_strided_slice %327 {offsets = [0, 0, 2], sizes = [2, 8, 8], strides = [1, 1, 1]} : vector<2x10x10xf32> to vector<2x8x8xf32>
    %c2_254 = arith.constant 2 : index
    %340 = memref.load %arg8[%c2_254] : memref<36xf32, #tpu.memory_space<smem>>
    %341 = vector.broadcast %340 : f32 to vector<2x8x8xf32>
    %342 = arith.mulf %339, %341 : vector<2x8x8xf32>
    %343 = arith.addf %338, %342 : vector<2x8x8xf32>
    %344 = vector.extract_strided_slice %327 {offsets = [0, 1, 0], sizes = [2, 8, 8], strides = [1, 1, 1]} : vector<2x10x10xf32> to vector<2x8x8xf32>
    %c3_255 = arith.constant 3 : index
    %345 = memref.load %arg8[%c3_255] : memref<36xf32, #tpu.memory_space<smem>>
    %346 = vector.broadcast %345 : f32 to vector<2x8x8xf32>
    %347 = arith.mulf %344, %346 : vector<2x8x8xf32>
    %348 = arith.addf %343, %347 : vector<2x8x8xf32>
    %349 = vector.extract_strided_slice %327 {offsets = [0, 1, 1], sizes = [2, 8, 8], strides = [1, 1, 1]} : vector<2x10x10xf32> to vector<2x8x8xf32>
    %c4_256 = arith.constant 4 : index
    %350 = memref.load %arg8[%c4_256] : memref<36xf32, #tpu.memory_space<smem>>
    %351 = vector.broadcast %350 : f32 to vector<2x8x8xf32>
    %352 = arith.mulf %349, %351 : vector<2x8x8xf32>
    %353 = arith.addf %348, %352 : vector<2x8x8xf32>
    %354 = vector.extract_strided_slice %327 {offsets = [0, 1, 2], sizes = [2, 8, 8], strides = [1, 1, 1]} : vector<2x10x10xf32> to vector<2x8x8xf32>
    %c5_257 = arith.constant 5 : index
    %355 = memref.load %arg8[%c5_257] : memref<36xf32, #tpu.memory_space<smem>>
    %356 = vector.broadcast %355 : f32 to vector<2x8x8xf32>
    %357 = arith.mulf %354, %356 : vector<2x8x8xf32>
    %358 = arith.addf %353, %357 : vector<2x8x8xf32>
    %359 = vector.extract_strided_slice %327 {offsets = [0, 2, 0], sizes = [2, 8, 8], strides = [1, 1, 1]} : vector<2x10x10xf32> to vector<2x8x8xf32>
    %c6_258 = arith.constant 6 : index
    %360 = memref.load %arg8[%c6_258] : memref<36xf32, #tpu.memory_space<smem>>
    %361 = vector.broadcast %360 : f32 to vector<2x8x8xf32>
    %362 = arith.mulf %359, %361 : vector<2x8x8xf32>
    %363 = arith.addf %358, %362 : vector<2x8x8xf32>
    %364 = vector.extract_strided_slice %327 {offsets = [0, 2, 1], sizes = [2, 8, 8], strides = [1, 1, 1]} : vector<2x10x10xf32> to vector<2x8x8xf32>
    %c7_259 = arith.constant 7 : index
    %365 = memref.load %arg8[%c7_259] : memref<36xf32, #tpu.memory_space<smem>>
    %366 = vector.broadcast %365 : f32 to vector<2x8x8xf32>
    %367 = arith.mulf %364, %366 : vector<2x8x8xf32>
    %368 = arith.addf %363, %367 : vector<2x8x8xf32>
    %369 = vector.extract_strided_slice %327 {offsets = [0, 2, 2], sizes = [2, 8, 8], strides = [1, 1, 1]} : vector<2x10x10xf32> to vector<2x8x8xf32>
    %c8_260 = arith.constant 8 : index
    %370 = memref.load %arg8[%c8_260] : memref<36xf32, #tpu.memory_space<smem>>
    %371 = vector.broadcast %370 : f32 to vector<2x8x8xf32>
    %372 = arith.mulf %369, %371 : vector<2x8x8xf32>
    %373 = arith.addf %368, %372 : vector<2x8x8xf32>
    %c0_261 = arith.constant 0 : index
    %c1_262 = arith.constant 1 : index
    %c0_263 = arith.constant 0 : index
    %c0_264 = arith.constant 0 : index
    %374 = vector.load %arg15[%c0_261, %c1_262, %c0_263, %c0_264] : memref<2x4x10x10xf32, #tpu.memory_space<vmem>>, vector<2x1x10x10xf32>
    %375 = vector.shape_cast %374 : vector<2x1x10x10xf32> to vector<2x10x10xf32>
    %cst_265 = arith.constant 0.000000e+00 : f32
    %376 = vector.broadcast %cst_265 : f32 to vector<2x8x8xf32>
    %377 = vector.extract_strided_slice %375 {offsets = [0, 0, 0], sizes = [2, 8, 8], strides = [1, 1, 1]} : vector<2x10x10xf32> to vector<2x8x8xf32>
    %c9_266 = arith.constant 9 : index
    %378 = memref.load %arg8[%c9_266] : memref<36xf32, #tpu.memory_space<smem>>
    %379 = vector.broadcast %378 : f32 to vector<2x8x8xf32>
    %380 = arith.mulf %377, %379 : vector<2x8x8xf32>
    %381 = arith.addf %376, %380 : vector<2x8x8xf32>
    %382 = vector.extract_strided_slice %375 {offsets = [0, 0, 1], sizes = [2, 8, 8], strides = [1, 1, 1]} : vector<2x10x10xf32> to vector<2x8x8xf32>
    %c10_267 = arith.constant 10 : index
    %383 = memref.load %arg8[%c10_267] : memref<36xf32, #tpu.memory_space<smem>>
    %384 = vector.broadcast %383 : f32 to vector<2x8x8xf32>
    %385 = arith.mulf %382, %384 : vector<2x8x8xf32>
    %386 = arith.addf %381, %385 : vector<2x8x8xf32>
    %387 = vector.extract_strided_slice %375 {offsets = [0, 0, 2], sizes = [2, 8, 8], strides = [1, 1, 1]} : vector<2x10x10xf32> to vector<2x8x8xf32>
    %c11_268 = arith.constant 11 : index
    %388 = memref.load %arg8[%c11_268] : memref<36xf32, #tpu.memory_space<smem>>
    %389 = vector.broadcast %388 : f32 to vector<2x8x8xf32>
    %390 = arith.mulf %387, %389 : vector<2x8x8xf32>
    %391 = arith.addf %386, %390 : vector<2x8x8xf32>
    %392 = vector.extract_strided_slice %375 {offsets = [0, 1, 0], sizes = [2, 8, 8], strides = [1, 1, 1]} : vector<2x10x10xf32> to vector<2x8x8xf32>
    %c12_269 = arith.constant 12 : index
    %393 = memref.load %arg8[%c12_269] : memref<36xf32, #tpu.memory_space<smem>>
    %394 = vector.broadcast %393 : f32 to vector<2x8x8xf32>
    %395 = arith.mulf %392, %394 : vector<2x8x8xf32>
    %396 = arith.addf %391, %395 : vector<2x8x8xf32>
    %397 = vector.extract_strided_slice %375 {offsets = [0, 1, 1], sizes = [2, 8, 8], strides = [1, 1, 1]} : vector<2x10x10xf32> to vector<2x8x8xf32>
    %c13_270 = arith.constant 13 : index
    %398 = memref.load %arg8[%c13_270] : memref<36xf32, #tpu.memory_space<smem>>
    %399 = vector.broadcast %398 : f32 to vector<2x8x8xf32>
    %400 = arith.mulf %397, %399 : vector<2x8x8xf32>
    %401 = arith.addf %396, %400 : vector<2x8x8xf32>
    %402 = vector.extract_strided_slice %375 {offsets = [0, 1, 2], sizes = [2, 8, 8], strides = [1, 1, 1]} : vector<2x10x10xf32> to vector<2x8x8xf32>
    %c14_271 = arith.constant 14 : index
    %403 = memref.load %arg8[%c14_271] : memref<36xf32, #tpu.memory_space<smem>>
    %404 = vector.broadcast %403 : f32 to vector<2x8x8xf32>
    %405 = arith.mulf %402, %404 : vector<2x8x8xf32>
    %406 = arith.addf %401, %405 : vector<2x8x8xf32>
    %407 = vector.extract_strided_slice %375 {offsets = [0, 2, 0], sizes = [2, 8, 8], strides = [1, 1, 1]} : vector<2x10x10xf32> to vector<2x8x8xf32>
    %c15_272 = arith.constant 15 : index
    %408 = memref.load %arg8[%c15_272] : memref<36xf32, #tpu.memory_space<smem>>
    %409 = vector.broadcast %408 : f32 to vector<2x8x8xf32>
    %410 = arith.mulf %407, %409 : vector<2x8x8xf32>
    %411 = arith.addf %406, %410 : vector<2x8x8xf32>
    %412 = vector.extract_strided_slice %375 {offsets = [0, 2, 1], sizes = [2, 8, 8], strides = [1, 1, 1]} : vector<2x10x10xf32> to vector<2x8x8xf32>
    %c16_273 = arith.constant 16 : index
    %413 = memref.load %arg8[%c16_273] : memref<36xf32, #tpu.memory_space<smem>>
    %414 = vector.broadcast %413 : f32 to vector<2x8x8xf32>
    %415 = arith.mulf %412, %414 : vector<2x8x8xf32>
    %416 = arith.addf %411, %415 : vector<2x8x8xf32>
    %417 = vector.extract_strided_slice %375 {offsets = [0, 2, 2], sizes = [2, 8, 8], strides = [1, 1, 1]} : vector<2x10x10xf32> to vector<2x8x8xf32>
    %c17_274 = arith.constant 17 : index
    %418 = memref.load %arg8[%c17_274] : memref<36xf32, #tpu.memory_space<smem>>
    %419 = vector.broadcast %418 : f32 to vector<2x8x8xf32>
    %420 = arith.mulf %417, %419 : vector<2x8x8xf32>
    %421 = arith.addf %416, %420 : vector<2x8x8xf32>
    %c0_275 = arith.constant 0 : index
    %c2_276 = arith.constant 2 : index
    %c0_277 = arith.constant 0 : index
    %c0_278 = arith.constant 0 : index
    %422 = vector.load %arg15[%c0_275, %c2_276, %c0_277, %c0_278] : memref<2x4x10x10xf32, #tpu.memory_space<vmem>>, vector<2x1x10x10xf32>
    %423 = vector.shape_cast %422 : vector<2x1x10x10xf32> to vector<2x10x10xf32>
    %cst_279 = arith.constant 0.000000e+00 : f32
    %424 = vector.broadcast %cst_279 : f32 to vector<2x8x8xf32>
    %425 = vector.extract_strided_slice %423 {offsets = [0, 0, 0], sizes = [2, 8, 8], strides = [1, 1, 1]} : vector<2x10x10xf32> to vector<2x8x8xf32>
    %c18_280 = arith.constant 18 : index
    %426 = memref.load %arg8[%c18_280] : memref<36xf32, #tpu.memory_space<smem>>
    %427 = vector.broadcast %426 : f32 to vector<2x8x8xf32>
    %428 = arith.mulf %425, %427 : vector<2x8x8xf32>
    %429 = arith.addf %424, %428 : vector<2x8x8xf32>
    %430 = vector.extract_strided_slice %423 {offsets = [0, 0, 1], sizes = [2, 8, 8], strides = [1, 1, 1]} : vector<2x10x10xf32> to vector<2x8x8xf32>
    %c19_281 = arith.constant 19 : index
    %431 = memref.load %arg8[%c19_281] : memref<36xf32, #tpu.memory_space<smem>>
    %432 = vector.broadcast %431 : f32 to vector<2x8x8xf32>
    %433 = arith.mulf %430, %432 : vector<2x8x8xf32>
    %434 = arith.addf %429, %433 : vector<2x8x8xf32>
    %435 = vector.extract_strided_slice %423 {offsets = [0, 0, 2], sizes = [2, 8, 8], strides = [1, 1, 1]} : vector<2x10x10xf32> to vector<2x8x8xf32>
    %c20_282 = arith.constant 20 : index
    %436 = memref.load %arg8[%c20_282] : memref<36xf32, #tpu.memory_space<smem>>
    %437 = vector.broadcast %436 : f32 to vector<2x8x8xf32>
    %438 = arith.mulf %435, %437 : vector<2x8x8xf32>
    %439 = arith.addf %434, %438 : vector<2x8x8xf32>
    %440 = vector.extract_strided_slice %423 {offsets = [0, 1, 0], sizes = [2, 8, 8], strides = [1, 1, 1]} : vector<2x10x10xf32> to vector<2x8x8xf32>
    %c21_283 = arith.constant 21 : index
    %441 = memref.load %arg8[%c21_283] : memref<36xf32, #tpu.memory_space<smem>>
    %442 = vector.broadcast %441 : f32 to vector<2x8x8xf32>
    %443 = arith.mulf %440, %442 : vector<2x8x8xf32>
    %444 = arith.addf %439, %443 : vector<2x8x8xf32>
    %445 = vector.extract_strided_slice %423 {offsets = [0, 1, 1], sizes = [2, 8, 8], strides = [1, 1, 1]} : vector<2x10x10xf32> to vector<2x8x8xf32>
    %c22_284 = arith.constant 22 : index
    %446 = memref.load %arg8[%c22_284] : memref<36xf32, #tpu.memory_space<smem>>
    %447 = vector.broadcast %446 : f32 to vector<2x8x8xf32>
    %448 = arith.mulf %445, %447 : vector<2x8x8xf32>
    %449 = arith.addf %444, %448 : vector<2x8x8xf32>
    %450 = vector.extract_strided_slice %423 {offsets = [0, 1, 2], sizes = [2, 8, 8], strides = [1, 1, 1]} : vector<2x10x10xf32> to vector<2x8x8xf32>
    %c23_285 = arith.constant 23 : index
    %451 = memref.load %arg8[%c23_285] : memref<36xf32, #tpu.memory_space<smem>>
    %452 = vector.broadcast %451 : f32 to vector<2x8x8xf32>
    %453 = arith.mulf %450, %452 : vector<2x8x8xf32>
    %454 = arith.addf %449, %453 : vector<2x8x8xf32>
    %455 = vector.extract_strided_slice %423 {offsets = [0, 2, 0], sizes = [2, 8, 8], strides = [1, 1, 1]} : vector<2x10x10xf32> to vector<2x8x8xf32>
    %c24_286 = arith.constant 24 : index
    %456 = memref.load %arg8[%c24_286] : memref<36xf32, #tpu.memory_space<smem>>
    %457 = vector.broadcast %456 : f32 to vector<2x8x8xf32>
    %458 = arith.mulf %455, %457 : vector<2x8x8xf32>
    %459 = arith.addf %454, %458 : vector<2x8x8xf32>
    %460 = vector.extract_strided_slice %423 {offsets = [0, 2, 1], sizes = [2, 8, 8], strides = [1, 1, 1]} : vector<2x10x10xf32> to vector<2x8x8xf32>
    %c25_287 = arith.constant 25 : index
    %461 = memref.load %arg8[%c25_287] : memref<36xf32, #tpu.memory_space<smem>>
    %462 = vector.broadcast %461 : f32 to vector<2x8x8xf32>
    %463 = arith.mulf %460, %462 : vector<2x8x8xf32>
    %464 = arith.addf %459, %463 : vector<2x8x8xf32>
    %465 = vector.extract_strided_slice %423 {offsets = [0, 2, 2], sizes = [2, 8, 8], strides = [1, 1, 1]} : vector<2x10x10xf32> to vector<2x8x8xf32>
    %c26_288 = arith.constant 26 : index
    %466 = memref.load %arg8[%c26_288] : memref<36xf32, #tpu.memory_space<smem>>
    %467 = vector.broadcast %466 : f32 to vector<2x8x8xf32>
    %468 = arith.mulf %465, %467 : vector<2x8x8xf32>
    %469 = arith.addf %464, %468 : vector<2x8x8xf32>
    %c0_289 = arith.constant 0 : index
    %c3_290 = arith.constant 3 : index
    %c0_291 = arith.constant 0 : index
    %c0_292 = arith.constant 0 : index
    %470 = vector.load %arg15[%c0_289, %c3_290, %c0_291, %c0_292] : memref<2x4x10x10xf32, #tpu.memory_space<vmem>>, vector<2x1x10x10xf32>
    %471 = vector.shape_cast %470 : vector<2x1x10x10xf32> to vector<2x10x10xf32>
    %cst_293 = arith.constant 0.000000e+00 : f32
    %472 = vector.broadcast %cst_293 : f32 to vector<2x8x8xf32>
    %473 = vector.extract_strided_slice %471 {offsets = [0, 0, 0], sizes = [2, 8, 8], strides = [1, 1, 1]} : vector<2x10x10xf32> to vector<2x8x8xf32>
    %c27_294 = arith.constant 27 : index
    %474 = memref.load %arg8[%c27_294] : memref<36xf32, #tpu.memory_space<smem>>
    %475 = vector.broadcast %474 : f32 to vector<2x8x8xf32>
    %476 = arith.mulf %473, %475 : vector<2x8x8xf32>
    %477 = arith.addf %472, %476 : vector<2x8x8xf32>
    %478 = vector.extract_strided_slice %471 {offsets = [0, 0, 1], sizes = [2, 8, 8], strides = [1, 1, 1]} : vector<2x10x10xf32> to vector<2x8x8xf32>
    %c28_295 = arith.constant 28 : index
    %479 = memref.load %arg8[%c28_295] : memref<36xf32, #tpu.memory_space<smem>>
    %480 = vector.broadcast %479 : f32 to vector<2x8x8xf32>
    %481 = arith.mulf %478, %480 : vector<2x8x8xf32>
    %482 = arith.addf %477, %481 : vector<2x8x8xf32>
    %483 = vector.extract_strided_slice %471 {offsets = [0, 0, 2], sizes = [2, 8, 8], strides = [1, 1, 1]} : vector<2x10x10xf32> to vector<2x8x8xf32>
    %c29_296 = arith.constant 29 : index
    %484 = memref.load %arg8[%c29_296] : memref<36xf32, #tpu.memory_space<smem>>
    %485 = vector.broadcast %484 : f32 to vector<2x8x8xf32>
    %486 = arith.mulf %483, %485 : vector<2x8x8xf32>
    %487 = arith.addf %482, %486 : vector<2x8x8xf32>
    %488 = vector.extract_strided_slice %471 {offsets = [0, 1, 0], sizes = [2, 8, 8], strides = [1, 1, 1]} : vector<2x10x10xf32> to vector<2x8x8xf32>
    %c30_297 = arith.constant 30 : index
    %489 = memref.load %arg8[%c30_297] : memref<36xf32, #tpu.memory_space<smem>>
    %490 = vector.broadcast %489 : f32 to vector<2x8x8xf32>
    %491 = arith.mulf %488, %490 : vector<2x8x8xf32>
    %492 = arith.addf %487, %491 : vector<2x8x8xf32>
    %493 = vector.extract_strided_slice %471 {offsets = [0, 1, 1], sizes = [2, 8, 8], strides = [1, 1, 1]} : vector<2x10x10xf32> to vector<2x8x8xf32>
    %c31_298 = arith.constant 31 : index
    %494 = memref.load %arg8[%c31_298] : memref<36xf32, #tpu.memory_space<smem>>
    %495 = vector.broadcast %494 : f32 to vector<2x8x8xf32>
    %496 = arith.mulf %493, %495 : vector<2x8x8xf32>
    %497 = arith.addf %492, %496 : vector<2x8x8xf32>
    %498 = vector.extract_strided_slice %471 {offsets = [0, 1, 2], sizes = [2, 8, 8], strides = [1, 1, 1]} : vector<2x10x10xf32> to vector<2x8x8xf32>
    %c32_299 = arith.constant 32 : index
    %499 = memref.load %arg8[%c32_299] : memref<36xf32, #tpu.memory_space<smem>>
    %500 = vector.broadcast %499 : f32 to vector<2x8x8xf32>
    %501 = arith.mulf %498, %500 : vector<2x8x8xf32>
    %502 = arith.addf %497, %501 : vector<2x8x8xf32>
    %503 = vector.extract_strided_slice %471 {offsets = [0, 2, 0], sizes = [2, 8, 8], strides = [1, 1, 1]} : vector<2x10x10xf32> to vector<2x8x8xf32>
    %c33_300 = arith.constant 33 : index
    %504 = memref.load %arg8[%c33_300] : memref<36xf32, #tpu.memory_space<smem>>
    %505 = vector.broadcast %504 : f32 to vector<2x8x8xf32>
    %506 = arith.mulf %503, %505 : vector<2x8x8xf32>
    %507 = arith.addf %502, %506 : vector<2x8x8xf32>
    %508 = vector.extract_strided_slice %471 {offsets = [0, 2, 1], sizes = [2, 8, 8], strides = [1, 1, 1]} : vector<2x10x10xf32> to vector<2x8x8xf32>
    %c34_301 = arith.constant 34 : index
    %509 = memref.load %arg8[%c34_301] : memref<36xf32, #tpu.memory_space<smem>>
    %510 = vector.broadcast %509 : f32 to vector<2x8x8xf32>
    %511 = arith.mulf %508, %510 : vector<2x8x8xf32>
    %512 = arith.addf %507, %511 : vector<2x8x8xf32>
    %513 = vector.extract_strided_slice %471 {offsets = [0, 2, 2], sizes = [2, 8, 8], strides = [1, 1, 1]} : vector<2x10x10xf32> to vector<2x8x8xf32>
    %c35_302 = arith.constant 35 : index
    %514 = memref.load %arg8[%c35_302] : memref<36xf32, #tpu.memory_space<smem>>
    %515 = vector.broadcast %514 : f32 to vector<2x8x8xf32>
    %516 = arith.mulf %513, %515 : vector<2x8x8xf32>
    %517 = arith.addf %512, %516 : vector<2x8x8xf32>
    %c0_303 = arith.constant 0 : index
    %518 = memref.load %arg9[%c0_303] : memref<32xf32, #tpu.memory_space<smem>>
    %519 = vector.broadcast %518 : f32 to vector<2x8x8xf32>
    %520 = arith.mulf %373, %519 : vector<2x8x8xf32>
    %c1_304 = arith.constant 1 : index
    %521 = memref.load %arg9[%c1_304] : memref<32xf32, #tpu.memory_space<smem>>
    %522 = vector.broadcast %521 : f32 to vector<2x8x8xf32>
    %523 = arith.mulf %421, %522 : vector<2x8x8xf32>
    %524 = arith.addf %520, %523 : vector<2x8x8xf32>
    %c2_305 = arith.constant 2 : index
    %525 = memref.load %arg9[%c2_305] : memref<32xf32, #tpu.memory_space<smem>>
    %526 = vector.broadcast %525 : f32 to vector<2x8x8xf32>
    %527 = arith.mulf %469, %526 : vector<2x8x8xf32>
    %528 = arith.addf %524, %527 : vector<2x8x8xf32>
    %c3_306 = arith.constant 3 : index
    %529 = memref.load %arg9[%c3_306] : memref<32xf32, #tpu.memory_space<smem>>
    %530 = vector.broadcast %529 : f32 to vector<2x8x8xf32>
    %531 = arith.mulf %517, %530 : vector<2x8x8xf32>
    %532 = arith.addf %528, %531 : vector<2x8x8xf32>
    %c0_307 = arith.constant 0 : index
    %533 = memref.load %arg10[%c0_307] : memref<8xf32, #tpu.memory_space<smem>>
    %534 = vector.broadcast %533 : f32 to vector<2x8x8xf32>
    %535 = arith.addf %532, %534 : vector<2x8x8xf32>
    %cst_308 = arith.constant 0.000000e+00 : f32
    %536 = vector.broadcast %cst_308 : f32 to vector<2x8x8xf32>
    %537 = arith.maximumf %535, %536 : vector<2x8x8xf32>
    %c0_309 = arith.constant 0 : index
    %c0_310 = arith.constant 0 : index
    %c0_311 = arith.constant 0 : index
    %c0_312 = arith.constant 0 : index
    %538 = vector.load %arg11[%c0_309, %c0_310, %c0_311, %c0_312] : memref<2x8x8x8xf32, #tpu.memory_space<vmem>>, vector<2x1x8x8xf32>
    %539 = vector.shape_cast %538 : vector<2x1x8x8xf32> to vector<2x8x8xf32>
    %540 = vector.shape_cast %537 : vector<2x8x8xf32> to vector<2x1x8x8xf32>
    tpu.vector_store %arg11[%c0_309, %c0_310, %c0_311, %c0_312], %540 {strides = array<i32>} : memref<2x8x8x8xf32, #tpu.memory_space<vmem>>, vector<2x1x8x8xf32>,
    %c4_313 = arith.constant 4 : index
    %541 = memref.load %arg9[%c4_313] : memref<32xf32, #tpu.memory_space<smem>>
    %542 = vector.broadcast %541 : f32 to vector<2x8x8xf32>
    %543 = arith.mulf %373, %542 : vector<2x8x8xf32>
    %c5_314 = arith.constant 5 : index
    %544 = memref.load %arg9[%c5_314] : memref<32xf32, #tpu.memory_space<smem>>
    %545 = vector.broadcast %544 : f32 to vector<2x8x8xf32>
    %546 = arith.mulf %421, %545 : vector<2x8x8xf32>
    %547 = arith.addf %543, %546 : vector<2x8x8xf32>
    %c6_315 = arith.constant 6 : index
    %548 = memref.load %arg9[%c6_315] : memref<32xf32, #tpu.memory_space<smem>>
    %549 = vector.broadcast %548 : f32 to vector<2x8x8xf32>
    %550 = arith.mulf %469, %549 : vector<2x8x8xf32>
    %551 = arith.addf %547, %550 : vector<2x8x8xf32>
    %c7_316 = arith.constant 7 : index
    %552 = memref.load %arg9[%c7_316] : memref<32xf32, #tpu.memory_space<smem>>
    %553 = vector.broadcast %552 : f32 to vector<2x8x8xf32>
    %554 = arith.mulf %517, %553 : vector<2x8x8xf32>
    %555 = arith.addf %551, %554 : vector<2x8x8xf32>
    %c1_317 = arith.constant 1 : index
    %556 = memref.load %arg10[%c1_317] : memref<8xf32, #tpu.memory_space<smem>>
    %557 = vector.broadcast %556 : f32 to vector<2x8x8xf32>
    %558 = arith.addf %555, %557 : vector<2x8x8xf32>
    %cst_318 = arith.constant 0.000000e+00 : f32
    %559 = vector.broadcast %cst_318 : f32 to vector<2x8x8xf32>
    %560 = arith.maximumf %558, %559 : vector<2x8x8xf32>
    %c0_319 = arith.constant 0 : index
    %c1_320 = arith.constant 1 : index
    %c0_321 = arith.constant 0 : index
    %c0_322 = arith.constant 0 : index
    %561 = vector.load %arg11[%c0_319, %c1_320, %c0_321, %c0_322] : memref<2x8x8x8xf32, #tpu.memory_space<vmem>>, vector<2x1x8x8xf32>
    %562 = vector.shape_cast %561 : vector<2x1x8x8xf32> to vector<2x8x8xf32>
    %563 = vector.shape_cast %560 : vector<2x8x8xf32> to vector<2x1x8x8xf32>
    tpu.vector_store %arg11[%c0_319, %c1_320, %c0_321, %c0_322], %563 {strides = array<i32>} : memref<2x8x8x8xf32, #tpu.memory_space<vmem>>, vector<2x1x8x8xf32>,
    %c8_323 = arith.constant 8 : index
    %564 = memref.load %arg9[%c8_323] : memref<32xf32, #tpu.memory_space<smem>>
    %565 = vector.broadcast %564 : f32 to vector<2x8x8xf32>
    %566 = arith.mulf %373, %565 : vector<2x8x8xf32>
    %c9_324 = arith.constant 9 : index
    %567 = memref.load %arg9[%c9_324] : memref<32xf32, #tpu.memory_space<smem>>
    %568 = vector.broadcast %567 : f32 to vector<2x8x8xf32>
    %569 = arith.mulf %421, %568 : vector<2x8x8xf32>
    %570 = arith.addf %566, %569 : vector<2x8x8xf32>
    %c10_325 = arith.constant 10 : index
    %571 = memref.load %arg9[%c10_325] : memref<32xf32, #tpu.memory_space<smem>>
    %572 = vector.broadcast %571 : f32 to vector<2x8x8xf32>
    %573 = arith.mulf %469, %572 : vector<2x8x8xf32>
    %574 = arith.addf %570, %573 : vector<2x8x8xf32>
    %c11_326 = arith.constant 11 : index
    %575 = memref.load %arg9[%c11_326] : memref<32xf32, #tpu.memory_space<smem>>
    %576 = vector.broadcast %575 : f32 to vector<2x8x8xf32>
    %577 = arith.mulf %517, %576 : vector<2x8x8xf32>
    %578 = arith.addf %574, %577 : vector<2x8x8xf32>
    %c2_327 = arith.constant 2 : index
    %579 = memref.load %arg10[%c2_327] : memref<8xf32, #tpu.memory_space<smem>>
    %580 = vector.broadcast %579 : f32 to vector<2x8x8xf32>
    %581 = arith.addf %578, %580 : vector<2x8x8xf32>
    %cst_328 = arith.constant 0.000000e+00 : f32
    %582 = vector.broadcast %cst_328 : f32 to vector<2x8x8xf32>
    %583 = arith.maximumf %581, %582 : vector<2x8x8xf32>
    %c0_329 = arith.constant 0 : index
    %c2_330 = arith.constant 2 : index
    %c0_331 = arith.constant 0 : index
    %c0_332 = arith.constant 0 : index
    %584 = vector.load %arg11[%c0_329, %c2_330, %c0_331, %c0_332] : memref<2x8x8x8xf32, #tpu.memory_space<vmem>>, vector<2x1x8x8xf32>
    %585 = vector.shape_cast %584 : vector<2x1x8x8xf32> to vector<2x8x8xf32>
    %586 = vector.shape_cast %583 : vector<2x8x8xf32> to vector<2x1x8x8xf32>
    tpu.vector_store %arg11[%c0_329, %c2_330, %c0_331, %c0_332], %586 {strides = array<i32>} : memref<2x8x8x8xf32, #tpu.memory_space<vmem>>, vector<2x1x8x8xf32>,
    %c12_333 = arith.constant 12 : index
    %587 = memref.load %arg9[%c12_333] : memref<32xf32, #tpu.memory_space<smem>>
    %588 = vector.broadcast %587 : f32 to vector<2x8x8xf32>
    %589 = arith.mulf %373, %588 : vector<2x8x8xf32>
    %c13_334 = arith.constant 13 : index
    %590 = memref.load %arg9[%c13_334] : memref<32xf32, #tpu.memory_space<smem>>
    %591 = vector.broadcast %590 : f32 to vector<2x8x8xf32>
    %592 = arith.mulf %421, %591 : vector<2x8x8xf32>
    %593 = arith.addf %589, %592 : vector<2x8x8xf32>
    %c14_335 = arith.constant 14 : index
    %594 = memref.load %arg9[%c14_335] : memref<32xf32, #tpu.memory_space<smem>>
    %595 = vector.broadcast %594 : f32 to vector<2x8x8xf32>
    %596 = arith.mulf %469, %595 : vector<2x8x8xf32>
    %597 = arith.addf %593, %596 : vector<2x8x8xf32>
    %c15_336 = arith.constant 15 : index
    %598 = memref.load %arg9[%c15_336] : memref<32xf32, #tpu.memory_space<smem>>
    %599 = vector.broadcast %598 : f32 to vector<2x8x8xf32>
    %600 = arith.mulf %517, %599 : vector<2x8x8xf32>
    %601 = arith.addf %597, %600 : vector<2x8x8xf32>
    %c3_337 = arith.constant 3 : index
    %602 = memref.load %arg10[%c3_337] : memref<8xf32, #tpu.memory_space<smem>>
    %603 = vector.broadcast %602 : f32 to vector<2x8x8xf32>
    %604 = arith.addf %601, %603 : vector<2x8x8xf32>
    %cst_338 = arith.constant 0.000000e+00 : f32
    %605 = vector.broadcast %cst_338 : f32 to vector<2x8x8xf32>
    %606 = arith.maximumf %604, %605 : vector<2x8x8xf32>
    %c0_339 = arith.constant 0 : index
    %c3_340 = arith.constant 3 : index
    %c0_341 = arith.constant 0 : index
    %c0_342 = arith.constant 0 : index
    %607 = vector.load %arg11[%c0_339, %c3_340, %c0_341, %c0_342] : memref<2x8x8x8xf32, #tpu.memory_space<vmem>>, vector<2x1x8x8xf32>
    %608 = vector.shape_cast %607 : vector<2x1x8x8xf32> to vector<2x8x8xf32>
    %609 = vector.shape_cast %606 : vector<2x8x8xf32> to vector<2x1x8x8xf32>
    tpu.vector_store %arg11[%c0_339, %c3_340, %c0_341, %c0_342], %609 {strides = array<i32>} : memref<2x8x8x8xf32, #tpu.memory_space<vmem>>, vector<2x1x8x8xf32>,
    %c16_343 = arith.constant 16 : index
    %610 = memref.load %arg9[%c16_343] : memref<32xf32, #tpu.memory_space<smem>>
    %611 = vector.broadcast %610 : f32 to vector<2x8x8xf32>
    %612 = arith.mulf %373, %611 : vector<2x8x8xf32>
    %c17_344 = arith.constant 17 : index
    %613 = memref.load %arg9[%c17_344] : memref<32xf32, #tpu.memory_space<smem>>
    %614 = vector.broadcast %613 : f32 to vector<2x8x8xf32>
    %615 = arith.mulf %421, %614 : vector<2x8x8xf32>
    %616 = arith.addf %612, %615 : vector<2x8x8xf32>
    %c18_345 = arith.constant 18 : index
    %617 = memref.load %arg9[%c18_345] : memref<32xf32, #tpu.memory_space<smem>>
    %618 = vector.broadcast %617 : f32 to vector<2x8x8xf32>
    %619 = arith.mulf %469, %618 : vector<2x8x8xf32>
    %620 = arith.addf %616, %619 : vector<2x8x8xf32>
    %c19_346 = arith.constant 19 : index
    %621 = memref.load %arg9[%c19_346] : memref<32xf32, #tpu.memory_space<smem>>
    %622 = vector.broadcast %621 : f32 to vector<2x8x8xf32>
    %623 = arith.mulf %517, %622 : vector<2x8x8xf32>
    %624 = arith.addf %620, %623 : vector<2x8x8xf32>
    %c4_347 = arith.constant 4 : index
    %625 = memref.load %arg10[%c4_347] : memref<8xf32, #tpu.memory_space<smem>>
    %626 = vector.broadcast %625 : f32 to vector<2x8x8xf32>
    %627 = arith.addf %624, %626 : vector<2x8x8xf32>
    %cst_348 = arith.constant 0.000000e+00 : f32
    %628 = vector.broadcast %cst_348 : f32 to vector<2x8x8xf32>
    %629 = arith.maximumf %627, %628 : vector<2x8x8xf32>
    %c0_349 = arith.constant 0 : index
    %c4_350 = arith.constant 4 : index
    %c0_351 = arith.constant 0 : index
    %c0_352 = arith.constant 0 : index
    %630 = vector.load %arg11[%c0_349, %c4_350, %c0_351, %c0_352] : memref<2x8x8x8xf32, #tpu.memory_space<vmem>>, vector<2x1x8x8xf32>
    %631 = vector.shape_cast %630 : vector<2x1x8x8xf32> to vector<2x8x8xf32>
    %632 = vector.shape_cast %629 : vector<2x8x8xf32> to vector<2x1x8x8xf32>
    tpu.vector_store %arg11[%c0_349, %c4_350, %c0_351, %c0_352], %632 {strides = array<i32>} : memref<2x8x8x8xf32, #tpu.memory_space<vmem>>, vector<2x1x8x8xf32>,
    %c20_353 = arith.constant 20 : index
    %633 = memref.load %arg9[%c20_353] : memref<32xf32, #tpu.memory_space<smem>>
    %634 = vector.broadcast %633 : f32 to vector<2x8x8xf32>
    %635 = arith.mulf %373, %634 : vector<2x8x8xf32>
    %c21_354 = arith.constant 21 : index
    %636 = memref.load %arg9[%c21_354] : memref<32xf32, #tpu.memory_space<smem>>
    %637 = vector.broadcast %636 : f32 to vector<2x8x8xf32>
    %638 = arith.mulf %421, %637 : vector<2x8x8xf32>
    %639 = arith.addf %635, %638 : vector<2x8x8xf32>
    %c22_355 = arith.constant 22 : index
    %640 = memref.load %arg9[%c22_355] : memref<32xf32, #tpu.memory_space<smem>>
    %641 = vector.broadcast %640 : f32 to vector<2x8x8xf32>
    %642 = arith.mulf %469, %641 : vector<2x8x8xf32>
    %643 = arith.addf %639, %642 : vector<2x8x8xf32>
    %c23_356 = arith.constant 23 : index
    %644 = memref.load %arg9[%c23_356] : memref<32xf32, #tpu.memory_space<smem>>
    %645 = vector.broadcast %644 : f32 to vector<2x8x8xf32>
    %646 = arith.mulf %517, %645 : vector<2x8x8xf32>
    %647 = arith.addf %643, %646 : vector<2x8x8xf32>
    %c5_357 = arith.constant 5 : index
    %648 = memref.load %arg10[%c5_357] : memref<8xf32, #tpu.memory_space<smem>>
    %649 = vector.broadcast %648 : f32 to vector<2x8x8xf32>
    %650 = arith.addf %647, %649 : vector<2x8x8xf32>
    %cst_358 = arith.constant 0.000000e+00 : f32
    %651 = vector.broadcast %cst_358 : f32 to vector<2x8x8xf32>
    %652 = arith.maximumf %650, %651 : vector<2x8x8xf32>
    %c0_359 = arith.constant 0 : index
    %c5_360 = arith.constant 5 : index
    %c0_361 = arith.constant 0 : index
    %c0_362 = arith.constant 0 : index
    %653 = vector.load %arg11[%c0_359, %c5_360, %c0_361, %c0_362] : memref<2x8x8x8xf32, #tpu.memory_space<vmem>>, vector<2x1x8x8xf32>
    %654 = vector.shape_cast %653 : vector<2x1x8x8xf32> to vector<2x8x8xf32>
    %655 = vector.shape_cast %652 : vector<2x8x8xf32> to vector<2x1x8x8xf32>
    tpu.vector_store %arg11[%c0_359, %c5_360, %c0_361, %c0_362], %655 {strides = array<i32>} : memref<2x8x8x8xf32, #tpu.memory_space<vmem>>, vector<2x1x8x8xf32>,
    %c24_363 = arith.constant 24 : index
    %656 = memref.load %arg9[%c24_363] : memref<32xf32, #tpu.memory_space<smem>>
    %657 = vector.broadcast %656 : f32 to vector<2x8x8xf32>
    %658 = arith.mulf %373, %657 : vector<2x8x8xf32>
    %c25_364 = arith.constant 25 : index
    %659 = memref.load %arg9[%c25_364] : memref<32xf32, #tpu.memory_space<smem>>
    %660 = vector.broadcast %659 : f32 to vector<2x8x8xf32>
    %661 = arith.mulf %421, %660 : vector<2x8x8xf32>
    %662 = arith.addf %658, %661 : vector<2x8x8xf32>
    %c26_365 = arith.constant 26 : index
    %663 = memref.load %arg9[%c26_365] : memref<32xf32, #tpu.memory_space<smem>>
    %664 = vector.broadcast %663 : f32 to vector<2x8x8xf32>
    %665 = arith.mulf %469, %664 : vector<2x8x8xf32>
    %666 = arith.addf %662, %665 : vector<2x8x8xf32>
    %c27_366 = arith.constant 27 : index
    %667 = memref.load %arg9[%c27_366] : memref<32xf32, #tpu.memory_space<smem>>
    %668 = vector.broadcast %667 : f32 to vector<2x8x8xf32>
    %669 = arith.mulf %517, %668 : vector<2x8x8xf32>
    %670 = arith.addf %666, %669 : vector<2x8x8xf32>
    %c6_367 = arith.constant 6 : index
    %671 = memref.load %arg10[%c6_367] : memref<8xf32, #tpu.memory_space<smem>>
    %672 = vector.broadcast %671 : f32 to vector<2x8x8xf32>
    %673 = arith.addf %670, %672 : vector<2x8x8xf32>
    %cst_368 = arith.constant 0.000000e+00 : f32
    %674 = vector.broadcast %cst_368 : f32 to vector<2x8x8xf32>
    %675 = arith.maximumf %673, %674 : vector<2x8x8xf32>
    %c0_369 = arith.constant 0 : index
    %c6_370 = arith.constant 6 : index
    %c0_371 = arith.constant 0 : index
    %c0_372 = arith.constant 0 : index
    %676 = vector.load %arg11[%c0_369, %c6_370, %c0_371, %c0_372] : memref<2x8x8x8xf32, #tpu.memory_space<vmem>>, vector<2x1x8x8xf32>
    %677 = vector.shape_cast %676 : vector<2x1x8x8xf32> to vector<2x8x8xf32>
    %678 = vector.shape_cast %675 : vector<2x8x8xf32> to vector<2x1x8x8xf32>
    tpu.vector_store %arg11[%c0_369, %c6_370, %c0_371, %c0_372], %678 {strides = array<i32>} : memref<2x8x8x8xf32, #tpu.memory_space<vmem>>, vector<2x1x8x8xf32>,
    %c28_373 = arith.constant 28 : index
    %679 = memref.load %arg9[%c28_373] : memref<32xf32, #tpu.memory_space<smem>>
    %680 = vector.broadcast %679 : f32 to vector<2x8x8xf32>
    %681 = arith.mulf %373, %680 : vector<2x8x8xf32>
    %c29_374 = arith.constant 29 : index
    %682 = memref.load %arg9[%c29_374] : memref<32xf32, #tpu.memory_space<smem>>
    %683 = vector.broadcast %682 : f32 to vector<2x8x8xf32>
    %684 = arith.mulf %421, %683 : vector<2x8x8xf32>
    %685 = arith.addf %681, %684 : vector<2x8x8xf32>
    %c30_375 = arith.constant 30 : index
    %686 = memref.load %arg9[%c30_375] : memref<32xf32, #tpu.memory_space<smem>>
    %687 = vector.broadcast %686 : f32 to vector<2x8x8xf32>
    %688 = arith.mulf %469, %687 : vector<2x8x8xf32>
    %689 = arith.addf %685, %688 : vector<2x8x8xf32>
    %c31_376 = arith.constant 31 : index
    %690 = memref.load %arg9[%c31_376] : memref<32xf32, #tpu.memory_space<smem>>
    %691 = vector.broadcast %690 : f32 to vector<2x8x8xf32>
    %692 = arith.mulf %517, %691 : vector<2x8x8xf32>
    %693 = arith.addf %689, %692 : vector<2x8x8xf32>
    %c7_377 = arith.constant 7 : index
    %694 = memref.load %arg10[%c7_377] : memref<8xf32, #tpu.memory_space<smem>>
    %695 = vector.broadcast %694 : f32 to vector<2x8x8xf32>
    %696 = arith.addf %693, %695 : vector<2x8x8xf32>
    %cst_378 = arith.constant 0.000000e+00 : f32
    %697 = vector.broadcast %cst_378 : f32 to vector<2x8x8xf32>
    %698 = arith.maximumf %696, %697 : vector<2x8x8xf32>
    %c0_379 = arith.constant 0 : index
    %c7_380 = arith.constant 7 : index
    %c0_381 = arith.constant 0 : index
    %c0_382 = arith.constant 0 : index
    %699 = vector.load %arg11[%c0_379, %c7_380, %c0_381, %c0_382] : memref<2x8x8x8xf32, #tpu.memory_space<vmem>>, vector<2x1x8x8xf32>
    %700 = vector.shape_cast %699 : vector<2x1x8x8xf32> to vector<2x8x8xf32>
    %701 = vector.shape_cast %698 : vector<2x8x8xf32> to vector<2x1x8x8xf32>
    tpu.vector_store %arg11[%c0_379, %c7_380, %c0_381, %c0_382], %701 {strides = array<i32>} : memref<2x8x8x8xf32, #tpu.memory_space<vmem>>, vector<2x1x8x8xf32>,
    return
  }
  func.func @transform_0(%arg0: i32) -> (i32, i32, i32, i32) {
    %c0_i32 = arith.constant 0 : i32
    %c0_i32_0 = arith.constant 0 : i32
    %c0_i32_1 = arith.constant 0 : i32
    %c0_i32_2 = arith.constant 0 : i32
    return %arg0, %c0_i32, %c0_i32_0, %c0_i32_1 : i32, i32, i32, i32
  }
  func.func @transform_1(%arg0: i32) -> (i32, i32, i32, i32) {
    %c0_i32 = arith.constant 0 : i32
    %c0_i32_0 = arith.constant 0 : i32
    %c0_i32_1 = arith.constant 0 : i32
    %c0_i32_2 = arith.constant 0 : i32
    return %arg0, %c0_i32, %c0_i32_0, %c0_i32_1 : i32, i32, i32, i32
  }
  func.func @transform_2(%arg0: i32) -> (i32, i32, i32, i32) {
    %c0_i32 = arith.constant 0 : i32
    %c0_i32_0 = arith.constant 0 : i32
    %c0_i32_1 = arith.constant 0 : i32
    %c0_i32_2 = arith.constant 0 : i32
    return %arg0, %c0_i32, %c0_i32_0, %c0_i32_1 : i32, i32, i32, i32
  }
  func.func @transform_3(%arg0: i32) -> (i32, i32, i32, i32) {
    %c0_i32 = arith.constant 0 : i32
    %c0_i32_0 = arith.constant 0 : i32
    %c0_i32_1 = arith.constant 0 : i32
    %c0_i32_2 = arith.constant 0 : i32
    return %arg0, %c0_i32, %c0_i32_0, %c0_i32_1 : i32, i32, i32, i32
  }
  func.func @transform_4(%arg0: i32) -> i32 {
    %c0_i32 = arith.constant 0 : i32
    %c0_i32_0 = arith.constant 0 : i32
    return %c0_i32 : i32
  }
  func.func @transform_5(%arg0: i32) -> i32 {
    %c0_i32 = arith.constant 0 : i32
    %c0_i32_0 = arith.constant 0 : i32
    return %c0_i32 : i32
  }
  func.func @transform_6(%arg0: i32) -> i32 {
    %c0_i32 = arith.constant 0 : i32
    %c0_i32_0 = arith.constant 0 : i32
    return %c0_i32 : i32
  }
  func.func @transform_7(%arg0: i32) -> i32 {
    %c0_i32 = arith.constant 0 : i32
    %c0_i32_0 = arith.constant 0 : i32
    return %c0_i32 : i32
  }
  func.func @transform_8(%arg0: i32) -> i32 {
    %c0_i32 = arith.constant 0 : i32
    %c0_i32_0 = arith.constant 0 : i32
    return %c0_i32 : i32
  }
  func.func @transform_9(%arg0: i32) -> i32 {
    %c0_i32 = arith.constant 0 : i32
    %c0_i32_0 = arith.constant 0 : i32
    return %c0_i32 : i32
  }
  func.func @transform_10(%arg0: i32) -> (i32, i32, i32, i32) {
    %c0_i32 = arith.constant 0 : i32
    %c0_i32_0 = arith.constant 0 : i32
    %c0_i32_1 = arith.constant 0 : i32
    %c0_i32_2 = arith.constant 0 : i32
    return %arg0, %c0_i32, %c0_i32_0, %c0_i32_1 : i32, i32, i32, i32
  }
}

</mosaic_0001>

<llo_original>
// kernel: sepconv_pallas.1
$region0: #{sepconv_pallas.1}
  #allocation0 [shape = 'u32[]', space=smem, size = 0x4, offset = 0x4, fixed_abs, tag = 'smem constant byte address 0x4 - core index']
  #allocation1 [shape = 'u32[144,128]{1,0:T(1,128)}', space=vmem, size = 0x12000, scoped, tag = 'internal scratch']
  #allocation2 [shape = 'f32[2,4,8,9]{3,2,1,0:T(8,128)}', space=vmem, size = 0x8000, scoped, tag = 'scratch operand']
  #allocation3 [shape = 'f32[2,4,9,8]{3,2,1,0:T(8,128)}', space=vmem, size = 0x10000, scoped, tag = 'scratch operand']
  #allocation4 [shape = 'f32[2,4,9,9]{3,2,1,0:T(8,128)}', space=vmem, size = 0x10000, scoped, tag = 'scratch operand']
  #allocation5 [shape = 'f32[2,4,10,10]{3,2,1,0:T(8,128)}', space=vmem, size = 0x10000, scoped, tag = 'scratch operand']
  %s0 = inlined_call_operand.vmem [shape: f32[2,4,8,8], index: 0, kind: input, shape index: {}]
  %s1 = inlined_call_operand.vmem [shape: f32[2,4,8,8], index: 1, kind: input, shape index: {}]
  %s2 = inlined_call_operand.vmem [shape: f32[2,4,8,8], index: 2, kind: input, shape index: {}]
  %s3 = inlined_call_operand.vmem [shape: f32[2,4,8,8], index: 3, kind: input, shape index: {}]
  %s4 = inlined_call_operand.vmem [shape: f32[36], index: 4, kind: input, shape index: {}]
  %s5 = inlined_call_operand.vmem [shape: f32[16], index: 5, kind: input, shape index: {}]
  %s6 = inlined_call_operand.vmem [shape: f32[4], index: 6, kind: input, shape index: {}]
  %s7 = inlined_call_operand.vmem [shape: f32[36], index: 7, kind: input, shape index: {}]
  %s8 = inlined_call_operand.vmem [shape: f32[32], index: 8, kind: input, shape index: {}]
  %s9 = inlined_call_operand.vmem [shape: f32[8], index: 9, kind: input, shape index: {}]
  %s10 = inlined_call_operand.hbm [shape: f32[2,8,8,8], index: 10, kind: output, shape index: {}]
  %s11 = sld [smem:[#allocation0]]
  $region74: #{sepconv_pallas.1} parent=0
    _
  %s13 = ssub.s32 1, %s11
  %s14 = scalar_select 0, %s13, %s11
  $region1: #{sepconv_pallas.1} parent=0
    #allocation6 [shape = 'u8[512]{0}', space=smem, size = 0x200, scoped, tag = 'input window, operand 4, single buffered']
    #allocation7 [shape = 's32[1]{0}', space=sflag, size = 0x4, scoped, tag = 'scoped memory for sepconv_pallas.1']
    #allocation8 [shape = 's32[1]{0}', space=sflag, size = 0x4, scoped, tag = 'scoped memory for sepconv_pallas.1']
    #allocation9 [shape = 'u8[512]{0}', space=smem, size = 0x200, scoped, tag = 'input window, operand 5, single buffered']
    #allocation10 [shape = 's32[1]{0}', space=sflag, size = 0x4, scoped, tag = 'scoped memory for sepconv_pallas.1']
    #allocation11 [shape = 'u8[512]{0}', space=smem, size = 0x200, scoped, tag = 'input window, operand 6, single buffered']
    #allocation12 [shape = 'u8[512]{0}', space=smem, size = 0x200, scoped, tag = 'input window, operand 7, single buffered']
    #allocation13 [shape = 's32[1]{0}', space=sflag, size = 0x4, scoped, tag = 'scoped memory for sepconv_pallas.1']
    #allocation14 [shape = 'u8[512]{0}', space=smem, size = 0x200, scoped, tag = 'input window, operand 8, single buffered']
    #allocation15 [shape = 'u8[512]{0}', space=smem, size = 0x200, scoped, tag = 'input window, operand 9, single buffered']
    #allocation16 [shape = 's32[1]{0}', space=sflag, size = 0x4, scoped, tag = 'scoped memory for sepconv_pallas.1']
    #allocation17 [shape = 'u8[65536]{0}', space=vmem, size = 0x10000, scoped, tag = 'output window, operand 0, single buffered']
    %15 = vsyncpa [#allocation8], 0
    %16 = vsyncpa [#allocation10], 0
    %17 = vsyncpa [#allocation13], 0
    %18 = vsyncpa [#allocation16], 0
    %19 = vsyncpa [#allocation7], 0
    // Predicated region
    $region2: #{sepconv_pallas.1} parent=1 // pred_check
      _
    $region3: #{sepconv_pallas.1} parent=1 // pred_check_branch
      %21 = sbr.rel (0) target = $region5
    $region4: #{sepconv_pallas.1} parent=1 // pred_region
      _
    $region5: #{sepconv_pallas.1} parent=1 // pred_fallthru
      _
    // Predicated region
    $region6: #{sepconv_pallas.1} parent=1 // pred_check
      _
    $region7: #{sepconv_pallas.1} parent=1 // pred_check_branch
      %23 = sbr.rel (0) target = $region9
    $region8: #{sepconv_pallas.1} parent=1 // pred_region
      _
    $region9: #{sepconv_pallas.1} parent=1 // pred_fallthru
      _
    // Predicated region
    $region10: #{sepconv_pallas.1} parent=1 // pred_check
      _
    $region11: #{sepconv_pallas.1} parent=1 // pred_check_branch
      %25 = sbr.rel (0) target = $region13
    $region12: #{sepconv_pallas.1} parent=1 // pred_region
      _
    $region13: #{sepconv_pallas.1} parent=1 // pred_fallthru
      _
    // Predicated region
    $region14: #{sepconv_pallas.1} parent=1 // pred_check
      _
    $region15: #{sepconv_pallas.1} parent=1 // pred_check_branch
      %27 = sbr.rel (0) target = $region17
    $region16: #{sepconv_pallas.1} parent=1 // pred_region
      _
    $region17: #{sepconv_pallas.1} parent=1 // pred_fallthru
      _
    // Predicated region
    $region18: #{sepconv_pallas.1} parent=1 // pred_check
      _
    $region19: #{sepconv_pallas.1} parent=1 // pred_check_branch
      %29 = sbr.rel (0) target = $region21
    $region20: #{sepconv_pallas.1} parent=1 // pred_region
      %s31 = ssub.s32 16, 16
      %32 = vsyncadd [#allocation8], %s31
      %s34 = sshll.u32 %s4, 4
      %s35 = int_to_ptr.vmem [resolvable:$true] %s34
      %37 = dma.vmem_to_smem %s35, 16, [#allocation6], [#allocation8]
    $region21: #{sepconv_pallas.1} parent=1 // pred_fallthru
      _
    // Predicated region
    $region22: #{sepconv_pallas.1} parent=1 // pred_check
      _
    $region23: #{sepconv_pallas.1} parent=1 // pred_check_branch
      %39 = sbr.rel (0) target = $region25
    $region24: #{sepconv_pallas.1} parent=1 // pred_region
      %s41 = ssub.s32 16, 16
      %42 = vsyncadd [#allocation10], %s41
      %s44 = sshll.u32 %s5, 4
      %s45 = int_to_ptr.vmem [resolvable:$true] %s44
      %47 = dma.vmem_to_smem %s45, 16, [#allocation9], [#allocation10]
    $region25: #{sepconv_pallas.1} parent=1 // pred_fallthru
      _
    // Predicated region
    $region26: #{sepconv_pallas.1} parent=1 // pred_check
      _
    $region27: #{sepconv_pallas.1} parent=1 // pred_check_branch
      %49 = sbr.rel (0) target = $region29
    $region28: #{sepconv_pallas.1} parent=1 // pred_region
      %s51 = ssub.s32 16, 16
      %52 = vsyncadd [#allocation10], %s51
      %s54 = sshll.u32 %s6, 4
      %s55 = int_to_ptr.vmem [resolvable:$true] %s54
      %57 = dma.vmem_to_smem %s55, 16, [#allocation11], [#allocation10]
    $region29: #{sepconv_pallas.1} parent=1 // pred_fallthru
      _
    // Predicated region
    $region30: #{sepconv_pallas.1} parent=1 // pred_check
      _
    $region31: #{sepconv_pallas.1} parent=1 // pred_check_branch
      %59 = sbr.rel (0) target = $region33
    $region32: #{sepconv_pallas.1} parent=1 // pred_region
      %s61 = ssub.s32 16, 16
      %62 = vsyncadd [#allocation13], %s61
      %s64 = sshll.u32 %s7, 4
      %s65 = int_to_ptr.vmem [resolvable:$true] %s64
      %67 = dma.vmem_to_smem %s65, 16, [#allocation12], [#allocation13]
    $region33: #{sepconv_pallas.1} parent=1 // pred_fallthru
      _
    // Predicated region
    $region34: #{sepconv_pallas.1} parent=1 // pred_check
      _
    $region35: #{sepconv_pallas.1} parent=1 // pred_check_branch
      %69 = sbr.rel (0) target = $region37
    $region36: #{sepconv_pallas.1} parent=1 // pred_region
      %s71 = ssub.s32 16, 16
      %72 = vsyncadd [#allocation13], %s71
      %s74 = sshll.u32 %s8, 4
      %s75 = int_to_ptr.vmem [resolvable:$true] %s74
      %77 = dma.vmem_to_smem %s75, 16, [#allocation14], [#allocation13]
    $region37: #{sepconv_pallas.1} parent=1 // pred_fallthru
      _
    // Predicated region
    $region38: #{sepconv_pallas.1} parent=1 // pred_check
      _
    $region39: #{sepconv_pallas.1} parent=1 // pred_check_branch
      %79 = sbr.rel (0) target = $region41
    $region40: #{sepconv_pallas.1} parent=1 // pred_region
      %s81 = ssub.s32 16, 16
      %82 = vsyncadd [#allocation16], %s81
      %s84 = sshll.u32 %s9, 4
      %s85 = int_to_ptr.vmem [resolvable:$true] %s84
      %87 = dma.vmem_to_smem %s85, 16, [#allocation15], [#allocation16]
    $region41: #{sepconv_pallas.1} parent=1 // pred_fallthru
      _
    // Predicated region
    $region42: #{sepconv_pallas.1} parent=1 // pred_check
      _
    $region43: #{sepconv_pallas.1} parent=1 // pred_check_branch
      %89 = sbr.rel (0) target = $region45
    $region44: #{sepconv_pallas.1} parent=1 // pred_region
      %90 = dma.done [#allocation8], 16
    $region45: #{sepconv_pallas.1} parent=1 // pred_fallthru
      _
    // Predicated region
    $region46: #{sepconv_pallas.1} parent=1 // pred_check
      _
    $region47: #{sepconv_pallas.1} parent=1 // pred_check_branch
      %92 = sbr.rel (0) target = $region49
    $region48: #{sepconv_pallas.1} parent=1 // pred_region
      %93 = dma.done [#allocation10], 16
    $region49: #{sepconv_pallas.1} parent=1 // pred_fallthru
      _
    // Predicated region
    $region50: #{sepconv_pallas.1} parent=1 // pred_check
      _
    $region51: #{sepconv_pallas.1} parent=1 // pred_check_branch
      %95 = sbr.rel (0) target = $region53
    $region52: #{sepconv_pallas.1} parent=1 // pred_region
      %96 = dma.done [#allocation10], 16
    $region53: #{sepconv_pallas.1} parent=1 // pred_fallthru
      _
    // Predicated region
    $region54: #{sepconv_pallas.1} parent=1 // pred_check
      _
    $region55: #{sepconv_pallas.1} parent=1 // pred_check_branch
      %98 = sbr.rel (0) target = $region57
    $region56: #{sepconv_pallas.1} parent=1 // pred_region
      %99 = dma.done [#allocation13], 16
    $region57: #{sepconv_pallas.1} parent=1 // pred_fallthru
      _
    // Predicated region
    $region58: #{sepconv_pallas.1} parent=1 // pred_check
      _
    $region59: #{sepconv_pallas.1} parent=1 // pred_check_branch
      %101 = sbr.rel (0) target = $region61
    $region60: #{sepconv_pallas.1} parent=1 // pred_region
      %102 = dma.done [#allocation13], 16
    $region61: #{sepconv_pallas.1} parent=1 // pred_fallthru
      _
    // Predicated region
    $region62: #{sepconv_pallas.1} parent=1 // pred_check
      _
    $region63: #{sepconv_pallas.1} parent=1 // pred_check_branch
      %104 = sbr.rel (0) target = $region65
    $region64: #{sepconv_pallas.1} parent=1 // pred_region
      %105 = dma.done [#allocation16], 16
    $region65: #{sepconv_pallas.1} parent=1 // pred_fallthru
      _
    %106 = sfence
    %vm107 = vcmask 7168
    %108 = vst.msk [vmem:[#allocation2] sm:$0xff] %vm107, 0.0
    %109 = vst.msk [vmem:[#allocation2 + $0x8] sm:$0xff] %vm107, 0.0
    %110 = vst.msk [vmem:[#allocation2 + $0x10] sm:$0xff] %vm107, 0.0
    %111 = vst.msk [vmem:[#allocation2 + $0x18] sm:$0xff] %vm107, 0.0
    %112 = vst.msk [vmem:[#allocation2 + $0x20] sm:$0xff] %vm107, 0.0
    %113 = vst.msk [vmem:[#allocation2 + $0x28] sm:$0xff] %vm107, 0.0
    %114 = vst.msk [vmem:[#allocation2 + $0x30] sm:$0xff] %vm107, 0.0
    %115 = vst.msk [vmem:[#allocation2 + $0x38] sm:$0xff] %vm107, 0.0
    %vm116 = vcmask 57344
    %117 = vst.msk [vmem:[#allocation3] sm:$0x1] %vm116, 0.0
    %118 = vst.msk [vmem:[#allocation3 + $0x10] sm:$0x1] %vm116, 0.0
    %119 = vst.msk [vmem:[#allocation3 + $0x20] sm:$0x1] %vm116, 0.0
    %120 = vst.msk [vmem:[#allocation3 + $0x30] sm:$0x1] %vm116, 0.0
    %121 = vst.msk [vmem:[#allocation3 + $0x40] sm:$0x1] %vm116, 0.0
    %122 = vst.msk [vmem:[#allocation3 + $0x50] sm:$0x1] %vm116, 0.0
    %123 = vst.msk [vmem:[#allocation3 + $0x60] sm:$0x1] %vm116, 0.0
    %124 = vst.msk [vmem:[#allocation3 + $0x70] sm:$0x1] %vm116, 0.0
    %vm125 = vcmask 65536
    %126 = vst.msk [vmem:[#allocation4] sm:$0x1] %vm125, 0.0
    %127 = vst.msk [vmem:[#allocation4 + $0x10] sm:$0x1] %vm125, 0.0
    %128 = vst.msk [vmem:[#allocation4 + $0x20] sm:$0x1] %vm125, 0.0
    %129 = vst.msk [vmem:[#allocation4 + $0x30] sm:$0x1] %vm125, 0.0
    %130 = vst.msk [vmem:[#allocation4 + $0x40] sm:$0x1] %vm125, 0.0
    %131 = vst.msk [vmem:[#allocation4 + $0x50] sm:$0x1] %vm125, 0.0
    %132 = vst.msk [vmem:[#allocation4 + $0x60] sm:$0x1] %vm125, 0.0
    %133 = vst.msk [vmem:[#allocation4 + $0x70] sm:$0x1] %vm125, 0.0
    %134 = vst.msk [vmem:[#allocation4] sm:$0xff] %vm107, 0.0
    %vm135 = vcmask 0
    %136 = vst.msk [vmem:[#allocation4 + $0x8] sm:$0x1] %vm135, 0.0
    %137 = vst.msk [vmem:[#allocation4 + $0x10] sm:$0xff] %vm107, 0.0
    %138 = vst.msk [vmem:[#allocation4 + $0x18] sm:$0x1] %vm135, 0.0
    %139 = vst.msk [vmem:[#allocation4 + $0x20] sm:$0xff] %vm107, 0.0
    %140 = vst.msk [vmem:[#allocation4 + $0x28] sm:$0x1] %vm135, 0.0
    %141 = vst.msk [vmem:[#allocation4 + $0x30] sm:$0xff] %vm107, 0.0
    %142 = vst.msk [vmem:[#allocation4 + $0x38] sm:$0x1] %vm135, 0.0
    %143 = vst.msk [vmem:[#allocation4 + $0x40] sm:$0xff] %vm107, 0.0
    %144 = vst.msk [vmem:[#allocation4 + $0x48] sm:$0x1] %vm135, 0.0
    %145 = vst.msk [vmem:[#allocation4 + $0x50] sm:$0xff] %vm107, 0.0
    %146 = vst.msk [vmem:[#allocation4 + $0x58] sm:$0x1] %vm135, 0.0
    %147 = vst.msk [vmem:[#allocation4 + $0x60] sm:$0xff] %vm107, 0.0
    %148 = vst.msk [vmem:[#allocation4 + $0x68] sm:$0x1] %vm135, 0.0
    %149 = vst.msk [vmem:[#allocation4 + $0x70] sm:$0xff] %vm107, 0.0
    %150 = vst.msk [vmem:[#allocation4 + $0x78] sm:$0x1] %vm135, 0.0
    %vm151 = vcmask 73728
    %152 = vst.msk [vmem:[#allocation5] sm:$0x1] %vm151, 0.0
    %153 = vst.msk [vmem:[#allocation5 + $0x10] sm:$0x1] %vm151, 0.0
    %154 = vst.msk [vmem:[#allocation5 + $0x20] sm:$0x1] %vm151, 0.0
    %155 = vst.msk [vmem:[#allocation5 + $0x30] sm:$0x1] %vm151, 0.0
    %156 = vst.msk [vmem:[#allocation5 + $0x40] sm:$0x1] %vm151, 0.0
    %157 = vst.msk [vmem:[#allocation5 + $0x50] sm:$0x1] %vm151, 0.0
    %158 = vst.msk [vmem:[#allocation5 + $0x60] sm:$0x1] %vm151, 0.0
    %159 = vst.msk [vmem:[#allocation5 + $0x70] sm:$0x1] %vm151, 0.0
    %160 = vst.msk [vmem:[#allocation5 + $0x9] sm:$0x1] %vm151, 0.0
    %161 = vst.msk [vmem:[#allocation5 + $0x19] sm:$0x1] %vm151, 0.0
    %162 = vst.msk [vmem:[#allocation5 + $0x29] sm:$0x1] %vm151, 0.0
    %163 = vst.msk [vmem:[#allocation5 + $0x39] sm:$0x1] %vm151, 0.0
    %164 = vst.msk [vmem:[#allocation5 + $0x49] sm:$0x1] %vm151, 0.0
    %165 = vst.msk [vmem:[#allocation5 + $0x59] sm:$0x1] %vm151, 0.0
    %166 = vst.msk [vmem:[#allocation5 + $0x69] sm:$0x1] %vm151, 0.0
    %167 = vst.msk [vmem:[#allocation5 + $0x79] sm:$0x1] %vm151, 0.0
    %168 = vst.msk [vmem:[#allocation5] sm:$0xff] %vm107, 0.0
    %vm169 = vcmask 1024
    %170 = vst.msk [vmem:[#allocation5 + $0x8] sm:$0x3] %vm169, 0.0
    %171 = vst.msk [vmem:[#allocation5 + $0x10] sm:$0xff] %vm107, 0.0
    %172 = vst.msk [vmem:[#allocation5 + $0x18] sm:$0x3] %vm169, 0.0
    %173 = vst.msk [vmem:[#allocation5 + $0x20] sm:$0xff] %vm107, 0.0
    %174 = vst.msk [vmem:[#allocation5 + $0x28] sm:$0x3] %vm169, 0.0
    %175 = vst.msk [vmem:[#allocation5 + $0x30] sm:$0xff] %vm107, 0.0
    %176 = vst.msk [vmem:[#allocation5 + $0x38] sm:$0x3] %vm169, 0.0
    %177 = vst.msk [vmem:[#allocation5 + $0x40] sm:$0xff] %vm107, 0.0
    %178 = vst.msk [vmem:[#allocation5 + $0x48] sm:$0x3] %vm169, 0.0
    %179 = vst.msk [vmem:[#allocation5 + $0x50] sm:$0xff] %vm107, 0.0
    %180 = vst.msk [vmem:[#allocation5 + $0x58] sm:$0x3] %vm169, 0.0
    %181 = vst.msk [vmem:[#allocation5 + $0x60] sm:$0xff] %vm107, 0.0
    %182 = vst.msk [vmem:[#allocation5 + $0x68] sm:$0x3] %vm169, 0.0
    %183 = vst.msk [vmem:[#allocation5 + $0x70] sm:$0xff] %vm107, 0.0
    %184 = vst.msk [vmem:[#allocation5 + $0x78] sm:$0x3] %vm169, 0.0
    %vm185 = vcmask 80968
    %186 = vst.msk [vmem:[#allocation5] sm:$0xff] %vm185, 0.0
    %vm187 = vcmask 74824
    %188 = vst.msk [vmem:[#allocation5 + $0x8] sm:$0x3] %vm187, 0.0
    %189 = vst.msk [vmem:[#allocation5 + $0x10] sm:$0xff] %vm185, 0.0
    %190 = vst.msk [vmem:[#allocation5 + $0x18] sm:$0x3] %vm187, 0.0
    %191 = vst.msk [vmem:[#allocation5 + $0x20] sm:$0xff] %vm185, 0.0
    %192 = vst.msk [vmem:[#allocation5 + $0x28] sm:$0x3] %vm187, 0.0
    %193 = vst.msk [vmem:[#allocation5 + $0x30] sm:$0xff] %vm185, 0.0
    %194 = vst.msk [vmem:[#allocation5 + $0x38] sm:$0x3] %vm187, 0.0
    %195 = vst.msk [vmem:[#allocation5 + $0x40] sm:$0xff] %vm185, 0.0
    %196 = vst.msk [vmem:[#allocation5 + $0x48] sm:$0x3] %vm187, 0.0
    %197 = vst.msk [vmem:[#allocation5 + $0x50] sm:$0xff] %vm185, 0.0
    %198 = vst.msk [vmem:[#allocation5 + $0x58] sm:$0x3] %vm187, 0.0
    %199 = vst.msk [vmem:[#allocation5 + $0x60] sm:$0xff] %vm185, 0.0
    %200 = vst.msk [vmem:[#allocation5 + $0x68] sm:$0x3] %vm187, 0.0
    %201 = vst.msk [vmem:[#allocation5 + $0x70] sm:$0xff] %vm185, 0.0
    %202 = vst.msk [vmem:[#allocation5 + $0x78] sm:$0x3] %vm187, 0.0
    %v203 = vld [vmem:[%s1] sm:$0xff]
    %v204 = vld [vmem:[%s1 + $0x8] sm:$0xff]
    %v205 = vld [vmem:[%s1 + $0x10] sm:$0xff]
    %v206 = vld [vmem:[%s1 + $0x18] sm:$0xff]
    %v207 = vld [vmem:[%s1 + $0x20] sm:$0xff]
    %v208 = vld [vmem:[%s1 + $0x28] sm:$0xff]
    %v209 = vld [vmem:[%s1 + $0x30] sm:$0xff]
    %v210 = vld [vmem:[%s1 + $0x38] sm:$0xff]
    %219 = vrot.lane.b32.xlu0 %v203, 1
    %v220 = vpop.permute.xlu0 %219
    %221 = vrot.lane.b32.xlu0 %v204, 1
    %v222 = vpop.permute.xlu0 %221
    %223 = vrot.lane.b32.xlu0 %v205, 1
    %v224 = vpop.permute.xlu0 %223
    %225 = vrot.lane.b32.xlu0 %v206, 1
    %v226 = vpop.permute.xlu0 %225
    %227 = vrot.lane.b32.xlu0 %v207, 1
    %v228 = vpop.permute.xlu0 %227
    %229 = vrot.lane.b32.xlu0 %v208, 1
    %v230 = vpop.permute.xlu0 %229
    %231 = vrot.lane.b32.xlu0 %v209, 1
    %v232 = vpop.permute.xlu0 %231
    %233 = vrot.lane.b32.xlu0 %v210, 1
    %v234 = vpop.permute.xlu0 %233
    %vm243 = vcmask 72712
    %244 = vst.msk [vmem:[#allocation2] sm:$0xff] %vm243, %v220
    %245 = vst.msk [vmem:[#allocation2 + $0x8] sm:$0xff] %vm243, %v222
    %246 = vst.msk [vmem:[#allocation2 + $0x10] sm:$0xff] %vm243, %v224
    %247 = vst.msk [vmem:[#allocation2 + $0x18] sm:$0xff] %vm243, %v226
    %248 = vst.msk [vmem:[#allocation2 + $0x20] sm:$0xff] %vm243, %v228
    %249 = vst.msk [vmem:[#allocation2 + $0x28] sm:$0xff] %vm243, %v230
    %250 = vst.msk [vmem:[#allocation2 + $0x30] sm:$0xff] %vm243, %v232
    %251 = vst.msk [vmem:[#allocation2 + $0x38] sm:$0xff] %vm243, %v234
    %v252 = vld [vmem:[%s2] sm:$0xff]
    %v253 = vld [vmem:[%s2 + $0x8] sm:$0xff]
    %v254 = vld [vmem:[%s2 + $0x10] sm:$0xff]
    %v255 = vld [vmem:[%s2 + $0x18] sm:$0xff]
    %v256 = vld [vmem:[%s2 + $0x20] sm:$0xff]
    %v257 = vld [vmem:[%s2 + $0x28] sm:$0xff]
    %v258 = vld [vmem:[%s2 + $0x30] sm:$0xff]
    %v259 = vld [vmem:[%s2 + $0x38] sm:$0xff]
    %vm260 = vcmask 64512
    %261 = vst.msk [vmem:[#allocation3 + $0x1] sm:$0xff] %vm260, %v252
    %262 = vst.msk [vmem:[#allocation3 + $0x11] sm:$0xff] %vm260, %v253
    %263 = vst.msk [vmem:[#allocation3 + $0x21] sm:$0xff] %vm260, %v254
    %264 = vst.msk [vmem:[#allocation3 + $0x31] sm:$0xff] %vm260, %v255
    %265 = vst.msk [vmem:[#allocation3 + $0x41] sm:$0xff] %vm260, %v256
    %266 = vst.msk [vmem:[#allocation3 + $0x51] sm:$0xff] %vm260, %v257
    %267 = vst.msk [vmem:[#allocation3 + $0x61] sm:$0xff] %vm260, %v258
    %268 = vst.msk [vmem:[#allocation3 + $0x71] sm:$0xff] %vm260, %v259
    %v269 = vld [vmem:[%s3] sm:$0xff]
    %v270 = vld [vmem:[%s3 + $0x8] sm:$0xff]
    %v271 = vld [vmem:[%s3 + $0x10] sm:$0xff]
    %v272 = vld [vmem:[%s3 + $0x18] sm:$0xff]
    %v273 = vld [vmem:[%s3 + $0x20] sm:$0xff]
    %v274 = vld [vmem:[%s3 + $0x28] sm:$0xff]
    %v275 = vld [vmem:[%s3 + $0x30] sm:$0xff]
    %v276 = vld [vmem:[%s3 + $0x38] sm:$0xff]
    %285 = vrot.lane.b32.xlu0 %v269, 1
    %v286 = vpop.permute.xlu0 %285
    %287 = vrot.lane.b32.xlu0 %v270, 1
    %v288 = vpop.permute.xlu0 %287
    %289 = vrot.lane.b32.xlu0 %v271, 1
    %v290 = vpop.permute.xlu0 %289
    %291 = vrot.lane.b32.xlu0 %v272, 1
    %v292 = vpop.permute.xlu0 %291
    %293 = vrot.lane.b32.xlu0 %v273, 1
    %v294 = vpop.permute.xlu0 %293
    %295 = vrot.lane.b32.xlu0 %v274, 1
    %v296 = vpop.permute.xlu0 %295
    %297 = vrot.lane.b32.xlu0 %v275, 1
    %v298 = vpop.permute.xlu0 %297
    %299 = vrot.lane.b32.xlu0 %v276, 1
    %v300 = vpop.permute.xlu0 %299
    %309 = vst.msk [vmem:[#allocation4 + $0x1] sm:$0xff] %vm243, %v286
    %310 = vst.msk [vmem:[#allocation4 + $0x11] sm:$0xff] %vm243, %v288
    %311 = vst.msk [vmem:[#allocation4 + $0x21] sm:$0xff] %vm243, %v290
    %312 = vst.msk [vmem:[#allocation4 + $0x31] sm:$0xff] %vm243, %v292
    %313 = vst.msk [vmem:[#allocation4 + $0x41] sm:$0xff] %vm243, %v294
    %314 = vst.msk [vmem:[#allocation4 + $0x51] sm:$0xff] %vm243, %v296
    %315 = vst.msk [vmem:[#allocation4 + $0x61] sm:$0xff] %vm243, %v298
    %316 = vst.msk [vmem:[#allocation4 + $0x71] sm:$0xff] %vm243, %v300
    %v317 = vld [vmem:[%s0] sm:$0xff]
    %v318 = vld [vmem:[%s0 + $0x20] sm:$0xff]
    %s319 = sld [smem:[#allocation6 + $0x4]]
    %v320 = vstv %s319
    %v321 = vmul.f32 %v317, %v320
    %v322 = vmul.f32 %v318, %v320
    %v323 = vld [vmem:[#allocation2] sm:$0xff]
    %v324 = vld [vmem:[#allocation2 + $0x20] sm:$0xff]
    %s325 = sld [smem:[#allocation6 + $0x3]]
    %v326 = vstv %s325
    %v327 = vmul.f32 %v323, %v326
    %v328 = vmul.f32 %v324, %v326
    %v329 = vadd.f32 %v321, %v327
    %v330 = vadd.f32 %v322, %v328
    %s331 = sld [smem:[#allocation6 + $0x5]]
    %v332 = vstv %s331
    %v333 = vmul.f32 %v323, %v332
    %v334 = vmul.f32 %v324, %v332
    %337 = vrot.lane.b32.xlu0 %v333, 127
    %v338 = vpop.permute.xlu0 %337
    %339 = vrot.lane.b32.xlu0 %v334, 127
    %v340 = vpop.permute.xlu0 %339
    %v343 = vadd.f32 %v329, %v338
    %v344 = vadd.f32 %v330, %v340
    %v345 = vld [vmem:[#allocation3] sm:$0xff]
    %v346 = vld [vmem:[#allocation3 + $0x40] sm:$0xff]
    %s347 = sld [smem:[#allocation6 + $0x1]]
    %v348 = vstv %s347
    %v349 = vmul.f32 %v345, %v348
    %v350 = vmul.f32 %v346, %v348
    %v351 = vadd.f32 %v343, %v349
    %v352 = vadd.f32 %v344, %v350
    %v353 = vld [vmem:[#allocation3 + $0x1] sm:$0xff]
    %v354 = vld [vmem:[#allocation3 + $0x41] sm:$0xff]
    %s355 = sld [smem:[#allocation6 + $0x7]]
    %v356 = vstv %s355
    %v357 = vmul.f32 %v353, %v356
    %v358 = vmul.f32 %v354, %v356
    %v359 = vadd.f32 %v351, %v357
    %v360 = vadd.f32 %v352, %v358
    %v361 = vld [vmem:[#allocation4] sm:$0xff]
    %v362 = vld [vmem:[#allocation4 + $0x40] sm:$0xff]
    %s363 = sld [smem:[#allocation6]]
    %v364 = vstv %s363
    %v365 = vmul.f32 %v361, %v364
    %v366 = vmul.f32 %v362, %v364
    %v367 = vadd.f32 %v359, %v365
    %v368 = vadd.f32 %v360, %v366
    %s369 = sld [smem:[#allocation6 + $0x2]]
    %v370 = vstv %s369
    %v371 = vmul.f32 %v361, %v370
    %v372 = vmul.f32 %v362, %v370
    %375 = vrot.lane.b32.xlu0 %v371, 127
    %v376 = vpop.permute.xlu0 %375
    %377 = vrot.lane.b32.xlu0 %v372, 127
    %v378 = vpop.permute.xlu0 %377
    %v381 = vadd.f32 %v367, %v376
    %v382 = vadd.f32 %v368, %v378
    %v383 = vld [vmem:[#allocation4 + $0x1] sm:$0xff]
    %v384 = vld [vmem:[#allocation4 + $0x41] sm:$0xff]
    %s385 = sld [smem:[#allocation6 + $0x6]]
    %v386 = vstv %s385
    %v387 = vmul.f32 %v383, %v386
    %v388 = vmul.f32 %v384, %v386
    %v389 = vadd.f32 %v381, %v387
    %v390 = vadd.f32 %v382, %v388
    %s391 = sld [smem:[#allocation6 + $0x8]]
    %v392 = vstv %s391
    %v393 = vmul.f32 %v383, %v392
    %v394 = vmul.f32 %v384, %v392
    %397 = vrot.lane.b32.xlu0 %v393, 127
    %v398 = vpop.permute.xlu0 %397
    %399 = vrot.lane.b32.xlu0 %v394, 127
    %v400 = vpop.permute.xlu0 %399
    %v403 = vadd.f32 %v389, %v398
    %v404 = vadd.f32 %v390, %v400
    %s405 = scalar_lea.vmem %s0, 8
    %v406 = vld [vmem:[%s405] sm:$0xff]
    %v407 = vld [vmem:[%s405 + $0x20] sm:$0xff]
    %s408 = sld [smem:[#allocation6 + $0xd]]
    %v409 = vstv %s408
    %v410 = vmul.f32 %v406, %v409
    %v411 = vmul.f32 %v407, %v409
    %s412 = scalar_lea.vmem [#allocation2], 8
    %v413 = vld [vmem:[%s412] sm:$0xff]
    %v414 = vld [vmem:[%s412 + $0x20] sm:$0xff]
    %s415 = sld [smem:[#allocation6 + $0xc]]
    %v416 = vstv %s415
    %v417 = vmul.f32 %v413, %v416
    %v418 = vmul.f32 %v414, %v416
    %v419 = vadd.f32 %v410, %v417
    %v420 = vadd.f32 %v411, %v418
    %s421 = sld [smem:[#allocation6 + $0xe]]
    %v422 = vstv %s421
    %v423 = vmul.f32 %v413, %v422
    %v424 = vmul.f32 %v414, %v422
    %427 = vrot.lane.b32.xlu0 %v423, 127
    %v428 = vpop.permute.xlu0 %427
    %429 = vrot.lane.b32.xlu0 %v424, 127
    %v430 = vpop.permute.xlu0 %429
    %v433 = vadd.f32 %v419, %v428
    %v434 = vadd.f32 %v420, %v430
    %s435 = scalar_lea.vmem [#allocation3], 16
    %v436 = vld [vmem:[%s435] sm:$0xff]
    %v437 = vld [vmem:[%s435 + $0x40] sm:$0xff]
    %s438 = sld [smem:[#allocation6 + $0xa]]
    %v439 = vstv %s438
    %v440 = vmul.f32 %v436, %v439
    %v441 = vmul.f32 %v437, %v439
    %v442 = vadd.f32 %v433, %v440
    %v443 = vadd.f32 %v434, %v441
    %v444 = vld [vmem:[%s435 + $0x1] sm:$0xff]
    %v445 = vld [vmem:[%s435 + $0x41] sm:$0xff]
    %s446 = sld [smem:[#allocation6 + $0x10]]
    %v447 = vstv %s446
    %v448 = vmul.f32 %v444, %v447
    %v449 = vmul.f32 %v445, %v447
    %v450 = vadd.f32 %v442, %v448
    %v451 = vadd.f32 %v443, %v449
    %s452 = scalar_lea.vmem [#allocation4], 16
    %v453 = vld [vmem:[%s452] sm:$0xff]
    %v454 = vld [vmem:[%s452 + $0x40] sm:$0xff]
    %s455 = sld [smem:[#allocation6 + $0x9]]
    %v456 = vstv %s455
    %v457 = vmul.f32 %v453, %v456
    %v458 = vmul.f32 %v454, %v456
    %v459 = vadd.f32 %v450, %v457
    %v460 = vadd.f32 %v451, %v458
    %s461 = sld [smem:[#allocation6 + $0xb]]
    %v462 = vstv %s461
    %v463 = vmul.f32 %v453, %v462
    %v464 = vmul.f32 %v454, %v462
    %467 = vrot.lane.b32.xlu0 %v463, 127
    %v468 = vpop.permute.xlu0 %467
    %469 = vrot.lane.b32.xlu0 %v464, 127
    %v470 = vpop.permute.xlu0 %469
    %v473 = vadd.f32 %v459, %v468
    %v474 = vadd.f32 %v460, %v470
    %v475 = vld [vmem:[%s452 + $0x1] sm:$0xff]
    %v476 = vld [vmem:[%s452 + $0x41] sm:$0xff]
    %s477 = sld [smem:[#allocation6 + $0xf]]
    %v478 = vstv %s477
    %v479 = vmul.f32 %v475, %v478
    %v480 = vmul.f32 %v476, %v478
    %v481 = vadd.f32 %v473, %v479
    %v482 = vadd.f32 %v474, %v480
    %s483 = sld [smem:[#allocation6 + $0x11]]
    %v484 = vstv %s483
    %v485 = vmul.f32 %v475, %v484
    %v486 = vmul.f32 %v476, %v484
    %489 = vrot.lane.b32.xlu0 %v485, 127
    %v490 = vpop.permute.xlu0 %489
    %491 = vrot.lane.b32.xlu0 %v486, 127
    %v492 = vpop.permute.xlu0 %491
    %v495 = vadd.f32 %v481, %v490
    %v496 = vadd.f32 %v482, %v492
    %s497 = scalar_lea.vmem %s0, 16
    %v498 = vld [vmem:[%s497] sm:$0xff]
    %v499 = vld [vmem:[%s497 + $0x20] sm:$0xff]
    %s500 = sld [smem:[#allocation6 + $0x16]]
    %v501 = vstv %s500
    %v502 = vmul.f32 %v498, %v501
    %v503 = vmul.f32 %v499, %v501
    %s504 = scalar_lea.vmem [#allocation2], 16
    %v505 = vld [vmem:[%s504] sm:$0xff]
    %v506 = vld [vmem:[%s504 + $0x20] sm:$0xff]
    %s507 = sld [smem:[#allocation6 + $0x15]]
    %v508 = vstv %s507
    %v509 = vmul.f32 %v505, %v508
    %v510 = vmul.f32 %v506, %v508
    %v511 = vadd.f32 %v502, %v509
    %v512 = vadd.f32 %v503, %v510
    %s513 = sld [smem:[#allocation6 + $0x17]]
    %v514 = vstv %s513
    %v515 = vmul.f32 %v505, %v514
    %v516 = vmul.f32 %v506, %v514
    %519 = vrot.lane.b32.xlu0 %v515, 127
    %v520 = vpop.permute.xlu0 %519
    %521 = vrot.lane.b32.xlu0 %v516, 127
    %v522 = vpop.permute.xlu0 %521
    %v525 = vadd.f32 %v511, %v520
    %v526 = vadd.f32 %v512, %v522
    %s527 = scalar_lea.vmem [#allocation3], 32
    %v528 = vld [vmem:[%s527] sm:$0xff]
    %v529 = vld [vmem:[%s527 + $0x40] sm:$0xff]
    %s530 = sld [smem:[#allocation6 + $0x13]]
    %v531 = vstv %s530
    %v532 = vmul.f32 %v528, %v531
    %v533 = vmul.f32 %v529, %v531
    %v534 = vadd.f32 %v525, %v532
    %v535 = vadd.f32 %v526, %v533
    %v536 = vld [vmem:[%s527 + $0x1] sm:$0xff]
    %v537 = vld [vmem:[%s527 + $0x41] sm:$0xff]
    %s538 = sld [smem:[#allocation6 + $0x19]]
    %v539 = vstv %s538
    %v540 = vmul.f32 %v536, %v539
    %v541 = vmul.f32 %v537, %v539
    %v542 = vadd.f32 %v534, %v540
    %v543 = vadd.f32 %v535, %v541
    %s544 = scalar_lea.vmem [#allocation4], 32
    %v545 = vld [vmem:[%s544] sm:$0xff]
    %v546 = vld [vmem:[%s544 + $0x40] sm:$0xff]
    %s547 = sld [smem:[#allocation6 + $0x12]]
    %v548 = vstv %s547
    %v549 = vmul.f32 %v545, %v548
    %v550 = vmul.f32 %v546, %v548
    %v551 = vadd.f32 %v542, %v549
    %v552 = vadd.f32 %v543, %v550
    %s553 = sld [smem:[#allocation6 + $0x14]]
    %v554 = vstv %s553
    %v555 = vmul.f32 %v545, %v554
    %v556 = vmul.f32 %v546, %v554
    %559 = vrot.lane.b32.xlu0 %v555, 127
    %v560 = vpop.permute.xlu0 %559
    %561 = vrot.lane.b32.xlu0 %v556, 127
    %v562 = vpop.permute.xlu0 %561
    %v565 = vadd.f32 %v551, %v560
    %v566 = vadd.f32 %v552, %v562
    %v567 = vld [vmem:[%s544 + $0x1] sm:$0xff]
    %v568 = vld [vmem:[%s544 + $0x41] sm:$0xff]
    %s569 = sld [smem:[#allocation6 + $0x18]]
    %v570 = vstv %s569
    %v571 = vmul.f32 %v567, %v570
    %v572 = vmul.f32 %v568, %v570
    %v573 = vadd.f32 %v565, %v571
    %v574 = vadd.f32 %v566, %v572
    %s575 = sld [smem:[#allocation6 + $0x1a]]
    %v576 = vstv %s575
    %v577 = vmul.f32 %v567, %v576
    %v578 = vmul.f32 %v568, %v576
    %581 = vrot.lane.b32.xlu0 %v577, 127
    %v582 = vpop.permute.xlu0 %581
    %583 = vrot.lane.b32.xlu0 %v578, 127
    %v584 = vpop.permute.xlu0 %583
    %v587 = vadd.f32 %v573, %v582
    %v588 = vadd.f32 %v574, %v584
    %s589 = scalar_lea.vmem %s0, 24
    %v590 = vld [vmem:[%s589] sm:$0xff]
    %v591 = vld [vmem:[%s589 + $0x20] sm:$0xff]
    %s592 = sld [smem:[#allocation6 + $0x1f]]
    %v593 = vstv %s592
    %v594 = vmul.f32 %v590, %v593
    %v595 = vmul.f32 %v591, %v593
    %s596 = scalar_lea.vmem [#allocation2], 24
    %v597 = vld [vmem:[%s596] sm:$0xff]
    %v598 = vld [vmem:[%s596 + $0x20] sm:$0xff]
    %s599 = sld [smem:[#allocation6 + $0x1e]]
    %v600 = vstv %s599
    %v601 = vmul.f32 %v597, %v600
    %v602 = vmul.f32 %v598, %v600
    %v603 = vadd.f32 %v594, %v601
    %v604 = vadd.f32 %v595, %v602
    %s605 = sld [smem:[#allocation6 + $0x20]]
    %v606 = vstv %s605
    %v607 = vmul.f32 %v597, %v606
    %v608 = vmul.f32 %v598, %v606
    %611 = vrot.lane.b32.xlu0 %v607, 127
    %v612 = vpop.permute.xlu0 %611
    %613 = vrot.lane.b32.xlu0 %v608, 127
    %v614 = vpop.permute.xlu0 %613
    %v617 = vadd.f32 %v603, %v612
    %v618 = vadd.f32 %v604, %v614
    %s619 = scalar_lea.vmem [#allocation3], 48
    %v620 = vld [vmem:[%s619] sm:$0xff]
    %v621 = vld [vmem:[%s619 + $0x40] sm:$0xff]
    %s622 = sld [smem:[#allocation6 + $0x1c]]
    %v623 = vstv %s622
    %v624 = vmul.f32 %v620, %v623
    %v625 = vmul.f32 %v621, %v623
    %v626 = vadd.f32 %v617, %v624
    %v627 = vadd.f32 %v618, %v625
    %v628 = vld [vmem:[%s619 + $0x1] sm:$0xff]
    %v629 = vld [vmem:[%s619 + $0x41] sm:$0xff]
    %s630 = sld [smem:[#allocation6 + $0x22]]
    %v631 = vstv %s630
    %v632 = vmul.f32 %v628, %v631
    %v633 = vmul.f32 %v629, %v631
    %v634 = vadd.f32 %v626, %v632
    %v635 = vadd.f32 %v627, %v633
    %s636 = scalar_lea.vmem [#allocation4], 48
    %v637 = vld [vmem:[%s636] sm:$0xff]
    %v638 = vld [vmem:[%s636 + $0x40] sm:$0xff]
    %s639 = sld [smem:[#allocation6 + $0x1b]]
    %v640 = vstv %s639
    %v641 = vmul.f32 %v637, %v640
    %v642 = vmul.f32 %v638, %v640
    %v643 = vadd.f32 %v634, %v641
    %v644 = vadd.f32 %v635, %v642
    %s645 = sld [smem:[#allocation6 + $0x1d]]
    %v646 = vstv %s645
    %v647 = vmul.f32 %v637, %v646
    %v648 = vmul.f32 %v638, %v646
    %651 = vrot.lane.b32.xlu0 %v647, 127
    %v652 = vpop.permute.xlu0 %651
    %653 = vrot.lane.b32.xlu0 %v648, 127
    %v654 = vpop.permute.xlu0 %653
    %v657 = vadd.f32 %v643, %v652
    %v658 = vadd.f32 %v644, %v654
    %v659 = vld [vmem:[%s636 + $0x1] sm:$0xff]
    %v660 = vld [vmem:[%s636 + $0x41] sm:$0xff]
    %s661 = sld [smem:[#allocation6 + $0x21]]
    %v662 = vstv %s661
    %v663 = vmul.f32 %v659, %v662
    %v664 = vmul.f32 %v660, %v662
    %v665 = vadd.f32 %v657, %v663
    %v666 = vadd.f32 %v658, %v664
    %s667 = sld [smem:[#allocation6 + $0x23]]
    %v668 = vstv %s667
    %v669 = vmul.f32 %v659, %v668
    %v670 = vmul.f32 %v660, %v668
    %673 = vrot.lane.b32.xlu0 %v669, 127
    %v674 = vpop.permute.xlu0 %673
    %675 = vrot.lane.b32.xlu0 %v670, 127
    %v676 = vpop.permute.xlu0 %675
    %v679 = vadd.f32 %v665, %v674
    %v680 = vadd.f32 %v666, %v676
    %s681 = sld [smem:[#allocation9]]
    %v682 = vstv %s681
    %v683 = vmul.f32 %v403, %v682
    %v684 = vmul.f32 %v404, %v682
    %s685 = sld [smem:[#allocation9 + $0x1]]
    %v686 = vstv %s685
    %v687 = vmul.f32 %v495, %v686
    %v688 = vmul.f32 %v496, %v686
    %v689 = vadd.f32 %v683, %v687
    %v690 = vadd.f32 %v684, %v688
    %s691 = sld [smem:[#allocation9 + $0x2]]
    %v692 = vstv %s691
    %v693 = vmul.f32 %v587, %v692
    %v694 = vmul.f32 %v588, %v692
    %v695 = vadd.f32 %v689, %v693
    %v696 = vadd.f32 %v690, %v694
    %s697 = sld [smem:[#allocation9 + $0x3]]
    %v698 = vstv %s697
    %v699 = vmul.f32 %v679, %v698
    %v700 = vmul.f32 %v680, %v698
    %v701 = vadd.f32 %v695, %v699
    %v702 = vadd.f32 %v696, %v700
    %s703 = sld [smem:[#allocation11]]
    %v704 = vstv %s703
    %v705 = vadd.f32 %v701, %v704
    %v706 = vadd.f32 %v702, %v704
    %v707 = vmax.f32 %v705, 0.0
    %v708 = vmax.f32 %v706, 0.0
    %711 = vrot.lane.b32.xlu0 %v707, 1
    %v712 = vpop.permute.xlu0 %711
    %713 = vrot.lane.b32.xlu0 %v708, 1
    %v714 = vpop.permute.xlu0 %713
    %717 = vst.msk [vmem:[#allocation5 + $0x1] sm:$0xff] %vm243, %v712
    %718 = vst.msk [vmem:[#allocation5 + $0x41] sm:$0xff] %vm243, %v714
    %s719 = sld [smem:[#allocation9 + $0x4]]
    %v720 = vstv %s719
    %v721 = vmul.f32 %v403, %v720
    %v722 = vmul.f32 %v404, %v720
    %s723 = sld [smem:[#allocation9 + $0x5]]
    %v724 = vstv %s723
    %v725 = vmul.f32 %v495, %v724
    %v726 = vmul.f32 %v496, %v724
    %v727 = vadd.f32 %v721, %v725
    %v728 = vadd.f32 %v722, %v726
    %s729 = sld [smem:[#allocation9 + $0x6]]
    %v730 = vstv %s729
    %v731 = vmul.f32 %v587, %v730
    %v732 = vmul.f32 %v588, %v730
    %v733 = vadd.f32 %v727, %v731
    %v734 = vadd.f32 %v728, %v732
    %s735 = sld [smem:[#allocation9 + $0x7]]
    %v736 = vstv %s735
    %v737 = vmul.f32 %v679, %v736
    %v738 = vmul.f32 %v680, %v736
    %v739 = vadd.f32 %v733, %v737
    %v740 = vadd.f32 %v734, %v738
    %s741 = sld [smem:[#allocation11 + $0x1]]
    %v742 = vstv %s741
    %v743 = vadd.f32 %v739, %v742
    %v744 = vadd.f32 %v740, %v742
    %v745 = vmax.f32 %v743, 0.0
    %v746 = vmax.f32 %v744, 0.0
    %749 = vrot.lane.b32.xlu0 %v745, 1
    %v750 = vpop.permute.xlu0 %749
    %751 = vrot.lane.b32.xlu0 %v746, 1
    %v752 = vpop.permute.xlu0 %751
    %s755 = scalar_lea.vmem [#allocation5], 16
    %756 = vst.msk [vmem:[%s755 + $0x1] sm:$0xff] %vm243, %v750
    %757 = vst.msk [vmem:[%s755 + $0x41] sm:$0xff] %vm243, %v752
    %s758 = sld [smem:[#allocation9 + $0x8]]
    %v759 = vstv %s758
    %v760 = vmul.f32 %v403, %v759
    %v761 = vmul.f32 %v404, %v759
    %s762 = sld [smem:[#allocation9 + $0x9]]
    %v763 = vstv %s762
    %v764 = vmul.f32 %v495, %v763
    %v765 = vmul.f32 %v496, %v763
    %v766 = vadd.f32 %v760, %v764
    %v767 = vadd.f32 %v761, %v765
    %s768 = sld [smem:[#allocation9 + $0xa]]
    %v769 = vstv %s768
    %v770 = vmul.f32 %v587, %v769
    %v771 = vmul.f32 %v588, %v769
    %v772 = vadd.f32 %v766, %v770
    %v773 = vadd.f32 %v767, %v771
    %s774 = sld [smem:[#allocation9 + $0xb]]
    %v775 = vstv %s774
    %v776 = vmul.f32 %v679, %v775
    %v777 = vmul.f32 %v680, %v775
    %v778 = vadd.f32 %v772, %v776
    %v779 = vadd.f32 %v773, %v777
    %s780 = sld [smem:[#allocation11 + $0x2]]
    %v781 = vstv %s780
    %v782 = vadd.f32 %v778, %v781
    %v783 = vadd.f32 %v779, %v781
    %v784 = vmax.f32 %v782, 0.0
    %v785 = vmax.f32 %v783, 0.0
    %788 = vrot.lane.b32.xlu0 %v784, 1
    %v789 = vpop.permute.xlu0 %788
    %790 = vrot.lane.b32.xlu0 %v785, 1
    %v791 = vpop.permute.xlu0 %790
    %s794 = scalar_lea.vmem [#allocation5], 32
    %795 = vst.msk [vmem:[%s794 + $0x1] sm:$0xff] %vm243, %v789
    %796 = vst.msk [vmem:[%s794 + $0x41] sm:$0xff] %vm243, %v791
    %s797 = sld [smem:[#allocation9 + $0xc]]
    %v798 = vstv %s797
    %v799 = vmul.f32 %v403, %v798
    %v800 = vmul.f32 %v404, %v798
    %s801 = sld [smem:[#allocation9 + $0xd]]
    %v802 = vstv %s801
    %v803 = vmul.f32 %v495, %v802
    %v804 = vmul.f32 %v496, %v802
    %v805 = vadd.f32 %v799, %v803
    %v806 = vadd.f32 %v800, %v804
    %s807 = sld [smem:[#allocation9 + $0xe]]
    %v808 = vstv %s807
    %v809 = vmul.f32 %v587, %v808
    %v810 = vmul.f32 %v588, %v808
    %v811 = vadd.f32 %v805, %v809
    %v812 = vadd.f32 %v806, %v810
    %s813 = sld [smem:[#allocation9 + $0xf]]
    %v814 = vstv %s813
    %v815 = vmul.f32 %v679, %v814
    %v816 = vmul.f32 %v680, %v814
    %v817 = vadd.f32 %v811, %v815
    %v818 = vadd.f32 %v812, %v816
    %s819 = sld [smem:[#allocation11 + $0x3]]
    %v820 = vstv %s819
    %v821 = vadd.f32 %v817, %v820
    %v822 = vadd.f32 %v818, %v820
    %v823 = vmax.f32 %v821, 0.0
    %v824 = vmax.f32 %v822, 0.0
    %827 = vrot.lane.b32.xlu0 %v823, 1
    %v828 = vpop.permute.xlu0 %827
    %829 = vrot.lane.b32.xlu0 %v824, 1
    %v830 = vpop.permute.xlu0 %829
    %s833 = scalar_lea.vmem [#allocation5], 48
    %834 = vst.msk [vmem:[%s833 + $0x1] sm:$0xff] %vm243, %v828
    %835 = vst.msk [vmem:[%s833 + $0x41] sm:$0xff] %vm243, %v830
    %v836 = vld [vmem:[#allocation5] sm:$0xff]
    %v837 = vld [vmem:[#allocation5 + $0x8] sm:$0x3]
    %v838 = vld [vmem:[#allocation5 + $0x40] sm:$0xff]
    %v839 = vld [vmem:[#allocation5 + $0x48] sm:$0x3]
    %s840 = sld [smem:[#allocation12]]
    %v841 = vstv %s840
    %v842 = vmul.f32 %v836, %v841
    %v843 = vmul.f32 %v838, %v841
    %v844 = vadd.f32 %v842, 0.0
    %v845 = vadd.f32 %v843, 0.0
    %s846 = sld [smem:[#allocation12 + $0x1]]
    %v847 = vstv %s846
    %v848 = vmul.f32 %v836, %v847
    %v849 = vmul.f32 %v838, %v847
    %852 = vrot.lane.b32.xlu0 %v848, 127
    %v853 = vpop.permute.xlu0 %852
    %854 = vrot.lane.b32.xlu0 %v849, 127
    %v855 = vpop.permute.xlu0 %854
    %v858 = vadd.f32 %v844, %v853
    %v859 = vadd.f32 %v845, %v855
    %s860 = sld [smem:[#allocation12 + $0x2]]
    %v861 = vstv %s860
    %v862 = vmul.f32 %v836, %v861
    %v863 = vmul.f32 %v838, %v861
    %866 = vrot.lane.b32.xlu0 %v862, 126
    %v867 = vpop.permute.xlu0 %866
    %868 = vrot.lane.b32.xlu0 %v863, 126
    %v869 = vpop.permute.xlu0 %868
    %v872 = vadd.f32 %v858, %v867
    %v873 = vadd.f32 %v859, %v869
    %s874 = sld [smem:[#allocation12 + $0x3]]
    %v875 = vstv %s874
    %v876 = vmul.f32 %v836, %v875
    %v877 = vmul.f32 %v837, %v875
    %v878 = vmul.f32 %v838, %v875
    %v879 = vmul.f32 %v839, %v875
    %vm884 = vcmask 1046528
    %v885 = vrot.slane %v876, 1
    %v886 = vrot.slane %v877, 1
    %v887 = vsel %vm884, %v885, %v886
    %v888 = vrot.slane %v878, 1
    %v889 = vrot.slane %v879, 1
    %v890 = vsel %vm884, %v888, %v889
    %v893 = vadd.f32 %v872, %v887
    %v894 = vadd.f32 %v873, %v890
    %s895 = sld [smem:[#allocation12 + $0x4]]
    %v896 = vstv %s895
    %v897 = vmul.f32 %v836, %v896
    %v898 = vmul.f32 %v837, %v896
    %v899 = vmul.f32 %v838, %v896
    %v900 = vmul.f32 %v839, %v896
    %v905 = vrot.slane %v897, 1
    %v906 = vrot.slane %v898, 1
    %v907 = vsel %vm884, %v905, %v906
    %v908 = vrot.slane %v899, 1
    %v909 = vrot.slane %v900, 1
    %v910 = vsel %vm884, %v908, %v909
    %911 = vrot.lane.b32.xlu0 %v907, 127
    %v912 = vpop.permute.xlu0 %911
    %913 = vrot.lane.b32.xlu0 %v910, 127
    %v914 = vpop.permute.xlu0 %913
    %v917 = vadd.f32 %v893, %v912
    %v918 = vadd.f32 %v894, %v914
    %s919 = sld [smem:[#allocation12 + $0x5]]
    %v920 = vstv %s919
    %v921 = vmul.f32 %v836, %v920
    %v922 = vmul.f32 %v837, %v920
    %v923 = vmul.f32 %v838, %v920
    %v924 = vmul.f32 %v839, %v920
    %v929 = vrot.slane %v921, 1
    %v930 = vrot.slane %v922, 1
    %v931 = vsel %vm884, %v929, %v930
    %v932 = vrot.slane %v923, 1
    %v933 = vrot.slane %v924, 1
    %v934 = vsel %vm884, %v932, %v933
    %935 = vrot.lane.b32.xlu0 %v931, 126
    %v936 = vpop.permute.xlu0 %935
    %937 = vrot.lane.b32.xlu0 %v934, 126
    %v938 = vpop.permute.xlu0 %937
    %v941 = vadd.f32 %v917, %v936
    %v942 = vadd.f32 %v918, %v938
    %s943 = sld [smem:[#allocation12 + $0x6]]
    %v944 = vstv %s943
    %v945 = vmul.f32 %v836, %v944
    %v946 = vmul.f32 %v837, %v944
    %v947 = vmul.f32 %v838, %v944
    %v948 = vmul.f32 %v839, %v944
    %vm953 = vcmask 1045504
    %v954 = vrot.slane %v945, 2
    %v955 = vrot.slane %v946, 2
    %v956 = vsel %vm953, %v954, %v955
    %v957 = vrot.slane %v947, 2
    %v958 = vrot.slane %v948, 2
    %v959 = vsel %vm953, %v957, %v958
    %v962 = vadd.f32 %v941, %v956
    %v963 = vadd.f32 %v942, %v959
    %s964 = sld [smem:[#allocation12 + $0x7]]
    %v965 = vstv %s964
    %v966 = vmul.f32 %v836, %v965
    %v967 = vmul.f32 %v837, %v965
    %v968 = vmul.f32 %v838, %v965
    %v969 = vmul.f32 %v839, %v965
    %v974 = vrot.slane %v966, 2
    %v975 = vrot.slane %v967, 2
    %v976 = vsel %vm953, %v974, %v975
    %v977 = vrot.slane %v968, 2
    %v978 = vrot.slane %v969, 2
    %v979 = vsel %vm953, %v977, %v978
    %980 = vrot.lane.b32.xlu0 %v976, 127
    %v981 = vpop.permute.xlu0 %980
    %982 = vrot.lane.b32.xlu0 %v979, 127
    %v983 = vpop.permute.xlu0 %982
    %v986 = vadd.f32 %v962, %v981
    %v987 = vadd.f32 %v963, %v983
    %s988 = sld [smem:[#allocation12 + $0x8]]
    %v989 = vstv %s988
    %v990 = vmul.f32 %v836, %v989
    %v991 = vmul.f32 %v837, %v989
    %v992 = vmul.f32 %v838, %v989
    %v993 = vmul.f32 %v839, %v989
    %v998 = vrot.slane %v990, 2
    %v999 = vrot.slane %v991, 2
    %v1000 = vsel %vm953, %v998, %v999
    %v1001 = vrot.slane %v992, 2
    %v1002 = vrot.slane %v993, 2
    %v1003 = vsel %vm953, %v1001, %v1002
    %1004 = vrot.lane.b32.xlu0 %v1000, 126
    %v1005 = vpop.permute.xlu0 %1004
    %1006 = vrot.lane.b32.xlu0 %v1003, 126
    %v1007 = vpop.permute.xlu0 %1006
    %v1010 = vadd.f32 %v986, %v1005
    %v1011 = vadd.f32 %v987, %v1007
    %v1012 = vld [vmem:[%s755] sm:$0xff]
    %v1013 = vld [vmem:[%s755 + $0x8] sm:$0x3]
    %v1014 = vld [vmem:[%s755 + $0x40] sm:$0xff]
    %v1015 = vld [vmem:[%s755 + $0x48] sm:$0x3]
    %s1016 = sld [smem:[#allocation12 + $0x9]]
    %v1017 = vstv %s1016
    %v1018 = vmul.f32 %v1012, %v1017
    %v1019 = vmul.f32 %v1014, %v1017
    %v1020 = vadd.f32 %v1018, 0.0
    %v1021 = vadd.f32 %v1019, 0.0
    %s1022 = sld [smem:[#allocation12 + $0xa]]
    %v1023 = vstv %s1022
    %v1024 = vmul.f32 %v1012, %v1023
    %v1025 = vmul.f32 %v1014, %v1023
    %1028 = vrot.lane.b32.xlu0 %v1024, 127
    %v1029 = vpop.permute.xlu0 %1028
    %1030 = vrot.lane.b32.xlu0 %v1025, 127
    %v1031 = vpop.permute.xlu0 %1030
    %v1034 = vadd.f32 %v1020, %v1029
    %v1035 = vadd.f32 %v1021, %v1031
    %s1036 = sld [smem:[#allocation12 + $0xb]]
    %v1037 = vstv %s1036
    %v1038 = vmul.f32 %v1012, %v1037
    %v1039 = vmul.f32 %v1014, %v1037
    %1042 = vrot.lane.b32.xlu0 %v1038, 126
    %v1043 = vpop.permute.xlu0 %1042
    %1044 = vrot.lane.b32.xlu0 %v1039, 126
    %v1045 = vpop.permute.xlu0 %1044
    %v1048 = vadd.f32 %v1034, %v1043
    %v1049 = vadd.f32 %v1035, %v1045
    %s1050 = sld [smem:[#allocation12 + $0xc]]
    %v1051 = vstv %s1050
    %v1052 = vmul.f32 %v1012, %v1051
    %v1053 = vmul.f32 %v1013, %v1051
    %v1054 = vmul.f32 %v1014, %v1051
    %v1055 = vmul.f32 %v1015, %v1051
    %v1060 = vrot.slane %v1052, 1
    %v1061 = vrot.slane %v1053, 1
    %v1062 = vsel %vm884, %v1060, %v1061
    %v1063 = vrot.slane %v1054, 1
    %v1064 = vrot.slane %v1055, 1
    %v1065 = vsel %vm884, %v1063, %v1064
    %v1068 = vadd.f32 %v1048, %v1062
    %v1069 = vadd.f32 %v1049, %v1065
    %s1070 = sld [smem:[#allocation12 + $0xd]]
    %v1071 = vstv %s1070
    %v1072 = vmul.f32 %v1012, %v1071
    %v1073 = vmul.f32 %v1013, %v1071
    %v1074 = vmul.f32 %v1014, %v1071
    %v1075 = vmul.f32 %v1015, %v1071
    %v1080 = vrot.slane %v1072, 1
    %v1081 = vrot.slane %v1073, 1
    %v1082 = vsel %vm884, %v1080, %v1081
    %v1083 = vrot.slane %v1074, 1
    %v1084 = vrot.slane %v1075, 1
    %v1085 = vsel %vm884, %v1083, %v1084
    %1086 = vrot.lane.b32.xlu0 %v1082, 127
    %v1087 = vpop.permute.xlu0 %1086
    %1088 = vrot.lane.b32.xlu0 %v1085, 127
    %v1089 = vpop.permute.xlu0 %1088
    %v1092 = vadd.f32 %v1068, %v1087
    %v1093 = vadd.f32 %v1069, %v1089
    %s1094 = sld [smem:[#allocation12 + $0xe]]
    %v1095 = vstv %s1094
    %v1096 = vmul.f32 %v1012, %v1095
    %v1097 = vmul.f32 %v1013, %v1095
    %v1098 = vmul.f32 %v1014, %v1095
    %v1099 = vmul.f32 %v1015, %v1095
    %v1104 = vrot.slane %v1096, 1
    %v1105 = vrot.slane %v1097, 1
    %v1106 = vsel %vm884, %v1104, %v1105
    %v1107 = vrot.slane %v1098, 1
    %v1108 = vrot.slane %v1099, 1
    %v1109 = vsel %vm884, %v1107, %v1108
    %1110 = vrot.lane.b32.xlu0 %v1106, 126
    %v1111 = vpop.permute.xlu0 %1110
    %1112 = vrot.lane.b32.xlu0 %v1109, 126
    %v1113 = vpop.permute.xlu0 %1112
    %v1116 = vadd.f32 %v1092, %v1111
    %v1117 = vadd.f32 %v1093, %v1113
    %s1118 = sld [smem:[#allocation12 + $0xf]]
    %v1119 = vstv %s1118
    %v1120 = vmul.f32 %v1012, %v1119
    %v1121 = vmul.f32 %v1013, %v1119
    %v1122 = vmul.f32 %v1014, %v1119
    %v1123 = vmul.f32 %v1015, %v1119
    %v1128 = vrot.slane %v1120, 2
    %v1129 = vrot.slane %v1121, 2
    %v1130 = vsel %vm953, %v1128, %v1129
    %v1131 = vrot.slane %v1122, 2
    %v1132 = vrot.slane %v1123, 2
    %v1133 = vsel %vm953, %v1131, %v1132
    %v1136 = vadd.f32 %v1116, %v1130
    %v1137 = vadd.f32 %v1117, %v1133
    %s1138 = sld [smem:[#allocation12 + $0x10]]
    %v1139 = vstv %s1138
    %v1140 = vmul.f32 %v1012, %v1139
    %v1141 = vmul.f32 %v1013, %v1139
    %v1142 = vmul.f32 %v1014, %v1139
    %v1143 = vmul.f32 %v1015, %v1139
    %v1148 = vrot.slane %v1140, 2
    %v1149 = vrot.slane %v1141, 2
    %v1150 = vsel %vm953, %v1148, %v1149
    %v1151 = vrot.slane %v1142, 2
    %v1152 = vrot.slane %v1143, 2
    %v1153 = vsel %vm953, %v1151, %v1152
    %1154 = vrot.lane.b32.xlu0 %v1150, 127
    %v1155 = vpop.permute.xlu0 %1154
    %1156 = vrot.lane.b32.xlu0 %v1153, 127
    %v1157 = vpop.permute.xlu0 %1156
    %v1160 = vadd.f32 %v1136, %v1155
    %v1161 = vadd.f32 %v1137, %v1157
    %s1162 = sld [smem:[#allocation12 + $0x11]]
    %v1163 = vstv %s1162
    %v1164 = vmul.f32 %v1012, %v1163
    %v1165 = vmul.f32 %v1013, %v1163
    %v1166 = vmul.f32 %v1014, %v1163
    %v1167 = vmul.f32 %v1015, %v1163
    %v1172 = vrot.slane %v1164, 2
    %v1173 = vrot.slane %v1165, 2
    %v1174 = vsel %vm953, %v1172, %v1173
    %v1175 = vrot.slane %v1166, 2
    %v1176 = vrot.slane %v1167, 2
    %v1177 = vsel %vm953, %v1175, %v1176
    %1178 = vrot.lane.b32.xlu0 %v1174, 126
    %v1179 = vpop.permute.xlu0 %1178
    %1180 = vrot.lane.b32.xlu0 %v1177, 126
    %v1181 = vpop.permute.xlu0 %1180
    %v1184 = vadd.f32 %v1160, %v1179
    %v1185 = vadd.f32 %v1161, %v1181
    %v1186 = vld [vmem:[%s794] sm:$0xff]
    %v1187 = vld [vmem:[%s794 + $0x8] sm:$0x3]
    %v1188 = vld [vmem:[%s794 + $0x40] sm:$0xff]
    %v1189 = vld [vmem:[%s794 + $0x48] sm:$0x3]
    %s1190 = sld [smem:[#allocation12 + $0x12]]
    %v1191 = vstv %s1190
    %v1192 = vmul.f32 %v1186, %v1191
    %v1193 = vmul.f32 %v1188, %v1191
    %v1194 = vadd.f32 %v1192, 0.0
    %v1195 = vadd.f32 %v1193, 0.0
    %s1196 = sld [smem:[#allocation12 + $0x13]]
    %v1197 = vstv %s1196
    %v1198 = vmul.f32 %v1186, %v1197
    %v1199 = vmul.f32 %v1188, %v1197
    %1202 = vrot.lane.b32.xlu0 %v1198, 127
    %v1203 = vpop.permute.xlu0 %1202
    %1204 = vrot.lane.b32.xlu0 %v1199, 127
    %v1205 = vpop.permute.xlu0 %1204
    %v1208 = vadd.f32 %v1194, %v1203
    %v1209 = vadd.f32 %v1195, %v1205
    %s1210 = sld [smem:[#allocation12 + $0x14]]
    %v1211 = vstv %s1210
    %v1212 = vmul.f32 %v1186, %v1211
    %v1213 = vmul.f32 %v1188, %v1211
    %1216 = vrot.lane.b32.xlu0 %v1212, 126
    %v1217 = vpop.permute.xlu0 %1216
    %1218 = vrot.lane.b32.xlu0 %v1213, 126
    %v1219 = vpop.permute.xlu0 %1218
    %v1222 = vadd.f32 %v1208, %v1217
    %v1223 = vadd.f32 %v1209, %v1219
    %s1224 = sld [smem:[#allocation12 + $0x15]]
    %v1225 = vstv %s1224
    %v1226 = vmul.f32 %v1186, %v1225
    %v1227 = vmul.f32 %v1187, %v1225
    %v1228 = vmul.f32 %v1188, %v1225
    %v1229 = vmul.f32 %v1189, %v1225
    %v1234 = vrot.slane %v1226, 1
    %v1235 = vrot.slane %v1227, 1
    %v1236 = vsel %vm884, %v1234, %v1235
    %v1237 = vrot.slane %v1228, 1
    %v1238 = vrot.slane %v1229, 1
    %v1239 = vsel %vm884, %v1237, %v1238
    %v1242 = vadd.f32 %v1222, %v1236
    %v1243 = vadd.f32 %v1223, %v1239
    %s1244 = sld [smem:[#allocation12 + $0x16]]
    %v1245 = vstv %s1244
    %v1246 = vmul.f32 %v1186, %v1245
    %v1247 = vmul.f32 %v1187, %v1245
    %v1248 = vmul.f32 %v1188, %v1245
    %v1249 = vmul.f32 %v1189, %v1245
    %v1254 = vrot.slane %v1246, 1
    %v1255 = vrot.slane %v1247, 1
    %v1256 = vsel %vm884, %v1254, %v1255
    %v1257 = vrot.slane %v1248, 1
    %v1258 = vrot.slane %v1249, 1
    %v1259 = vsel %vm884, %v1257, %v1258
    %1260 = vrot.lane.b32.xlu0 %v1256, 127
    %v1261 = vpop.permute.xlu0 %1260
    %1262 = vrot.lane.b32.xlu0 %v1259, 127
    %v1263 = vpop.permute.xlu0 %1262
    %v1266 = vadd.f32 %v1242, %v1261
    %v1267 = vadd.f32 %v1243, %v1263
    %s1268 = sld [smem:[#allocation12 + $0x17]]
    %v1269 = vstv %s1268
    %v1270 = vmul.f32 %v1186, %v1269
    %v1271 = vmul.f32 %v1187, %v1269
    %v1272 = vmul.f32 %v1188, %v1269
    %v1273 = vmul.f32 %v1189, %v1269
    %v1278 = vrot.slane %v1270, 1
    %v1279 = vrot.slane %v1271, 1
    %v1280 = vsel %vm884, %v1278, %v1279
    %v1281 = vrot.slane %v1272, 1
    %v1282 = vrot.slane %v1273, 1
    %v1283 = vsel %vm884, %v1281, %v1282
    %1284 = vrot.lane.b32.xlu0 %v1280, 126
    %v1285 = vpop.permute.xlu0 %1284
    %1286 = vrot.lane.b32.xlu0 %v1283, 126
    %v1287 = vpop.permute.xlu0 %1286
    %v1290 = vadd.f32 %v1266, %v1285
    %v1291 = vadd.f32 %v1267, %v1287
    %s1292 = sld [smem:[#allocation12 + $0x18]]
    %v1293 = vstv %s1292
    %v1294 = vmul.f32 %v1186, %v1293
    %v1295 = vmul.f32 %v1187, %v1293
    %v1296 = vmul.f32 %v1188, %v1293
    %v1297 = vmul.f32 %v1189, %v1293
    %v1302 = vrot.slane %v1294, 2
    %v1303 = vrot.slane %v1295, 2
    %v1304 = vsel %vm953, %v1302, %v1303
    %v1305 = vrot.slane %v1296, 2
    %v1306 = vrot.slane %v1297, 2
    %v1307 = vsel %vm953, %v1305, %v1306
    %v1310 = vadd.f32 %v1290, %v1304
    %v1311 = vadd.f32 %v1291, %v1307
    %s1312 = sld [smem:[#allocation12 + $0x19]]
    %v1313 = vstv %s1312
    %v1314 = vmul.f32 %v1186, %v1313
    %v1315 = vmul.f32 %v1187, %v1313
    %v1316 = vmul.f32 %v1188, %v1313
    %v1317 = vmul.f32 %v1189, %v1313
    %v1322 = vrot.slane %v1314, 2
    %v1323 = vrot.slane %v1315, 2
    %v1324 = vsel %vm953, %v1322, %v1323
    %v1325 = vrot.slane %v1316, 2
    %v1326 = vrot.slane %v1317, 2
    %v1327 = vsel %vm953, %v1325, %v1326
    %1328 = vrot.lane.b32.xlu0 %v1324, 127
    %v1329 = vpop.permute.xlu0 %1328
    %1330 = vrot.lane.b32.xlu0 %v1327, 127
    %v1331 = vpop.permute.xlu0 %1330
    %v1334 = vadd.f32 %v1310, %v1329
    %v1335 = vadd.f32 %v1311, %v1331
    %s1336 = sld [smem:[#allocation12 + $0x1a]]
    %v1337 = vstv %s1336
    %v1338 = vmul.f32 %v1186, %v1337
    %v1339 = vmul.f32 %v1187, %v1337
    %v1340 = vmul.f32 %v1188, %v1337
    %v1341 = vmul.f32 %v1189, %v1337
    %v1346 = vrot.slane %v1338, 2
    %v1347 = vrot.slane %v1339, 2
    %v1348 = vsel %vm953, %v1346, %v1347
    %v1349 = vrot.slane %v1340, 2
    %v1350 = vrot.slane %v1341, 2
    %v1351 = vsel %vm953, %v1349, %v1350
    %1352 = vrot.lane.b32.xlu0 %v1348, 126
    %v1353 = vpop.permute.xlu0 %1352
    %1354 = vrot.lane.b32.xlu0 %v1351, 126
    %v1355 = vpop.permute.xlu0 %1354
    %v1358 = vadd.f32 %v1334, %v1353
    %v1359 = vadd.f32 %v1335, %v1355
    %v1360 = vld [vmem:[%s833] sm:$0xff]
    %v1361 = vld [vmem:[%s833 + $0x8] sm:$0x3]
    %v1362 = vld [vmem:[%s833 + $0x40] sm:$0xff]
    %v1363 = vld [vmem:[%s833 + $0x48] sm:$0x3]
    %s1364 = sld [smem:[#allocation12 + $0x1b]]
    %v1365 = vstv %s1364
    %v1366 = vmul.f32 %v1360, %v1365
    %v1367 = vmul.f32 %v1362, %v1365
    %v1368 = vadd.f32 %v1366, 0.0
    %v1369 = vadd.f32 %v1367, 0.0
    %s1370 = sld [smem:[#allocation12 + $0x1c]]
    %v1371 = vstv %s1370
    %v1372 = vmul.f32 %v1360, %v1371
    %v1373 = vmul.f32 %v1362, %v1371
    %1376 = vrot.lane.b32.xlu0 %v1372, 127
    %v1377 = vpop.permute.xlu0 %1376
    %1378 = vrot.lane.b32.xlu0 %v1373, 127
    %v1379 = vpop.permute.xlu0 %1378
    %v1382 = vadd.f32 %v1368, %v1377
    %v1383 = vadd.f32 %v1369, %v1379
    %s1384 = sld [smem:[#allocation12 + $0x1d]]
    %v1385 = vstv %s1384
    %v1386 = vmul.f32 %v1360, %v1385
    %v1387 = vmul.f32 %v1362, %v1385
    %1390 = vrot.lane.b32.xlu0 %v1386, 126
    %v1391 = vpop.permute.xlu0 %1390
    %1392 = vrot.lane.b32.xlu0 %v1387, 126
    %v1393 = vpop.permute.xlu0 %1392
    %v1396 = vadd.f32 %v1382, %v1391
    %v1397 = vadd.f32 %v1383, %v1393
    %s1398 = sld [smem:[#allocation12 + $0x1e]]
    %v1399 = vstv %s1398
    %v1400 = vmul.f32 %v1360, %v1399
    %v1401 = vmul.f32 %v1361, %v1399
    %v1402 = vmul.f32 %v1362, %v1399
    %v1403 = vmul.f32 %v1363, %v1399
    %v1408 = vrot.slane %v1400, 1
    %v1409 = vrot.slane %v1401, 1
    %v1410 = vsel %vm884, %v1408, %v1409
    %v1411 = vrot.slane %v1402, 1
    %v1412 = vrot.slane %v1403, 1
    %v1413 = vsel %vm884, %v1411, %v1412
    %v1416 = vadd.f32 %v1396, %v1410
    %v1417 = vadd.f32 %v1397, %v1413
    %s1418 = sld [smem:[#allocation12 + $0x1f]]
    %v1419 = vstv %s1418
    %v1420 = vmul.f32 %v1360, %v1419
    %v1421 = vmul.f32 %v1361, %v1419
    %v1422 = vmul.f32 %v1362, %v1419
    %v1423 = vmul.f32 %v1363, %v1419
    %v1428 = vrot.slane %v1420, 1
    %v1429 = vrot.slane %v1421, 1
    %v1430 = vsel %vm884, %v1428, %v1429
    %v1431 = vrot.slane %v1422, 1
    %v1432 = vrot.slane %v1423, 1
    %v1433 = vsel %vm884, %v1431, %v1432
    %1434 = vrot.lane.b32.xlu0 %v1430, 127
    %v1435 = vpop.permute.xlu0 %1434
    %1436 = vrot.lane.b32.xlu0 %v1433, 127
    %v1437 = vpop.permute.xlu0 %1436
    %v1440 = vadd.f32 %v1416, %v1435
    %v1441 = vadd.f32 %v1417, %v1437
    %s1442 = sld [smem:[#allocation12 + $0x20]]
    %v1443 = vstv %s1442
    %v1444 = vmul.f32 %v1360, %v1443
    %v1445 = vmul.f32 %v1361, %v1443
    %v1446 = vmul.f32 %v1362, %v1443
    %v1447 = vmul.f32 %v1363, %v1443
    %v1452 = vrot.slane %v1444, 1
    %v1453 = vrot.slane %v1445, 1
    %v1454 = vsel %vm884, %v1452, %v1453
    %v1455 = vrot.slane %v1446, 1
    %v1456 = vrot.slane %v1447, 1
    %v1457 = vsel %vm884, %v1455, %v1456
    %1458 = vrot.lane.b32.xlu0 %v1454, 126
    %v1459 = vpop.permute.xlu0 %1458
    %1460 = vrot.lane.b32.xlu0 %v1457, 126
    %v1461 = vpop.permute.xlu0 %1460
    %v1464 = vadd.f32 %v1440, %v1459
    %v1465 = vadd.f32 %v1441, %v1461
    %s1466 = sld [smem:[#allocation12 + $0x21]]
    %v1467 = vstv %s1466
    %v1468 = vmul.f32 %v1360, %v1467
    %v1469 = vmul.f32 %v1361, %v1467
    %v1470 = vmul.f32 %v1362, %v1467
    %v1471 = vmul.f32 %v1363, %v1467
    %v1476 = vrot.slane %v1468, 2
    %v1477 = vrot.slane %v1469, 2
    %v1478 = vsel %vm953, %v1476, %v1477
    %v1479 = vrot.slane %v1470, 2
    %v1480 = vrot.slane %v1471, 2
    %v1481 = vsel %vm953, %v1479, %v1480
    %v1484 = vadd.f32 %v1464, %v1478
    %v1485 = vadd.f32 %v1465, %v1481
    %s1486 = sld [smem:[#allocation12 + $0x22]]
    %v1487 = vstv %s1486
    %v1488 = vmul.f32 %v1360, %v1487
    %v1489 = vmul.f32 %v1361, %v1487
    %v1490 = vmul.f32 %v1362, %v1487
    %v1491 = vmul.f32 %v1363, %v1487
    %v1496 = vrot.slane %v1488, 2
    %v1497 = vrot.slane %v1489, 2
    %v1498 = vsel %vm953, %v1496, %v1497
    %v1499 = vrot.slane %v1490, 2
    %v1500 = vrot.slane %v1491, 2
    %v1501 = vsel %vm953, %v1499, %v1500
    %1502 = vrot.lane.b32.xlu0 %v1498, 127
    %v1503 = vpop.permute.xlu0 %1502
    %1504 = vrot.lane.b32.xlu0 %v1501, 127
    %v1505 = vpop.permute.xlu0 %1504
    %v1508 = vadd.f32 %v1484, %v1503
    %v1509 = vadd.f32 %v1485, %v1505
    %s1510 = sld [smem:[#allocation12 + $0x23]]
    %v1511 = vstv %s1510
    %v1512 = vmul.f32 %v1360, %v1511
    %v1513 = vmul.f32 %v1361, %v1511
    %v1514 = vmul.f32 %v1362, %v1511
    %v1515 = vmul.f32 %v1363, %v1511
    %v1520 = vrot.slane %v1512, 2
    %v1521 = vrot.slane %v1513, 2
    %v1522 = vsel %vm953, %v1520, %v1521
    %v1523 = vrot.slane %v1514, 2
    %v1524 = vrot.slane %v1515, 2
    %v1525 = vsel %vm953, %v1523, %v1524
    %1526 = vrot.lane.b32.xlu0 %v1522, 126
    %v1527 = vpop.permute.xlu0 %1526
    %1528 = vrot.lane.b32.xlu0 %v1525, 126
    %v1529 = vpop.permute.xlu0 %1528
    %v1532 = vadd.f32 %v1508, %v1527
    %v1533 = vadd.f32 %v1509, %v1529
    %s1534 = sld [smem:[#allocation14]]
    %v1535 = vstv %s1534
    %v1536 = vmul.f32 %v1010, %v1535
    %v1537 = vmul.f32 %v1011, %v1535
    %s1538 = sld [smem:[#allocation14 + $0x1]]
    %v1539 = vstv %s1538
    %v1540 = vmul.f32 %v1184, %v1539
    %v1541 = vmul.f32 %v1185, %v1539
    %v1542 = vadd.f32 %v1536, %v1540
    %v1543 = vadd.f32 %v1537, %v1541
    %s1544 = sld [smem:[#allocation14 + $0x2]]
    %v1545 = vstv %s1544
    %v1546 = vmul.f32 %v1358, %v1545
    %v1547 = vmul.f32 %v1359, %v1545
    %v1548 = vadd.f32 %v1542, %v1546
    %v1549 = vadd.f32 %v1543, %v1547
    %s1550 = sld [smem:[#allocation14 + $0x3]]
    %v1551 = vstv %s1550
    %v1552 = vmul.f32 %v1532, %v1551
    %v1553 = vmul.f32 %v1533, %v1551
    %v1554 = vadd.f32 %v1548, %v1552
    %v1555 = vadd.f32 %v1549, %v1553
    %s1556 = sld [smem:[#allocation15]]
    %v1557 = vstv %s1556
    %v1558 = vadd.f32 %v1554, %v1557
    %v1559 = vadd.f32 %v1555, %v1557
    %v1560 = vmax.f32 %v1558, 0.0
    %v1561 = vmax.f32 %v1559, 0.0
    %1562 = vst.msk [vmem:[#allocation17] sm:$0xff] %vm260, %v1560
    %1563 = vst.msk [vmem:[#allocation17 + $0x40] sm:$0xff] %vm260, %v1561
    %s1564 = sld [smem:[#allocation14 + $0x4]]
    %v1565 = vstv %s1564
    %v1566 = vmul.f32 %v1010, %v1565
    %v1567 = vmul.f32 %v1011, %v1565
    %s1568 = sld [smem:[#allocation14 + $0x5]]
    %v1569 = vstv %s1568
    %v1570 = vmul.f32 %v1184, %v1569
    %v1571 = vmul.f32 %v1185, %v1569
    %v1572 = vadd.f32 %v1566, %v1570
    %v1573 = vadd.f32 %v1567, %v1571
    %s1574 = sld [smem:[#allocation14 + $0x6]]
    %v1575 = vstv %s1574
    %v1576 = vmul.f32 %v1358, %v1575
    %v1577 = vmul.f32 %v1359, %v1575
    %v1578 = vadd.f32 %v1572, %v1576
    %v1579 = vadd.f32 %v1573, %v1577
    %s1580 = sld [smem:[#allocation14 + $0x7]]
    %v1581 = vstv %s1580
    %v1582 = vmul.f32 %v1532, %v1581
    %v1583 = vmul.f32 %v1533, %v1581
    %v1584 = vadd.f32 %v1578, %v1582
    %v1585 = vadd.f32 %v1579, %v1583
    %s1586 = sld [smem:[#allocation15 + $0x1]]
    %v1587 = vstv %s1586
    %v1588 = vadd.f32 %v1584, %v1587
    %v1589 = vadd.f32 %v1585, %v1587
    %v1590 = vmax.f32 %v1588, 0.0
    %v1591 = vmax.f32 %v1589, 0.0
    %s1592 = scalar_lea.vmem [#allocation17], 8
    %1593 = vst.msk [vmem:[%s1592] sm:$0xff] %vm260, %v1590
    %1594 = vst.msk [vmem:[%s1592 + $0x40] sm:$0xff] %vm260, %v1591
    %s1595 = sld [smem:[#allocation14 + $0x8]]
    %v1596 = vstv %s1595
    %v1597 = vmul.f32 %v1010, %v1596
    %v1598 = vmul.f32 %v1011, %v1596
    %s1599 = sld [smem:[#allocation14 + $0x9]]
    %v1600 = vstv %s1599
    %v1601 = vmul.f32 %v1184, %v1600
    %v1602 = vmul.f32 %v1185, %v1600
    %v1603 = vadd.f32 %v1597, %v1601
    %v1604 = vadd.f32 %v1598, %v1602
    %s1605 = sld [smem:[#allocation14 + $0xa]]
    %v1606 = vstv %s1605
    %v1607 = vmul.f32 %v1358, %v1606
    %v1608 = vmul.f32 %v1359, %v1606
    %v1609 = vadd.f32 %v1603, %v1607
    %v1610 = vadd.f32 %v1604, %v1608
    %s1611 = sld [smem:[#allocation14 + $0xb]]
    %v1612 = vstv %s1611
    %v1613 = vmul.f32 %v1532, %v1612
    %v1614 = vmul.f32 %v1533, %v1612
    %v1615 = vadd.f32 %v1609, %v1613
    %v1616 = vadd.f32 %v1610, %v1614
    %s1617 = sld [smem:[#allocation15 + $0x2]]
    %v1618 = vstv %s1617
    %v1619 = vadd.f32 %v1615, %v1618
    %v1620 = vadd.f32 %v1616, %v1618
    %v1621 = vmax.f32 %v1619, 0.0
    %v1622 = vmax.f32 %v1620, 0.0
    %s1623 = scalar_lea.vmem [#allocation17], 16
    %1624 = vst.msk [vmem:[%s1623] sm:$0xff] %vm260, %v1621
    %1625 = vst.msk [vmem:[%s1623 + $0x40] sm:$0xff] %vm260, %v1622
    %s1626 = sld [smem:[#allocation14 + $0xc]]
    %v1627 = vstv %s1626
    %v1628 = vmul.f32 %v1010, %v1627
    %v1629 = vmul.f32 %v1011, %v1627
    %s1630 = sld [smem:[#allocation14 + $0xd]]
    %v1631 = vstv %s1630
    %v1632 = vmul.f32 %v1184, %v1631
    %v1633 = vmul.f32 %v1185, %v1631
    %v1634 = vadd.f32 %v1628, %v1632
    %v1635 = vadd.f32 %v1629, %v1633
    %s1636 = sld [smem:[#allocation14 + $0xe]]
    %v1637 = vstv %s1636
    %v1638 = vmul.f32 %v1358, %v1637
    %v1639 = vmul.f32 %v1359, %v1637
    %v1640 = vadd.f32 %v1634, %v1638
    %v1641 = vadd.f32 %v1635, %v1639
    %s1642 = sld [smem:[#allocation14 + $0xf]]
    %v1643 = vstv %s1642
    %v1644 = vmul.f32 %v1532, %v1643
    %v1645 = vmul.f32 %v1533, %v1643
    %v1646 = vadd.f32 %v1640, %v1644
    %v1647 = vadd.f32 %v1641, %v1645
    %s1648 = sld [smem:[#allocation15 + $0x3]]
    %v1649 = vstv %s1648
    %v1650 = vadd.f32 %v1646, %v1649
    %v1651 = vadd.f32 %v1647, %v1649
    %v1652 = vmax.f32 %v1650, 0.0
    %v1653 = vmax.f32 %v1651, 0.0
    %s1654 = scalar_lea.vmem [#allocation17], 24
    %1655 = vst.msk [vmem:[%s1654] sm:$0xff] %vm260, %v1652
    %1656 = vst.msk [vmem:[%s1654 + $0x40] sm:$0xff] %vm260, %v1653
    %s1657 = sld [smem:[#allocation14 + $0x10]]
    %v1658 = vstv %s1657
    %v1659 = vmul.f32 %v1010, %v1658
    %v1660 = vmul.f32 %v1011, %v1658
    %s1661 = sld [smem:[#allocation14 + $0x11]]
    %v1662 = vstv %s1661
    %v1663 = vmul.f32 %v1184, %v1662
    %v1664 = vmul.f32 %v1185, %v1662
    %v1665 = vadd.f32 %v1659, %v1663
    %v1666 = vadd.f32 %v1660, %v1664
    %s1667 = sld [smem:[#allocation14 + $0x12]]
    %v1668 = vstv %s1667
    %v1669 = vmul.f32 %v1358, %v1668
    %v1670 = vmul.f32 %v1359, %v1668
    %v1671 = vadd.f32 %v1665, %v1669
    %v1672 = vadd.f32 %v1666, %v1670
    %s1673 = sld [smem:[#allocation14 + $0x13]]
    %v1674 = vstv %s1673
    %v1675 = vmul.f32 %v1532, %v1674
    %v1676 = vmul.f32 %v1533, %v1674
    %v1677 = vadd.f32 %v1671, %v1675
    %v1678 = vadd.f32 %v1672, %v1676
    %s1679 = sld [smem:[#allocation15 + $0x4]]
    %v1680 = vstv %s1679
    %v1681 = vadd.f32 %v1677, %v1680
    %v1682 = vadd.f32 %v1678, %v1680
    %v1683 = vmax.f32 %v1681, 0.0
    %v1684 = vmax.f32 %v1682, 0.0
    %s1685 = scalar_lea.vmem [#allocation17], 32
    %1686 = vst.msk [vmem:[%s1685] sm:$0xff] %vm260, %v1683
    %1687 = vst.msk [vmem:[%s1685 + $0x40] sm:$0xff] %vm260, %v1684
    %s1688 = sld [smem:[#allocation14 + $0x14]]
    %v1689 = vstv %s1688
    %v1690 = vmul.f32 %v1010, %v1689
    %v1691 = vmul.f32 %v1011, %v1689
    %s1692 = sld [smem:[#allocation14 + $0x15]]
    %v1693 = vstv %s1692
    %v1694 = vmul.f32 %v1184, %v1693
    %v1695 = vmul.f32 %v1185, %v1693
    %v1696 = vadd.f32 %v1690, %v1694
    %v1697 = vadd.f32 %v1691, %v1695
    %s1698 = sld [smem:[#allocation14 + $0x16]]
    %v1699 = vstv %s1698
    %v1700 = vmul.f32 %v1358, %v1699
    %v1701 = vmul.f32 %v1359, %v1699
    %v1702 = vadd.f32 %v1696, %v1700
    %v1703 = vadd.f32 %v1697, %v1701
    %s1704 = sld [smem:[#allocation14 + $0x17]]
    %v1705 = vstv %s1704
    %v1706 = vmul.f32 %v1532, %v1705
    %v1707 = vmul.f32 %v1533, %v1705
    %v1708 = vadd.f32 %v1702, %v1706
    %v1709 = vadd.f32 %v1703, %v1707
    %s1710 = sld [smem:[#allocation15 + $0x5]]
    %v1711 = vstv %s1710
    %v1712 = vadd.f32 %v1708, %v1711
    %v1713 = vadd.f32 %v1709, %v1711
    %v1714 = vmax.f32 %v1712, 0.0
    %v1715 = vmax.f32 %v1713, 0.0
    %s1716 = scalar_lea.vmem [#allocation17], 40
    %1717 = vst.msk [vmem:[%s1716] sm:$0xff] %vm260, %v1714
    %1718 = vst.msk [vmem:[%s1716 + $0x40] sm:$0xff] %vm260, %v1715
    %s1719 = sld [smem:[#allocation14 + $0x18]]
    %v1720 = vstv %s1719
    %v1721 = vmul.f32 %v1010, %v1720
    %v1722 = vmul.f32 %v1011, %v1720
    %s1723 = sld [smem:[#allocation14 + $0x19]]
    %v1724 = vstv %s1723
    %v1725 = vmul.f32 %v1184, %v1724
    %v1726 = vmul.f32 %v1185, %v1724
    %v1727 = vadd.f32 %v1721, %v1725
    %v1728 = vadd.f32 %v1722, %v1726
    %s1729 = sld [smem:[#allocation14 + $0x1a]]
    %v1730 = vstv %s1729
    %v1731 = vmul.f32 %v1358, %v1730
    %v1732 = vmul.f32 %v1359, %v1730
    %v1733 = vadd.f32 %v1727, %v1731
    %v1734 = vadd.f32 %v1728, %v1732
    %s1735 = sld [smem:[#allocation14 + $0x1b]]
    %v1736 = vstv %s1735
    %v1737 = vmul.f32 %v1532, %v1736
    %v1738 = vmul.f32 %v1533, %v1736
    %v1739 = vadd.f32 %v1733, %v1737
    %v1740 = vadd.f32 %v1734, %v1738
    %s1741 = sld [smem:[#allocation15 + $0x6]]
    %v1742 = vstv %s1741
    %v1743 = vadd.f32 %v1739, %v1742
    %v1744 = vadd.f32 %v1740, %v1742
    %v1745 = vmax.f32 %v1743, 0.0
    %v1746 = vmax.f32 %v1744, 0.0
    %s1747 = scalar_lea.vmem [#allocation17], 48
    %1748 = vst.msk [vmem:[%s1747] sm:$0xff] %vm260, %v1745
    %1749 = vst.msk [vmem:[%s1747 + $0x40] sm:$0xff] %vm260, %v1746
    %s1750 = sld [smem:[#allocation14 + $0x1c]]
    %v1751 = vstv %s1750
    %v1752 = vmul.f32 %v1010, %v1751
    %v1753 = vmul.f32 %v1011, %v1751
    %s1754 = sld [smem:[#allocation14 + $0x1d]]
    %v1755 = vstv %s1754
    %v1756 = vmul.f32 %v1184, %v1755
    %v1757 = vmul.f32 %v1185, %v1755
    %v1758 = vadd.f32 %v1752, %v1756
    %v1759 = vadd.f32 %v1753, %v1757
    %s1760 = sld [smem:[#allocation14 + $0x1e]]
    %v1761 = vstv %s1760
    %v1762 = vmul.f32 %v1358, %v1761
    %v1763 = vmul.f32 %v1359, %v1761
    %v1764 = vadd.f32 %v1758, %v1762
    %v1765 = vadd.f32 %v1759, %v1763
    %s1766 = sld [smem:[#allocation14 + $0x1f]]
    %v1767 = vstv %s1766
    %v1768 = vmul.f32 %v1532, %v1767
    %v1769 = vmul.f32 %v1533, %v1767
    %v1770 = vadd.f32 %v1764, %v1768
    %v1771 = vadd.f32 %v1765, %v1769
    %s1772 = sld [smem:[#allocation15 + $0x7]]
    %v1773 = vstv %s1772
    %v1774 = vadd.f32 %v1770, %v1773
    %v1775 = vadd.f32 %v1771, %v1773
    %v1776 = vmax.f32 %v1774, 0.0
    %v1777 = vmax.f32 %v1775, 0.0
    %s1778 = scalar_lea.vmem [#allocation17], 56
    %1779 = vst.msk [vmem:[%s1778] sm:$0xff] %vm260, %v1776
    %1780 = vst.msk [vmem:[%s1778 + $0x40] sm:$0xff] %vm260, %v1777
    // Predicated region
    $region66: #{sepconv_pallas.1} parent=1 // pred_check
      _
    $region67: #{sepconv_pallas.1} parent=1 // pred_check_branch
      %1782 = sbr.rel (0) target = $region69
    $region68: #{sepconv_pallas.1} parent=1 // pred_region
      %s1784 = ssub.s32 2048, 2048
      %1785 = vsyncadd [#allocation7], %s1784
      %s1786 = sshll.u32 [#allocation17], 4
      %s1787 = int_to_ptr.vmem [resolvable:$true] %s1786
      %1792 = dma.vmem_to_hbm [thread:$0]  %s1787, 2048, %s10, [#allocation7], 128, 128, 8
    $region69: #{sepconv_pallas.1} parent=1 // pred_fallthru
      _
    // Predicated region
    $region70: #{sepconv_pallas.1} parent=1 // pred_check
      _
    $region71: #{sepconv_pallas.1} parent=1 // pred_check_branch
      %1794 = sbr.rel (0) target = $region73
    $region72: #{sepconv_pallas.1} parent=1 // pred_region
      %1795 = dma.done [#allocation7], 2048
    $region73: #{sepconv_pallas.1} parent=1 // pred_fallthru
      _
    %1796 = vsyncpa [#allocation7], 1
    %1797 = vsyncpa [#allocation8], 1
    %1798 = vsyncpa [#allocation10], 1
    %1799 = vsyncpa [#allocation13], 1
    %1800 = vsyncpa [#allocation16], 1

</llo_original>
